<compile_context>
chip_gen: v5e
topology: v5e:2x2
jax: 0.10.0
libtpu: 0.0.40
codegen_flags: <defaults>
</compile_context>

<pallas_src>
import functools

import jax
import jax.numpy as jnp
from jax import lax
from jax.experimental import pallas as pl
from jax.experimental.pallas import tpu as pltpu

EPS = 1e-5


# ---------------------------------------------------------------------------
# Weight / input layout helpers (XLA side, tiny tensors)
# ---------------------------------------------------------------------------

def _build_w12(w):
    """(3, 3, Cin, Cout) HWIO conv weight -> (12*Cin, 2*Cout) matmul weight.

    Row index  = (ky*4 + d)*Cin + ci, d indexing the 4 input columns
                 {2u, 2u+1, 2u+2, 2u+3} that feed the output-column pair (2u, 2u+1).
    Col index  = g*Cout + co, g = output-column parity.
    Entry      = w[ky, d-g, ci, co] when 0 <= d-g <= 2, else 0 (block-Toeplitz).
    """
    _, _, cin, cout = w.shape
    w12 = jnp.zeros((3, 4, cin, 2, cout), w.dtype)
    for g in range(2):
        for kx in range(3):
            w12 = w12.at[:, g + kx, :, g, :].set(w[:, kx, :, :])
    return w12.reshape(12 * cin, 2 * cout)


def _pair_w(x):
    """(N, H, W, C) -> (N, H, ceil(W/2), 2*C): fold adjacent W columns into lanes."""
    n, h, w, c = x.shape
    if w % 2:
        x = jnp.pad(x, ((0, 0), (0, 0), (0, 1), (0, 0)))
    return x.reshape(n, h, (w + 1) // 2, 2 * c)


def _im2col_full(x):
    """(N, Hin, Win, Cin) -> (N, Ho, Wp, 12*Cin) full 3x3 + W-pair im2col.

    out[n, r, u, (ky*4+d)*Cin+ci] = x[n, r+ky, 2u+d, ci].   (Used for layer 1 only.)
    """
    _, hin, win, _ = x.shape
    ho, wo = hin - 2, win - 2
    wp = wo // 2
    cols = [x[:, ky:ky + ho, d:d + 2 * wp:2, :]
            for ky in range(3) for d in range(4)]
    return jnp.concatenate(cols, axis=-1)


# ---------------------------------------------------------------------------
# Kernels
# ---------------------------------------------------------------------------

def _pooled_row(x_ref, w_ref, scale_b, shift_b, p, Wp, Cout, prefolded):
    """One pooled output row p: (Wp, Cout) = maxpool2x2(relu(bn(conv3x3(x))))."""
    if prefolded:
        # x_ref: (1, Ho, Wp, K) -- wrapper-side full im2col (layer 1, Cin=3, K=36).
        def conv_row(j):
            return jnp.dot(x_ref[0, 2 * p + j], w_ref[...],
                           preferred_element_type=jnp.float32)
    else:
        # x_ref: (1, Hin, Wu, 2*Cin) -- W-paired layout.  Build the K = 12*Cin
        # im2col slab in VMEM from 4 input rows; only one offset-1 sublane
        # slice per row, all pieces are 2*Cin (=128) lanes wide (vreg aligned).
        rows = [x_ref[0, 2 * p + t] for t in range(4)]
        base = [r[:Wp] for r in rows]           # columns (2u,   2u+1)
        shft = [r[1:Wp + 1] for r in rows]      # columns (2u+2, 2u+3)

        def conv_row(j):
            lhs = jnp.concatenate(
                [base[j], shft[j], base[j + 1], shft[j + 1],
                 base[j + 2], shft[j + 2]], axis=-1)          # (Wp, 12*Cin)
            return jnp.dot(lhs, w_ref[...], preferred_element_type=jnp.float32)

    # conv rows 2p and 2p+1; 128 lanes = (even col | odd col) x Cout.
    y0 = conv_row(0) * scale_b + shift_b        # folded BatchNorm affine
    y1 = conv_row(1) * scale_b + shift_b
    y = jnp.maximum(jnp.maximum(y0, y1), 0.0)   # H-pool + ReLU (max/relu commute)
    return jnp.maximum(y[:, :Cout], y[:, Cout:])   # W-pool = lane-half max


def conv_bn_relu_pool_kernel(x_ref, w_ref, scale_ref, shift_ref, o_ref, *,
                             prefolded):
    """Fused conv3x3 + BN + ReLU + maxpool2x2 for one whole image (layers 1-3)."""
    Hp, Wp, Cout = o_ref.shape[1], o_ref.shape[2], o_ref.shape[3]
    # Hoist the BN scale/shift broadcasts out of the row loop.
    scale_b = jnp.broadcast_to(scale_ref[...], (Wp, 2 * Cout))
    shift_b = jnp.broadcast_to(shift_ref[...], (Wp, 2 * Cout))

    def body(p, carry):
        o_ref[0, p] = _pooled_row(x_ref, w_ref, scale_b, shift_b,
                                  p, Wp, Cout, prefolded).astype(o_ref.dtype)
        return carry

    lax.fori_loop(0, Hp, body, 0)


def conv_bn_relu_pool_fc_kernel(x_ref, w_ref, scale_ref, shift_ref,
                                fcw_ref, fcb_ref, o_ref):
    """Layer 4 fused conv/BN/ReLU/pool with the Linear(1024, 1) folded in."""
    Hp, Wp, Cout = fcw_ref.shape
    scale_b = jnp.broadcast_to(scale_ref[...], (Wp, 2 * Cout))
    shift_b = jnp.broadcast_to(shift_ref[...], (Wp, 2 * Cout))

    acc = jnp.float32(0.0)
    for p in range(Hp):                         # Hp == 4: static unroll
        pooled = _pooled_row(x_ref, w_ref, scale_b, shift_b,
                             p, Wp, Cout, prefolded=False)
        acc = acc + jnp.sum(pooled * fcw_ref[p])
    o_ref[0] = acc + fcb_ref[...]


# ---------------------------------------------------------------------------
# Wrappers
# ---------------------------------------------------------------------------

def fused_conv_bn_relu_pool(x, w, scale, shift, *, conv_pad, prefold):
    """One CNNEncoder layer: Conv2d(3x3, pad=conv_pad) + BN + ReLU + MaxPool2d(2)."""
    N = x.shape[0]
    Cin, Cout = w.shape[2], w.shape[3]
    if conv_pad:
        x = jnp.pad(x, ((0, 0), (1, 1), (1, 1), (0, 0)))
    Hin, Win = x.shape[1], x.shape[2]
    Ho, Wo = Hin - 2, Win - 2
    Hp, Wp = Ho // 2, Wo // 2

    w12 = _build_w12(w).astype(jnp.float32)                    # (12*Cin, 2*Cout)
    scale2 = jnp.tile(scale.astype(jnp.float32), 2)[None]      # (1, 2*Cout)
    shift2 = jnp.tile(shift.astype(jnp.float32), 2)[None]

    if prefold:
        xk = _im2col_full(x)                                   # (N, Ho, Wp, 12*Cin)
        x_block = (1, Ho, Wp, 12 * Cin)
    else:
        xk = _pair_w(x)                                        # (N, Hin, Wu, 2*Cin)
        x_block = (1, Hin, xk.shape[2], 2 * Cin)

    return pl.pallas_call(
        functools.partial(conv_bn_relu_pool_kernel, prefolded=prefold),
        out_shape=jax.ShapeDtypeStruct((N, Hp, Wp, Cout), jnp.float32),
        grid=(N,),
        in_specs=[
            pl.BlockSpec(x_block, lambda n: (n, 0, 0, 0)),
            pl.BlockSpec((12 * Cin, 2 * Cout), lambda n: (0, 0)),
            pl.BlockSpec((1, 2 * Cout), lambda n: (0, 0)),
            pl.BlockSpec((1, 2 * Cout), lambda n: (0, 0)),
        ],
        out_specs=pl.BlockSpec((1, Hp, Wp, Cout), lambda n: (n, 0, 0, 0)),
        compiler_params=pltpu.CompilerParams(
            dimension_semantics=("parallel",)),
    )(xk, w12, scale2, shift2)


def fused_conv_bn_relu_pool_fc(x, w, scale, shift, fc_w, fc_b, *, conv_pad):
    """Final layer (conv/BN/ReLU/pool) with the 1024->1 Linear in the epilogue."""
    N = x.shape[0]
    Cin, Cout = w.shape[2], w.shape[3]
    if conv_pad:
        x = jnp.pad(x, ((0, 0), (1, 1), (1, 1), (0, 0)))
    Hin, Win = x.shape[1], x.shape[2]
    Ho, Wo = Hin - 2, Win - 2
    Hp, Wp = Ho // 2, Wo // 2
    assert fc_w.shape[0] == Cout * Hp * Wp, "Linear(1024, 1) expects 4x4x64 features"

    w12 = _build_w12(w).astype(jnp.float32)
    scale2 = jnp.tile(scale.astype(jnp.float32), 2)[None]
    shift2 = jnp.tile(shift.astype(jnp.float32), 2)[None]
    xk = _pair_w(x)
    Wu = xk.shape[2]
    # fc weight: PyTorch flattens NCHW (c*Hp*Wp + h*Wp + w) -> permute to (h, w, c).
    fcw = fc_w[:, 0].reshape(Cout, Hp, Wp).transpose(1, 2, 0).astype(jnp.float32)
    fcb = fc_b.reshape(1, 1).astype(jnp.float32)

    out = pl.pallas_call(
        conv_bn_relu_pool_fc_kernel,
        out_shape=jax.ShapeDtypeStruct((N, 1, 1), jnp.float32),
        grid=(N,),
        in_specs=[
            pl.BlockSpec((1, Hin, Wu, 2 * Cin), lambda n: (n, 0, 0, 0)),
            pl.BlockSpec((12 * Cin, 2 * Cout), lambda n: (0, 0)),
            pl.BlockSpec((1, 2 * Cout), lambda n: (0, 0)),
            pl.BlockSpec((1, 2 * Cout), lambda n: (0, 0)),
            pl.BlockSpec((Hp, Wp, Cout), lambda n: (0, 0, 0)),
            pl.BlockSpec((1, 1), lambda n: (0, 0)),
        ],
        out_specs=pl.BlockSpec((1, 1, 1), lambda n: (n, 0, 0)),
        compiler_params=pltpu.CompilerParams(
            dimension_semantics=("parallel",)),
    )(xk, w12, scale2, shift2, fcw, fcb)
    return out.reshape(N, 1)


# ---------------------------------------------------------------------------
# Parameters & forward pass
# ---------------------------------------------------------------------------

def init_params(key):
    params = {}
    cins = [3, 64, 64, 64]
    for i in range(4):
        key, k1, k2, k3, k4, k5, k6 = jax.random.split(key, 7)
        cin = cins[i]
        params[f"conv{i}_w"] = 0.05 * jax.random.normal(k1, (3, 3, cin, 64), jnp.float32)
        params[f"conv{i}_b"] = 0.05 * jax.random.normal(k2, (64,), jnp.float32)
        params[f"bn{i}_gamma"] = 1.0 + 0.1 * jax.random.normal(k3, (64,), jnp.float32)
        params[f"bn{i}_beta"] = 0.1 * jax.random.normal(k4, (64,), jnp.float32)
        params[f"bn{i}_mean"] = 0.1 * jax.random.normal(k5, (64,), jnp.float32)
        params[f"bn{i}_var"] = jax.random.uniform(k6, (64,), jnp.float32, 0.5, 1.5)
    key, k1, k2 = jax.random.split(key, 3)
    params["fc_w"] = 0.05 * jax.random.normal(k1, (1024, 1), jnp.float32)
    params["fc_b"] = 0.05 * jax.random.normal(k2, (1,), jnp.float32)
    return params


def _fold_bn(params, i):
    scale = params[f"bn{i}_gamma"] / jnp.sqrt(params[f"bn{i}_var"] + EPS)
    shift = (params[f"conv{i}_b"] - params[f"bn{i}_mean"]) * scale + params[f"bn{i}_beta"]
    return scale, shift


def cnn_encoder_forward(params, x_nchw):
    x = jnp.transpose(x_nchw, (0, 2, 3, 1))      # NCHW -> NHWC
    conv_pads = [0, 0, 1, 1]                     # as in the PyTorch module
    for i in range(3):
        scale, shift = _fold_bn(params, i)
        x = fused_conv_bn_relu_pool(x, params[f"conv{i}_w"], scale, shift,
                                    conv_pad=conv_pads[i], prefold=(i == 0))
    scale, shift = _fold_bn(params, 3)
    return fused_conv_bn_relu_pool_fc(x, params["conv3_w"], scale, shift,
                                      params["fc_w"], params["fc_b"],
                                      conv_pad=conv_pads[3])


def reference_forward(params, x_nchw):
    """Pure-JAX reference (same eval-mode BN semantics) for a sanity check."""
    x = jnp.transpose(x_nchw, (0, 2, 3, 1))
    pads = ["VALID", "VALID", "SAME", "SAME"]
    for i in range(4):
        y = lax.conv_general_dilated(
            x, params[f"conv{i}_w"], (1, 1), pads[i],
            dimension_numbers=("NHWC", "HWIO", "NHWC"),
            precision=lax.Precision.HIGHEST) + params[f"conv{i}_b"]
        scale = params[f"bn{i}_gamma"] / jnp.sqrt(params[f"bn{i}_var"] + EPS)
        y = (y - params[f"bn{i}_mean"]) * scale + params[f"bn{i}_beta"]
        y = jnp.maximum(y, 0.0)
        x = lax.reduce_window(y, -jnp.inf, lax.max,
                              (1, 2, 2, 1), (1, 2, 2, 1), "VALID")
    x = jnp.transpose(x, (0, 3, 1, 2)).reshape(x.shape[0], -1)
    return x @ params["fc_w"] + params["fc_b"]


# ---------------------------------------------------------------------------

if __name__ == "__main__":
    key = jax.random.PRNGKey(0)
    pkey, xkey = jax.random.split(key)
    params = init_params(pkey)

    # 84x84 input => 4x4x64 = 1024 features before Linear(1024, 1), matching the
    # module's hard-coded flatten size.
    x = jax.random.normal(xkey, (2, 3, 84, 84), jnp.float32)

    out = jax.jit(cnn_encoder_forward)(params, x)
    out = jax.block_until_ready(out)
    assert out.shape == (2, 1), out.shape

    ref = reference_forward(params, x)
    max_err = float(jnp.max(jnp.abs(out - ref)))
    assert max_err < 5e-2, f"kernel/reference mismatch: max abs err = {max_err}"

    print("KERNEL_OK")
</pallas_src>

<mosaic_0001>
module attributes {stable_mosaic.version = 11 : i64} {
  func.func @conv_bn_relu_pool_kernel(%arg0: i32, %arg1: memref<1x82x41x36xf32, #tpu.memory_space<vmem>>, %arg2: memref<36x128xf32, #tpu.memory_space<vmem>>, %arg3: memref<1x128xf32, #tpu.memory_space<vmem>>, %arg4: memref<1x128xf32, #tpu.memory_space<vmem>>, %arg5: memref<1x41x41x64xf32, #tpu.memory_space<vmem>>) attributes {dimension_semantics = [#tpu.dimension_semantics<parallel>], iteration_bounds = array<i64: 2>, scalar_prefetch = 0 : i64, scratch_operands = 0 : i64, tpu.core_type = #tpu.core_type<tc>, window_params = [{transform_indices = @transform_0, window_bounds = array<i64: 1, 82, 41, 36>}, {pipeline_mode = #tpu.pipeline_mode<synchronous>, transform_indices = @transform_1, window_bounds = array<i64: 36, 128>}, {pipeline_mode = #tpu.pipeline_mode<synchronous>, transform_indices = @transform_2, window_bounds = array<i64: 1, 128>}, {pipeline_mode = #tpu.pipeline_mode<synchronous>, transform_indices = @transform_3, window_bounds = array<i64: 1, 128>}, {transform_indices = @transform_4, window_bounds = array<i64: 1, 41, 41, 64>}]} {
    %c0 = arith.constant 0 : index
    %c0_0 = arith.constant 0 : index
    %0 = vector.load %arg3[%c0, %c0_0] : memref<1x128xf32, #tpu.memory_space<vmem>>, vector<1x128xf32>
    %1 = vector.shape_cast %0 : vector<1x128xf32> to vector<1x128xf32>
    %2 = vector.broadcast %1 : vector<1x128xf32> to vector<41x128xf32>
    %c0_1 = arith.constant 0 : index
    %c0_2 = arith.constant 0 : index
    %3 = vector.load %arg4[%c0_1, %c0_2] : memref<1x128xf32, #tpu.memory_space<vmem>>, vector<1x128xf32>
    %4 = vector.shape_cast %3 : vector<1x128xf32> to vector<1x128xf32>
    %5 = vector.broadcast %4 : vector<1x128xf32> to vector<41x128xf32>
    %c0_i32 = arith.constant 0 : i32
    %c41_i32 = arith.constant 41 : i32
    %6 = arith.addi %c0_i32, %c41_i32 : i32
    %c1_i32 = arith.constant 1 : i32
    scf.for %arg6 = %c0_i32 to %6 step %c1_i32  : i32 {
      %c2_i32 = arith.constant 2 : i32
      %7 = arith.muli %c2_i32, %arg6 : i32
      %c0_i32_4 = arith.constant 0 : i32
      %8 = arith.addi %7, %c0_i32_4 : i32
      %c0_5 = arith.constant 0 : index
      %9 = arith.index_cast %8 : i32 to index
      %c0_6 = arith.constant 0 : index
      %c0_7 = arith.constant 0 : index
      %10 = vector.load %arg1[%c0_5, %9, %c0_6, %c0_7] : memref<1x82x41x36xf32, #tpu.memory_space<vmem>>, vector<1x1x41x36xf32>
      %11 = vector.shape_cast %10 : vector<1x1x41x36xf32> to vector<41x36xf32>
      %c0_8 = arith.constant 0 : index
      %c0_9 = arith.constant 0 : index
      %12 = vector.load %arg2[%c0_8, %c0_9] : memref<36x128xf32, #tpu.memory_space<vmem>>, vector<36x128xf32>
      %cst = arith.constant dense<0.000000e+00> : vector<41x128xf32>
      %13 = tpu.matmul %11, %12, %cst {dimension_numbers = #tpu.dot_dimension_numbers<[1], [0], [0], [1], [0, 0, 1, 1], [], []>} : vector<41x36xf32>, vector<36x128xf32>, vector<41x128xf32> -> vector<41x128xf32>
      %14 = arith.mulf %13, %2 : vector<41x128xf32>
      %15 = arith.addf %14, %5 : vector<41x128xf32>
      %c2_i32_10 = arith.constant 2 : i32
      %16 = arith.muli %c2_i32_10, %arg6 : i32
      %c1_i32_11 = arith.constant 1 : i32
      %17 = arith.addi %16, %c1_i32_11 : i32
      %c0_12 = arith.constant 0 : index
      %18 = arith.index_cast %17 : i32 to index
      %c0_13 = arith.constant 0 : index
      %c0_14 = arith.constant 0 : index
      %19 = vector.load %arg1[%c0_12, %18, %c0_13, %c0_14] : memref<1x82x41x36xf32, #tpu.memory_space<vmem>>, vector<1x1x41x36xf32>
      %20 = vector.shape_cast %19 : vector<1x1x41x36xf32> to vector<41x36xf32>
      %c0_15 = arith.constant 0 : index
      %c0_16 = arith.constant 0 : index
      %21 = vector.load %arg2[%c0_15, %c0_16] : memref<36x128xf32, #tpu.memory_space<vmem>>, vector<36x128xf32>
      %cst_17 = arith.constant dense<0.000000e+00> : vector<41x128xf32>
      %22 = tpu.matmul %20, %21, %cst_17 {dimension_numbers = #tpu.dot_dimension_numbers<[1], [0], [0], [1], [0, 0, 1, 1], [], []>} : vector<41x36xf32>, vector<36x128xf32>, vector<41x128xf32> -> vector<41x128xf32>
      %23 = arith.mulf %22, %2 : vector<41x128xf32>
      %24 = arith.addf %23, %5 : vector<41x128xf32>
      %25 = arith.maximumf %15, %24 : vector<41x128xf32>
      %cst_18 = arith.constant 0.000000e+00 : f32
      %26 = vector.broadcast %cst_18 : f32 to vector<41x128xf32>
      %27 = arith.maximumf %25, %26 : vector<41x128xf32>
      %28 = vector.extract_strided_slice %27 {offsets = [0, 0], sizes = [41, 64], strides = [1, 1]} : vector<41x128xf32> to vector<41x64xf32>
      %29 = vector.extract_strided_slice %27 {offsets = [0, 64], sizes = [41, 64], strides = [1, 1]} : vector<41x128xf32> to vector<41x64xf32>
      %30 = arith.maximumf %28, %29 : vector<41x64xf32>
      %c0_19 = arith.constant 0 : index
      %31 = arith.index_cast %arg6 : i32 to index
      %c0_20 = arith.constant 0 : index
      %c0_21 = arith.constant 0 : index
      %32 = vector.load %arg5[%c0_19, %31, %c0_20, %c0_21] : memref<1x41x41x64xf32, #tpu.memory_space<vmem>>, vector<1x1x41x64xf32>
      %33 = vector.shape_cast %32 : vector<1x1x41x64xf32> to vector<41x64xf32>
      %34 = vector.shape_cast %30 : vector<41x64xf32> to vector<1x1x41x64xf32>
      tpu.vector_store %arg5[%c0_19, %31, %c0_20, %c0_21], %34 {strides = array<i32>} : memref<1x41x41x64xf32, #tpu.memory_space<vmem>>, vector<1x1x41x64xf32>,
    }
    %c41_i32_3 = arith.constant 41 : i32
    return
  }
  func.func @transform_0(%arg0: i32) -> (i32, i32, i32, i32) {
    %c0_i32 = arith.constant 0 : i32
    %c0_i32_0 = arith.constant 0 : i32
    %c0_i32_1 = arith.constant 0 : i32
    %c0_i32_2 = arith.constant 0 : i32
    return %arg0, %c0_i32, %c0_i32_0, %c0_i32_1 : i32, i32, i32, i32
  }
  func.func @transform_1(%arg0: i32) -> (i32, i32) {
    %c0_i32 = arith.constant 0 : i32
    %c0_i32_0 = arith.constant 0 : i32
    %c0_i32_1 = arith.constant 0 : i32
    return %c0_i32, %c0_i32_0 : i32, i32
  }
  func.func @transform_2(%arg0: i32) -> (i32, i32) {
    %c0_i32 = arith.constant 0 : i32
    %c0_i32_0 = arith.constant 0 : i32
    %c0_i32_1 = arith.constant 0 : i32
    return %c0_i32, %c0_i32_0 : i32, i32
  }
  func.func @transform_3(%arg0: i32) -> (i32, i32) {
    %c0_i32 = arith.constant 0 : i32
    %c0_i32_0 = arith.constant 0 : i32
    %c0_i32_1 = arith.constant 0 : i32
    return %c0_i32, %c0_i32_0 : i32, i32
  }
  func.func @transform_4(%arg0: i32) -> (i32, i32, i32, i32) {
    %c0_i32 = arith.constant 0 : i32
    %c0_i32_0 = arith.constant 0 : i32
    %c0_i32_1 = arith.constant 0 : i32
    %c0_i32_2 = arith.constant 0 : i32
    return %arg0, %c0_i32, %c0_i32_0, %c0_i32_1 : i32, i32, i32, i32
  }
}

module attributes {stable_mosaic.version = 11 : i64} {
  func.func @conv_bn_relu_pool_kernel(%arg0: i32, %arg1: memref<1x41x21x128xf32, #tpu.memory_space<vmem>>, %arg2: memref<768x128xf32, #tpu.memory_space<vmem>>, %arg3: memref<1x128xf32, #tpu.memory_space<vmem>>, %arg4: memref<1x128xf32, #tpu.memory_space<vmem>>, %arg5: memref<1x19x19x64xf32, #tpu.memory_space<vmem>>) attributes {dimension_semantics = [#tpu.dimension_semantics<parallel>], iteration_bounds = array<i64: 2>, scalar_prefetch = 0 : i64, scratch_operands = 0 : i64, tpu.core_type = #tpu.core_type<tc>, window_params = [{transform_indices = @transform_0, window_bounds = array<i64: 1, 41, 21, 128>}, {pipeline_mode = #tpu.pipeline_mode<synchronous>, transform_indices = @transform_1, window_bounds = array<i64: 768, 128>}, {pipeline_mode = #tpu.pipeline_mode<synchronous>, transform_indices = @transform_2, window_bounds = array<i64: 1, 128>}, {pipeline_mode = #tpu.pipeline_mode<synchronous>, transform_indices = @transform_3, window_bounds = array<i64: 1, 128>}, {transform_indices = @transform_4, window_bounds = array<i64: 1, 19, 19, 64>}]} {
    %c0 = arith.constant 0 : index
    %c0_0 = arith.constant 0 : index
    %0 = vector.load %arg3[%c0, %c0_0] : memref<1x128xf32, #tpu.memory_space<vmem>>, vector<1x128xf32>
    %1 = vector.shape_cast %0 : vector<1x128xf32> to vector<1x128xf32>
    %2 = vector.broadcast %1 : vector<1x128xf32> to vector<19x128xf32>
    %c0_1 = arith.constant 0 : index
    %c0_2 = arith.constant 0 : index
    %3 = vector.load %arg4[%c0_1, %c0_2] : memref<1x128xf32, #tpu.memory_space<vmem>>, vector<1x128xf32>
    %4 = vector.shape_cast %3 : vector<1x128xf32> to vector<1x128xf32>
    %5 = vector.broadcast %4 : vector<1x128xf32> to vector<19x128xf32>
    %c0_i32 = arith.constant 0 : i32
    %c19_i32 = arith.constant 19 : i32
    %6 = arith.addi %c0_i32, %c19_i32 : i32
    %c1_i32 = arith.constant 1 : i32
    scf.for %arg6 = %c0_i32 to %6 step %c1_i32  : i32 {
      %c2_i32 = arith.constant 2 : i32
      %7 = arith.muli %c2_i32, %arg6 : i32
      %c0_i32_4 = arith.constant 0 : i32
      %8 = arith.addi %7, %c0_i32_4 : i32
      %c0_5 = arith.constant 0 : index
      %9 = arith.index_cast %8 : i32 to index
      %c0_6 = arith.constant 0 : index
      %c0_7 = arith.constant 0 : index
      %10 = vector.load %arg1[%c0_5, %9, %c0_6, %c0_7] : memref<1x41x21x128xf32, #tpu.memory_space<vmem>>, vector<1x1x21x128xf32>
      %11 = vector.shape_cast %10 : vector<1x1x21x128xf32> to vector<21x128xf32>
      %c2_i32_8 = arith.constant 2 : i32
      %12 = arith.muli %c2_i32_8, %arg6 : i32
      %c1_i32_9 = arith.constant 1 : i32
      %13 = arith.addi %12, %c1_i32_9 : i32
      %c0_10 = arith.constant 0 : index
      %14 = arith.index_cast %13 : i32 to index
      %c0_11 = arith.constant 0 : index
      %c0_12 = arith.constant 0 : index
      %15 = vector.load %arg1[%c0_10, %14, %c0_11, %c0_12] : memref<1x41x21x128xf32, #tpu.memory_space<vmem>>, vector<1x1x21x128xf32>
      %16 = vector.shape_cast %15 : vector<1x1x21x128xf32> to vector<21x128xf32>
      %c2_i32_13 = arith.constant 2 : i32
      %17 = arith.muli %c2_i32_13, %arg6 : i32
      %c2_i32_14 = arith.constant 2 : i32
      %18 = arith.addi %17, %c2_i32_14 : i32
      %c0_15 = arith.constant 0 : index
      %19 = arith.index_cast %18 : i32 to index
      %c0_16 = arith.constant 0 : index
      %c0_17 = arith.constant 0 : index
      %20 = vector.load %arg1[%c0_15, %19, %c0_16, %c0_17] : memref<1x41x21x128xf32, #tpu.memory_space<vmem>>, vector<1x1x21x128xf32>
      %21 = vector.shape_cast %20 : vector<1x1x21x128xf32> to vector<21x128xf32>
      %c2_i32_18 = arith.constant 2 : i32
      %22 = arith.muli %c2_i32_18, %arg6 : i32
      %c3_i32 = arith.constant 3 : i32
      %23 = arith.addi %22, %c3_i32 : i32
      %c0_19 = arith.constant 0 : index
      %24 = arith.index_cast %23 : i32 to index
      %c0_20 = arith.constant 0 : index
      %c0_21 = arith.constant 0 : index
      %25 = vector.load %arg1[%c0_19, %24, %c0_20, %c0_21] : memref<1x41x21x128xf32, #tpu.memory_space<vmem>>, vector<1x1x21x128xf32>
      %26 = vector.shape_cast %25 : vector<1x1x21x128xf32> to vector<21x128xf32>
      %27 = vector.extract_strided_slice %11 {offsets = [0, 0], sizes = [19, 128], strides = [1, 1]} : vector<21x128xf32> to vector<19x128xf32>
      %28 = vector.extract_strided_slice %16 {offsets = [0, 0], sizes = [19, 128], strides = [1, 1]} : vector<21x128xf32> to vector<19x128xf32>
      %29 = vector.extract_strided_slice %21 {offsets = [0, 0], sizes = [19, 128], strides = [1, 1]} : vector<21x128xf32> to vector<19x128xf32>
      %30 = vector.extract_strided_slice %26 {offsets = [0, 0], sizes = [19, 128], strides = [1, 1]} : vector<21x128xf32> to vector<19x128xf32>
      %31 = vector.extract_strided_slice %11 {offsets = [1, 0], sizes = [19, 128], strides = [1, 1]} : vector<21x128xf32> to vector<19x128xf32>
      %32 = vector.extract_strided_slice %16 {offsets = [1, 0], sizes = [19, 128], strides = [1, 1]} : vector<21x128xf32> to vector<19x128xf32>
      %33 = vector.extract_strided_slice %21 {offsets = [1, 0], sizes = [19, 128], strides = [1, 1]} : vector<21x128xf32> to vector<19x128xf32>
      %34 = vector.extract_strided_slice %26 {offsets = [1, 0], sizes = [19, 128], strides = [1, 1]} : vector<21x128xf32> to vector<19x128xf32>
      %35 = tpu.concatenate %27, %31, %28, %32, %29, %33 in 1 : vector<19x128xf32>, vector<19x128xf32>, vector<19x128xf32>, vector<19x128xf32>, vector<19x128xf32>, vector<19x128xf32> -> vector<19x768xf32>
      %c0_22 = arith.constant 0 : index
      %c0_23 = arith.constant 0 : index
      %36 = vector.load %arg2[%c0_22, %c0_23] : memref<768x128xf32, #tpu.memory_space<vmem>>, vector<768x128xf32>
      %cst = arith.constant dense<0.000000e+00> : vector<19x128xf32>
      %37 = tpu.matmul %35, %36, %cst {dimension_numbers = #tpu.dot_dimension_numbers<[1], [0], [0], [1], [0, 0, 1, 1], [], []>} : vector<19x768xf32>, vector<768x128xf32>, vector<19x128xf32> -> vector<19x128xf32>
      %38 = arith.mulf %37, %2 : vector<19x128xf32>
      %39 = arith.addf %38, %5 : vector<19x128xf32>
      %40 = tpu.concatenate %28, %32, %29, %33, %30, %34 in 1 : vector<19x128xf32>, vector<19x128xf32>, vector<19x128xf32>, vector<19x128xf32>, vector<19x128xf32>, vector<19x128xf32> -> vector<19x768xf32>
      %c0_24 = arith.constant 0 : index
      %c0_25 = arith.constant 0 : index
      %41 = vector.load %arg2[%c0_24, %c0_25] : memref<768x128xf32, #tpu.memory_space<vmem>>, vector<768x128xf32>
      %cst_26 = arith.constant dense<0.000000e+00> : vector<19x128xf32>
      %42 = tpu.matmul %40, %41, %cst_26 {dimension_numbers = #tpu.dot_dimension_numbers<[1], [0], [0], [1], [0, 0, 1, 1], [], []>} : vector<19x768xf32>, vector<768x128xf32>, vector<19x128xf32> -> vector<19x128xf32>
      %43 = arith.mulf %42, %2 : vector<19x128xf32>
      %44 = arith.addf %43, %5 : vector<19x128xf32>
      %45 = arith.maximumf %39, %44 : vector<19x128xf32>
      %cst_27 = arith.constant 0.000000e+00 : f32
      %46 = vector.broadcast %cst_27 : f32 to vector<19x128xf32>
      %47 = arith.maximumf %45, %46 : vector<19x128xf32>
      %48 = vector.extract_strided_slice %47 {offsets = [0, 0], sizes = [19, 64], strides = [1, 1]} : vector<19x128xf32> to vector<19x64xf32>
      %49 = vector.extract_strided_slice %47 {offsets = [0, 64], sizes = [19, 64], strides = [1, 1]} : vector<19x128xf32> to vector<19x64xf32>
      %50 = arith.maximumf %48, %49 : vector<19x64xf32>
      %c0_28 = arith.constant 0 : index
      %51 = arith.index_cast %arg6 : i32 to index
      %c0_29 = arith.constant 0 : index
      %c0_30 = arith.constant 0 : index
      %52 = vector.load %arg5[%c0_28, %51, %c0_29, %c0_30] : memref<1x19x19x64xf32, #tpu.memory_space<vmem>>, vector<1x1x19x64xf32>
      %53 = vector.shape_cast %52 : vector<1x1x19x64xf32> to vector<19x64xf32>
      %54 = vector.shape_cast %50 : vector<19x64xf32> to vector<1x1x19x64xf32>
      tpu.vector_store %arg5[%c0_28, %51, %c0_29, %c0_30], %54 {strides = array<i32>} : memref<1x19x19x64xf32, #tpu.memory_space<vmem>>, vector<1x1x19x64xf32>,
    }
    %c19_i32_3 = arith.constant 19 : i32
    return
  }
  func.func @transform_0(%arg0: i32) -> (i32, i32, i32, i32) {
    %c0_i32 = arith.constant 0 : i32
    %c0_i32_0 = arith.constant 0 : i32
    %c0_i32_1 = arith.constant 0 : i32
    %c0_i32_2 = arith.constant 0 : i32
    return %arg0, %c0_i32, %c0_i32_0, %c0_i32_1 : i32, i32, i32, i32
  }
  func.func @transform_1(%arg0: i32) -> (i32, i32) {
    %c0_i32 = arith.constant 0 : i32
    %c0_i32_0 = arith.constant 0 : i32
    %c0_i32_1 = arith.constant 0 : i32
    return %c0_i32, %c0_i32_0 : i32, i32
  }
  func.func @transform_2(%arg0: i32) -> (i32, i32) {
    %c0_i32 = arith.constant 0 : i32
    %c0_i32_0 = arith.constant 0 : i32
    %c0_i32_1 = arith.constant 0 : i32
    return %c0_i32, %c0_i32_0 : i32, i32
  }
  func.func @transform_3(%arg0: i32) -> (i32, i32) {
    %c0_i32 = arith.constant 0 : i32
    %c0_i32_0 = arith.constant 0 : i32
    %c0_i32_1 = arith.constant 0 : i32
    return %c0_i32, %c0_i32_0 : i32, i32
  }
  func.func @transform_4(%arg0: i32) -> (i32, i32, i32, i32) {
    %c0_i32 = arith.constant 0 : i32
    %c0_i32_0 = arith.constant 0 : i32
    %c0_i32_1 = arith.constant 0 : i32
    %c0_i32_2 = arith.constant 0 : i32
    return %arg0, %c0_i32, %c0_i32_0, %c0_i32_1 : i32, i32, i32, i32
  }
}

module attributes {stable_mosaic.version = 11 : i64} {
  func.func @conv_bn_relu_pool_kernel(%arg0: i32, %arg1: memref<1x21x11x128xf32, #tpu.memory_space<vmem>>, %arg2: memref<768x128xf32, #tpu.memory_space<vmem>>, %arg3: memref<1x128xf32, #tpu.memory_space<vmem>>, %arg4: memref<1x128xf32, #tpu.memory_space<vmem>>, %arg5: memref<1x9x9x64xf32, #tpu.memory_space<vmem>>) attributes {dimension_semantics = [#tpu.dimension_semantics<parallel>], iteration_bounds = array<i64: 2>, scalar_prefetch = 0 : i64, scratch_operands = 0 : i64, tpu.core_type = #tpu.core_type<tc>, window_params = [{transform_indices = @transform_0, window_bounds = array<i64: 1, 21, 11, 128>}, {pipeline_mode = #tpu.pipeline_mode<synchronous>, transform_indices = @transform_1, window_bounds = array<i64: 768, 128>}, {pipeline_mode = #tpu.pipeline_mode<synchronous>, transform_indices = @transform_2, window_bounds = array<i64: 1, 128>}, {pipeline_mode = #tpu.pipeline_mode<synchronous>, transform_indices = @transform_3, window_bounds = array<i64: 1, 128>}, {transform_indices = @transform_4, window_bounds = array<i64: 1, 9, 9, 64>}]} {
    %c0 = arith.constant 0 : index
    %c0_0 = arith.constant 0 : index
    %0 = vector.load %arg3[%c0, %c0_0] : memref<1x128xf32, #tpu.memory_space<vmem>>, vector<1x128xf32>
    %1 = vector.shape_cast %0 : vector<1x128xf32> to vector<1x128xf32>
    %2 = vector.broadcast %1 : vector<1x128xf32> to vector<9x128xf32>
    %c0_1 = arith.constant 0 : index
    %c0_2 = arith.constant 0 : index
    %3 = vector.load %arg4[%c0_1, %c0_2] : memref<1x128xf32, #tpu.memory_space<vmem>>, vector<1x128xf32>
    %4 = vector.shape_cast %3 : vector<1x128xf32> to vector<1x128xf32>
    %5 = vector.broadcast %4 : vector<1x128xf32> to vector<9x128xf32>
    %c0_i32 = arith.constant 0 : i32
    %c9_i32 = arith.constant 9 : i32
    %6 = arith.addi %c0_i32, %c9_i32 : i32
    %c1_i32 = arith.constant 1 : i32
    scf.for %arg6 = %c0_i32 to %6 step %c1_i32  : i32 {
      %c2_i32 = arith.constant 2 : i32
      %7 = arith.muli %c2_i32, %arg6 : i32
      %c0_i32_4 = arith.constant 0 : i32
      %8 = arith.addi %7, %c0_i32_4 : i32
      %c0_5 = arith.constant 0 : index
      %9 = arith.index_cast %8 : i32 to index
      %c0_6 = arith.constant 0 : index
      %c0_7 = arith.constant 0 : index
      %10 = vector.load %arg1[%c0_5, %9, %c0_6, %c0_7] : memref<1x21x11x128xf32, #tpu.memory_space<vmem>>, vector<1x1x11x128xf32>
      %11 = vector.shape_cast %10 : vector<1x1x11x128xf32> to vector<11x128xf32>
      %c2_i32_8 = arith.constant 2 : i32
      %12 = arith.muli %c2_i32_8, %arg6 : i32
      %c1_i32_9 = arith.constant 1 : i32
      %13 = arith.addi %12, %c1_i32_9 : i32
      %c0_10 = arith.constant 0 : index
      %14 = arith.index_cast %13 : i32 to index
      %c0_11 = arith.constant 0 : index
      %c0_12 = arith.constant 0 : index
      %15 = vector.load %arg1[%c0_10, %14, %c0_11, %c0_12] : memref<1x21x11x128xf32, #tpu.memory_space<vmem>>, vector<1x1x11x128xf32>
      %16 = vector.shape_cast %15 : vector<1x1x11x128xf32> to vector<11x128xf32>
      %c2_i32_13 = arith.constant 2 : i32
      %17 = arith.muli %c2_i32_13, %arg6 : i32
      %c2_i32_14 = arith.constant 2 : i32
      %18 = arith.addi %17, %c2_i32_14 : i32
      %c0_15 = arith.constant 0 : index
      %19 = arith.index_cast %18 : i32 to index
      %c0_16 = arith.constant 0 : index
      %c0_17 = arith.constant 0 : index
      %20 = vector.load %arg1[%c0_15, %19, %c0_16, %c0_17] : memref<1x21x11x128xf32, #tpu.memory_space<vmem>>, vector<1x1x11x128xf32>
      %21 = vector.shape_cast %20 : vector<1x1x11x128xf32> to vector<11x128xf32>
      %c2_i32_18 = arith.constant 2 : i32
      %22 = arith.muli %c2_i32_18, %arg6 : i32
      %c3_i32 = arith.constant 3 : i32
      %23 = arith.addi %22, %c3_i32 : i32
      %c0_19 = arith.constant 0 : index
      %24 = arith.index_cast %23 : i32 to index
      %c0_20 = arith.constant 0 : index
      %c0_21 = arith.constant 0 : index
      %25 = vector.load %arg1[%c0_19, %24, %c0_20, %c0_21] : memref<1x21x11x128xf32, #tpu.memory_space<vmem>>, vector<1x1x11x128xf32>
      %26 = vector.shape_cast %25 : vector<1x1x11x128xf32> to vector<11x128xf32>
      %27 = vector.extract_strided_slice %11 {offsets = [0, 0], sizes = [9, 128], strides = [1, 1]} : vector<11x128xf32> to vector<9x128xf32>
      %28 = vector.extract_strided_slice %16 {offsets = [0, 0], sizes = [9, 128], strides = [1, 1]} : vector<11x128xf32> to vector<9x128xf32>
      %29 = vector.extract_strided_slice %21 {offsets = [0, 0], sizes = [9, 128], strides = [1, 1]} : vector<11x128xf32> to vector<9x128xf32>
      %30 = vector.extract_strided_slice %26 {offsets = [0, 0], sizes = [9, 128], strides = [1, 1]} : vector<11x128xf32> to vector<9x128xf32>
      %31 = vector.extract_strided_slice %11 {offsets = [1, 0], sizes = [9, 128], strides = [1, 1]} : vector<11x128xf32> to vector<9x128xf32>
      %32 = vector.extract_strided_slice %16 {offsets = [1, 0], sizes = [9, 128], strides = [1, 1]} : vector<11x128xf32> to vector<9x128xf32>
      %33 = vector.extract_strided_slice %21 {offsets = [1, 0], sizes = [9, 128], strides = [1, 1]} : vector<11x128xf32> to vector<9x128xf32>
      %34 = vector.extract_strided_slice %26 {offsets = [1, 0], sizes = [9, 128], strides = [1, 1]} : vector<11x128xf32> to vector<9x128xf32>
      %35 = tpu.concatenate %27, %31, %28, %32, %29, %33 in 1 : vector<9x128xf32>, vector<9x128xf32>, vector<9x128xf32>, vector<9x128xf32>, vector<9x128xf32>, vector<9x128xf32> -> vector<9x768xf32>
      %c0_22 = arith.constant 0 : index
      %c0_23 = arith.constant 0 : index
      %36 = vector.load %arg2[%c0_22, %c0_23] : memref<768x128xf32, #tpu.memory_space<vmem>>, vector<768x128xf32>
      %cst = arith.constant dense<0.000000e+00> : vector<9x128xf32>
      %37 = tpu.matmul %35, %36, %cst {dimension_numbers = #tpu.dot_dimension_numbers<[1], [0], [0], [1], [0, 0, 1, 1], [], []>} : vector<9x768xf32>, vector<768x128xf32>, vector<9x128xf32> -> vector<9x128xf32>
      %38 = arith.mulf %37, %2 : vector<9x128xf32>
      %39 = arith.addf %38, %5 : vector<9x128xf32>
      %40 = tpu.concatenate %28, %32, %29, %33, %30, %34 in 1 : vector<9x128xf32>, vector<9x128xf32>, vector<9x128xf32>, vector<9x128xf32>, vector<9x128xf32>, vector<9x128xf32> -> vector<9x768xf32>
      %c0_24 = arith.constant 0 : index
      %c0_25 = arith.constant 0 : index
      %41 = vector.load %arg2[%c0_24, %c0_25] : memref<768x128xf32, #tpu.memory_space<vmem>>, vector<768x128xf32>
      %cst_26 = arith.constant dense<0.000000e+00> : vector<9x128xf32>
      %42 = tpu.matmul %40, %41, %cst_26 {dimension_numbers = #tpu.dot_dimension_numbers<[1], [0], [0], [1], [0, 0, 1, 1], [], []>} : vector<9x768xf32>, vector<768x128xf32>, vector<9x128xf32> -> vector<9x128xf32>
      %43 = arith.mulf %42, %2 : vector<9x128xf32>
      %44 = arith.addf %43, %5 : vector<9x128xf32>
      %45 = arith.maximumf %39, %44 : vector<9x128xf32>
      %cst_27 = arith.constant 0.000000e+00 : f32
      %46 = vector.broadcast %cst_27 : f32 to vector<9x128xf32>
      %47 = arith.maximumf %45, %46 : vector<9x128xf32>
      %48 = vector.extract_strided_slice %47 {offsets = [0, 0], sizes = [9, 64], strides = [1, 1]} : vector<9x128xf32> to vector<9x64xf32>
      %49 = vector.extract_strided_slice %47 {offsets = [0, 64], sizes = [9, 64], strides = [1, 1]} : vector<9x128xf32> to vector<9x64xf32>
      %50 = arith.maximumf %48, %49 : vector<9x64xf32>
      %c0_28 = arith.constant 0 : index
      %51 = arith.index_cast %arg6 : i32 to index
      %c0_29 = arith.constant 0 : index
      %c0_30 = arith.constant 0 : index
      %52 = vector.load %arg5[%c0_28, %51, %c0_29, %c0_30] : memref<1x9x9x64xf32, #tpu.memory_space<vmem>>, vector<1x1x9x64xf32>
      %53 = vector.shape_cast %52 : vector<1x1x9x64xf32> to vector<9x64xf32>
      %54 = vector.shape_cast %50 : vector<9x64xf32> to vector<1x1x9x64xf32>
      tpu.vector_store %arg5[%c0_28, %51, %c0_29, %c0_30], %54 {strides = array<i32>} : memref<1x9x9x64xf32, #tpu.memory_space<vmem>>, vector<1x1x9x64xf32>,
    }
    %c9_i32_3 = arith.constant 9 : i32
    return
  }
  func.func @transform_0(%arg0: i32) -> (i32, i32, i32, i32) {
    %c0_i32 = arith.constant 0 : i32
    %c0_i32_0 = arith.constant 0 : i32
    %c0_i32_1 = arith.constant 0 : i32
    %c0_i32_2 = arith.constant 0 : i32
    return %arg0, %c0_i32, %c0_i32_0, %c0_i32_1 : i32, i32, i32, i32
  }
  func.func @transform_1(%arg0: i32) -> (i32, i32) {
    %c0_i32 = arith.constant 0 : i32
    %c0_i32_0 = arith.constant 0 : i32
    %c0_i32_1 = arith.constant 0 : i32
    return %c0_i32, %c0_i32_0 : i32, i32
  }
  func.func @transform_2(%arg0: i32) -> (i32, i32) {
    %c0_i32 = arith.constant 0 : i32
    %c0_i32_0 = arith.constant 0 : i32
    %c0_i32_1 = arith.constant 0 : i32
    return %c0_i32, %c0_i32_0 : i32, i32
  }
  func.func @transform_3(%arg0: i32) -> (i32, i32) {
    %c0_i32 = arith.constant 0 : i32
    %c0_i32_0 = arith.constant 0 : i32
    %c0_i32_1 = arith.constant 0 : i32
    return %c0_i32, %c0_i32_0 : i32, i32
  }
  func.func @transform_4(%arg0: i32) -> (i32, i32, i32, i32) {
    %c0_i32 = arith.constant 0 : i32
    %c0_i32_0 = arith.constant 0 : i32
    %c0_i32_1 = arith.constant 0 : i32
    %c0_i32_2 = arith.constant 0 : i32
    return %arg0, %c0_i32, %c0_i32_0, %c0_i32_1 : i32, i32, i32, i32
  }
}

module attributes {stable_mosaic.version = 11 : i64} {
  func.func @conv_bn_relu_pool_fc_kernel(%arg0: i32, %arg1: memref<1x11x6x128xf32, #tpu.memory_space<vmem>>, %arg2: memref<768x128xf32, #tpu.memory_space<vmem>>, %arg3: memref<1x128xf32, #tpu.memory_space<vmem>>, %arg4: memref<1x128xf32, #tpu.memory_space<vmem>>, %arg5: memref<4x4x64xf32, #tpu.memory_space<vmem>>, %arg6: memref<1x1xf32, #tpu.memory_space<vmem>>, %arg7: memref<1x1x1xf32, #tpu.memory_space<vmem>>) attributes {dimension_semantics = [#tpu.dimension_semantics<parallel>], iteration_bounds = array<i64: 2>, scalar_prefetch = 0 : i64, scratch_operands = 0 : i64, tpu.core_type = #tpu.core_type<tc>, window_params = [{transform_indices = @transform_0, window_bounds = array<i64: 1, 11, 6, 128>}, {pipeline_mode = #tpu.pipeline_mode<synchronous>, transform_indices = @transform_1, window_bounds = array<i64: 768, 128>}, {pipeline_mode = #tpu.pipeline_mode<synchronous>, transform_indices = @transform_2, window_bounds = array<i64: 1, 128>}, {pipeline_mode = #tpu.pipeline_mode<synchronous>, transform_indices = @transform_3, window_bounds = array<i64: 1, 128>}, {pipeline_mode = #tpu.pipeline_mode<synchronous>, transform_indices = @transform_4, window_bounds = array<i64: 4, 4, 64>}, {pipeline_mode = #tpu.pipeline_mode<synchronous>, transform_indices = @transform_5, window_bounds = array<i64: 1, 1>}, {transform_indices = @transform_6, window_bounds = array<i64: 1, 1, 1>}]} {
    %c0 = arith.constant 0 : index
    %c0_0 = arith.constant 0 : index
    %0 = vector.load %arg3[%c0, %c0_0] : memref<1x128xf32, #tpu.memory_space<vmem>>, vector<1x128xf32>
    %1 = vector.shape_cast %0 : vector<1x128xf32> to vector<1x128xf32>
    %2 = vector.broadcast %1 : vector<1x128xf32> to vector<4x128xf32>
    %c0_1 = arith.constant 0 : index
    %c0_2 = arith.constant 0 : index
    %3 = vector.load %arg4[%c0_1, %c0_2] : memref<1x128xf32, #tpu.memory_space<vmem>>, vector<1x128xf32>
    %4 = vector.shape_cast %3 : vector<1x128xf32> to vector<1x128xf32>
    %5 = vector.broadcast %4 : vector<1x128xf32> to vector<4x128xf32>
    %c0_3 = arith.constant 0 : index
    %c0_4 = arith.constant 0 : index
    %c0_5 = arith.constant 0 : index
    %c0_6 = arith.constant 0 : index
    %6 = vector.load %arg1[%c0_3, %c0_4, %c0_5, %c0_6] : memref<1x11x6x128xf32, #tpu.memory_space<vmem>>, vector<1x1x6x128xf32>
    %7 = vector.shape_cast %6 : vector<1x1x6x128xf32> to vector<6x128xf32>
    %c0_7 = arith.constant 0 : index
    %c1 = arith.constant 1 : index
    %c0_8 = arith.constant 0 : index
    %c0_9 = arith.constant 0 : index
    %8 = vector.load %arg1[%c0_7, %c1, %c0_8, %c0_9] : memref<1x11x6x128xf32, #tpu.memory_space<vmem>>, vector<1x1x6x128xf32>
    %9 = vector.shape_cast %8 : vector<1x1x6x128xf32> to vector<6x128xf32>
    %c0_10 = arith.constant 0 : index
    %c2 = arith.constant 2 : index
    %c0_11 = arith.constant 0 : index
    %c0_12 = arith.constant 0 : index
    %10 = vector.load %arg1[%c0_10, %c2, %c0_11, %c0_12] : memref<1x11x6x128xf32, #tpu.memory_space<vmem>>, vector<1x1x6x128xf32>
    %11 = vector.shape_cast %10 : vector<1x1x6x128xf32> to vector<6x128xf32>
    %c0_13 = arith.constant 0 : index
    %c3 = arith.constant 3 : index
    %c0_14 = arith.constant 0 : index
    %c0_15 = arith.constant 0 : index
    %12 = vector.load %arg1[%c0_13, %c3, %c0_14, %c0_15] : memref<1x11x6x128xf32, #tpu.memory_space<vmem>>, vector<1x1x6x128xf32>
    %13 = vector.shape_cast %12 : vector<1x1x6x128xf32> to vector<6x128xf32>
    %14 = vector.extract_strided_slice %7 {offsets = [0, 0], sizes = [4, 128], strides = [1, 1]} : vector<6x128xf32> to vector<4x128xf32>
    %15 = vector.extract_strided_slice %9 {offsets = [0, 0], sizes = [4, 128], strides = [1, 1]} : vector<6x128xf32> to vector<4x128xf32>
    %16 = vector.extract_strided_slice %11 {offsets = [0, 0], sizes = [4, 128], strides = [1, 1]} : vector<6x128xf32> to vector<4x128xf32>
    %17 = vector.extract_strided_slice %13 {offsets = [0, 0], sizes = [4, 128], strides = [1, 1]} : vector<6x128xf32> to vector<4x128xf32>
    %18 = vector.extract_strided_slice %7 {offsets = [1, 0], sizes = [4, 128], strides = [1, 1]} : vector<6x128xf32> to vector<4x128xf32>
    %19 = vector.extract_strided_slice %9 {offsets = [1, 0], sizes = [4, 128], strides = [1, 1]} : vector<6x128xf32> to vector<4x128xf32>
    %20 = vector.extract_strided_slice %11 {offsets = [1, 0], sizes = [4, 128], strides = [1, 1]} : vector<6x128xf32> to vector<4x128xf32>
    %21 = vector.extract_strided_slice %13 {offsets = [1, 0], sizes = [4, 128], strides = [1, 1]} : vector<6x128xf32> to vector<4x128xf32>
    %22 = tpu.concatenate %14, %18, %15, %19, %16, %20 in 1 : vector<4x128xf32>, vector<4x128xf32>, vector<4x128xf32>, vector<4x128xf32>, vector<4x128xf32>, vector<4x128xf32> -> vector<4x768xf32>
    %c0_16 = arith.constant 0 : index
    %c0_17 = arith.constant 0 : index
    %23 = vector.load %arg2[%c0_16, %c0_17] : memref<768x128xf32, #tpu.memory_space<vmem>>, vector<768x128xf32>
    %cst = arith.constant dense<0.000000e+00> : vector<4x128xf32>
    %24 = tpu.matmul %22, %23, %cst {dimension_numbers = #tpu.dot_dimension_numbers<[1], [0], [0], [1], [0, 0, 1, 1], [], []>} : vector<4x768xf32>, vector<768x128xf32>, vector<4x128xf32> -> vector<4x128xf32>
    %25 = arith.mulf %24, %2 : vector<4x128xf32>
    %26 = arith.addf %25, %5 : vector<4x128xf32>
    %27 = tpu.concatenate %15, %19, %16, %20, %17, %21 in 1 : vector<4x128xf32>, vector<4x128xf32>, vector<4x128xf32>, vector<4x128xf32>, vector<4x128xf32>, vector<4x128xf32> -> vector<4x768xf32>
    %c0_18 = arith.constant 0 : index
    %c0_19 = arith.constant 0 : index
    %28 = vector.load %arg2[%c0_18, %c0_19] : memref<768x128xf32, #tpu.memory_space<vmem>>, vector<768x128xf32>
    %cst_20 = arith.constant dense<0.000000e+00> : vector<4x128xf32>
    %29 = tpu.matmul %27, %28, %cst_20 {dimension_numbers = #tpu.dot_dimension_numbers<[1], [0], [0], [1], [0, 0, 1, 1], [], []>} : vector<4x768xf32>, vector<768x128xf32>, vector<4x128xf32> -> vector<4x128xf32>
    %30 = arith.mulf %29, %2 : vector<4x128xf32>
    %31 = arith.addf %30, %5 : vector<4x128xf32>
    %32 = arith.maximumf %26, %31 : vector<4x128xf32>
    %cst_21 = arith.constant 0.000000e+00 : f32
    %33 = vector.broadcast %cst_21 : f32 to vector<4x128xf32>
    %34 = arith.maximumf %32, %33 : vector<4x128xf32>
    %35 = vector.extract_strided_slice %34 {offsets = [0, 0], sizes = [4, 64], strides = [1, 1]} : vector<4x128xf32> to vector<4x64xf32>
    %36 = vector.extract_strided_slice %34 {offsets = [0, 64], sizes = [4, 64], strides = [1, 1]} : vector<4x128xf32> to vector<4x64xf32>
    %37 = arith.maximumf %35, %36 : vector<4x64xf32>
    %c0_22 = arith.constant 0 : index
    %c0_23 = arith.constant 0 : index
    %c0_24 = arith.constant 0 : index
    %38 = vector.load %arg5[%c0_22, %c0_23, %c0_24] : memref<4x4x64xf32, #tpu.memory_space<vmem>>, vector<1x4x64xf32>
    %39 = vector.shape_cast %38 : vector<1x4x64xf32> to vector<4x64xf32>
    %40 = arith.mulf %37, %39 : vector<4x64xf32>
    %41 = vector.shape_cast %40 : vector<4x64xf32> to vector<1x4x64xf32>
    %cst_25 = arith.constant dense<0.000000e+00> : vector<1xf32>
    %42 = vector.multi_reduction <add>, %41, %cst_25 [1, 2] : vector<1x4x64xf32> to vector<1xf32>
    %43 = vector.shape_cast %42 : vector<1xf32> to vector<1x1x1xf32>
    %44 = vector.extract %43[0, 0, 0] : f32 from vector<1x1x1xf32>
    %cst_26 = arith.constant 0.000000e+00 : f32
    %45 = arith.addf %cst_26, %44 : f32
    %c0_27 = arith.constant 0 : index
    %c2_28 = arith.constant 2 : index
    %c0_29 = arith.constant 0 : index
    %c0_30 = arith.constant 0 : index
    %46 = vector.load %arg1[%c0_27, %c2_28, %c0_29, %c0_30] : memref<1x11x6x128xf32, #tpu.memory_space<vmem>>, vector<1x1x6x128xf32>
    %47 = vector.shape_cast %46 : vector<1x1x6x128xf32> to vector<6x128xf32>
    %c0_31 = arith.constant 0 : index
    %c3_32 = arith.constant 3 : index
    %c0_33 = arith.constant 0 : index
    %c0_34 = arith.constant 0 : index
    %48 = vector.load %arg1[%c0_31, %c3_32, %c0_33, %c0_34] : memref<1x11x6x128xf32, #tpu.memory_space<vmem>>, vector<1x1x6x128xf32>
    %49 = vector.shape_cast %48 : vector<1x1x6x128xf32> to vector<6x128xf32>
    %c0_35 = arith.constant 0 : index
    %c4 = arith.constant 4 : index
    %c0_36 = arith.constant 0 : index
    %c0_37 = arith.constant 0 : index
    %50 = vector.load %arg1[%c0_35, %c4, %c0_36, %c0_37] : memref<1x11x6x128xf32, #tpu.memory_space<vmem>>, vector<1x1x6x128xf32>
    %51 = vector.shape_cast %50 : vector<1x1x6x128xf32> to vector<6x128xf32>
    %c0_38 = arith.constant 0 : index
    %c5 = arith.constant 5 : index
    %c0_39 = arith.constant 0 : index
    %c0_40 = arith.constant 0 : index
    %52 = vector.load %arg1[%c0_38, %c5, %c0_39, %c0_40] : memref<1x11x6x128xf32, #tpu.memory_space<vmem>>, vector<1x1x6x128xf32>
    %53 = vector.shape_cast %52 : vector<1x1x6x128xf32> to vector<6x128xf32>
    %54 = vector.extract_strided_slice %47 {offsets = [0, 0], sizes = [4, 128], strides = [1, 1]} : vector<6x128xf32> to vector<4x128xf32>
    %55 = vector.extract_strided_slice %49 {offsets = [0, 0], sizes = [4, 128], strides = [1, 1]} : vector<6x128xf32> to vector<4x128xf32>
    %56 = vector.extract_strided_slice %51 {offsets = [0, 0], sizes = [4, 128], strides = [1, 1]} : vector<6x128xf32> to vector<4x128xf32>
    %57 = vector.extract_strided_slice %53 {offsets = [0, 0], sizes = [4, 128], strides = [1, 1]} : vector<6x128xf32> to vector<4x128xf32>
    %58 = vector.extract_strided_slice %47 {offsets = [1, 0], sizes = [4, 128], strides = [1, 1]} : vector<6x128xf32> to vector<4x128xf32>
    %59 = vector.extract_strided_slice %49 {offsets = [1, 0], sizes = [4, 128], strides = [1, 1]} : vector<6x128xf32> to vector<4x128xf32>
    %60 = vector.extract_strided_slice %51 {offsets = [1, 0], sizes = [4, 128], strides = [1, 1]} : vector<6x128xf32> to vector<4x128xf32>
    %61 = vector.extract_strided_slice %53 {offsets = [1, 0], sizes = [4, 128], strides = [1, 1]} : vector<6x128xf32> to vector<4x128xf32>
    %62 = tpu.concatenate %54, %58, %55, %59, %56, %60 in 1 : vector<4x128xf32>, vector<4x128xf32>, vector<4x128xf32>, vector<4x128xf32>, vector<4x128xf32>, vector<4x128xf32> -> vector<4x768xf32>
    %c0_41 = arith.constant 0 : index
    %c0_42 = arith.constant 0 : index
    %63 = vector.load %arg2[%c0_41, %c0_42] : memref<768x128xf32, #tpu.memory_space<vmem>>, vector<768x128xf32>
    %cst_43 = arith.constant dense<0.000000e+00> : vector<4x128xf32>
    %64 = tpu.matmul %62, %63, %cst_43 {dimension_numbers = #tpu.dot_dimension_numbers<[1], [0], [0], [1], [0, 0, 1, 1], [], []>} : vector<4x768xf32>, vector<768x128xf32>, vector<4x128xf32> -> vector<4x128xf32>
    %65 = arith.mulf %64, %2 : vector<4x128xf32>
    %66 = arith.addf %65, %5 : vector<4x128xf32>
    %67 = tpu.concatenate %55, %59, %56, %60, %57, %61 in 1 : vector<4x128xf32>, vector<4x128xf32>, vector<4x128xf32>, vector<4x128xf32>, vector<4x128xf32>, vector<4x128xf32> -> vector<4x768xf32>
    %c0_44 = arith.constant 0 : index
    %c0_45 = arith.constant 0 : index
    %68 = vector.load %arg2[%c0_44, %c0_45] : memref<768x128xf32, #tpu.memory_space<vmem>>, vector<768x128xf32>
    %cst_46 = arith.constant dense<0.000000e+00> : vector<4x128xf32>
    %69 = tpu.matmul %67, %68, %cst_46 {dimension_numbers = #tpu.dot_dimension_numbers<[1], [0], [0], [1], [0, 0, 1, 1], [], []>} : vector<4x768xf32>, vector<768x128xf32>, vector<4x128xf32> -> vector<4x128xf32>
    %70 = arith.mulf %69, %2 : vector<4x128xf32>
    %71 = arith.addf %70, %5 : vector<4x128xf32>
    %72 = arith.maximumf %66, %71 : vector<4x128xf32>
    %cst_47 = arith.constant 0.000000e+00 : f32
    %73 = vector.broadcast %cst_47 : f32 to vector<4x128xf32>
    %74 = arith.maximumf %72, %73 : vector<4x128xf32>
    %75 = vector.extract_strided_slice %74 {offsets = [0, 0], sizes = [4, 64], strides = [1, 1]} : vector<4x128xf32> to vector<4x64xf32>
    %76 = vector.extract_strided_slice %74 {offsets = [0, 64], sizes = [4, 64], strides = [1, 1]} : vector<4x128xf32> to vector<4x64xf32>
    %77 = arith.maximumf %75, %76 : vector<4x64xf32>
    %c1_48 = arith.constant 1 : index
    %c0_49 = arith.constant 0 : index
    %c0_50 = arith.constant 0 : index
    %78 = vector.load %arg5[%c1_48, %c0_49, %c0_50] : memref<4x4x64xf32, #tpu.memory_space<vmem>>, vector<1x4x64xf32>
    %79 = vector.shape_cast %78 : vector<1x4x64xf32> to vector<4x64xf32>
    %80 = arith.mulf %77, %79 : vector<4x64xf32>
    %81 = vector.shape_cast %80 : vector<4x64xf32> to vector<1x4x64xf32>
    %cst_51 = arith.constant dense<0.000000e+00> : vector<1xf32>
    %82 = vector.multi_reduction <add>, %81, %cst_51 [1, 2] : vector<1x4x64xf32> to vector<1xf32>
    %83 = vector.shape_cast %82 : vector<1xf32> to vector<1x1x1xf32>
    %84 = vector.extract %83[0, 0, 0] : f32 from vector<1x1x1xf32>
    %85 = arith.addf %45, %84 : f32
    %c0_52 = arith.constant 0 : index
    %c4_53 = arith.constant 4 : index
    %c0_54 = arith.constant 0 : index
    %c0_55 = arith.constant 0 : index
    %86 = vector.load %arg1[%c0_52, %c4_53, %c0_54, %c0_55] : memref<1x11x6x128xf32, #tpu.memory_space<vmem>>, vector<1x1x6x128xf32>
    %87 = vector.shape_cast %86 : vector<1x1x6x128xf32> to vector<6x128xf32>
    %c0_56 = arith.constant 0 : index
    %c5_57 = arith.constant 5 : index
    %c0_58 = arith.constant 0 : index
    %c0_59 = arith.constant 0 : index
    %88 = vector.load %arg1[%c0_56, %c5_57, %c0_58, %c0_59] : memref<1x11x6x128xf32, #tpu.memory_space<vmem>>, vector<1x1x6x128xf32>
    %89 = vector.shape_cast %88 : vector<1x1x6x128xf32> to vector<6x128xf32>
    %c0_60 = arith.constant 0 : index
    %c6 = arith.constant 6 : index
    %c0_61 = arith.constant 0 : index
    %c0_62 = arith.constant 0 : index
    %90 = vector.load %arg1[%c0_60, %c6, %c0_61, %c0_62] : memref<1x11x6x128xf32, #tpu.memory_space<vmem>>, vector<1x1x6x128xf32>
    %91 = vector.shape_cast %90 : vector<1x1x6x128xf32> to vector<6x128xf32>
    %c0_63 = arith.constant 0 : index
    %c7 = arith.constant 7 : index
    %c0_64 = arith.constant 0 : index
    %c0_65 = arith.constant 0 : index
    %92 = vector.load %arg1[%c0_63, %c7, %c0_64, %c0_65] : memref<1x11x6x128xf32, #tpu.memory_space<vmem>>, vector<1x1x6x128xf32>
    %93 = vector.shape_cast %92 : vector<1x1x6x128xf32> to vector<6x128xf32>
    %94 = vector.extract_strided_slice %87 {offsets = [0, 0], sizes = [4, 128], strides = [1, 1]} : vector<6x128xf32> to vector<4x128xf32>
    %95 = vector.extract_strided_slice %89 {offsets = [0, 0], sizes = [4, 128], strides = [1, 1]} : vector<6x128xf32> to vector<4x128xf32>
    %96 = vector.extract_strided_slice %91 {offsets = [0, 0], sizes = [4, 128], strides = [1, 1]} : vector<6x128xf32> to vector<4x128xf32>
    %97 = vector.extract_strided_slice %93 {offsets = [0, 0], sizes = [4, 128], strides = [1, 1]} : vector<6x128xf32> to vector<4x128xf32>
    %98 = vector.extract_strided_slice %87 {offsets = [1, 0], sizes = [4, 128], strides = [1, 1]} : vector<6x128xf32> to vector<4x128xf32>
    %99 = vector.extract_strided_slice %89 {offsets = [1, 0], sizes = [4, 128], strides = [1, 1]} : vector<6x128xf32> to vector<4x128xf32>
    %100 = vector.extract_strided_slice %91 {offsets = [1, 0], sizes = [4, 128], strides = [1, 1]} : vector<6x128xf32> to vector<4x128xf32>
    %101 = vector.extract_strided_slice %93 {offsets = [1, 0], sizes = [4, 128], strides = [1, 1]} : vector<6x128xf32> to vector<4x128xf32>
    %102 = tpu.concatenate %94, %98, %95, %99, %96, %100 in 1 : vector<4x128xf32>, vector<4x128xf32>, vector<4x128xf32>, vector<4x128xf32>, vector<4x128xf32>, vector<4x128xf32> -> vector<4x768xf32>
    %c0_66 = arith.constant 0 : index
    %c0_67 = arith.constant 0 : index
    %103 = vector.load %arg2[%c0_66, %c0_67] : memref<768x128xf32, #tpu.memory_space<vmem>>, vector<768x128xf32>
    %cst_68 = arith.constant dense<0.000000e+00> : vector<4x128xf32>
    %104 = tpu.matmul %102, %103, %cst_68 {dimension_numbers = #tpu.dot_dimension_numbers<[1], [0], [0], [1], [0, 0, 1, 1], [], []>} : vector<4x768xf32>, vector<768x128xf32>, vector<4x128xf32> -> vector<4x128xf32>
    %105 = arith.mulf %104, %2 : vector<4x128xf32>
    %106 = arith.addf %105, %5 : vector<4x128xf32>
    %107 = tpu.concatenate %95, %99, %96, %100, %97, %101 in 1 : vector<4x128xf32>, vector<4x128xf32>, vector<4x128xf32>, vector<4x128xf32>, vector<4x128xf32>, vector<4x128xf32> -> vector<4x768xf32>
    %c0_69 = arith.constant 0 : index
    %c0_70 = arith.constant 0 : index
    %108 = vector.load %arg2[%c0_69, %c0_70] : memref<768x128xf32, #tpu.memory_space<vmem>>, vector<768x128xf32>
    %cst_71 = arith.constant dense<0.000000e+00> : vector<4x128xf32>
    %109 = tpu.matmul %107, %108, %cst_71 {dimension_numbers = #tpu.dot_dimension_numbers<[1], [0], [0], [1], [0, 0, 1, 1], [], []>} : vector<4x768xf32>, vector<768x128xf32>, vector<4x128xf32> -> vector<4x128xf32>
    %110 = arith.mulf %109, %2 : vector<4x128xf32>
    %111 = arith.addf %110, %5 : vector<4x128xf32>
    %112 = arith.maximumf %106, %111 : vector<4x128xf32>
    %cst_72 = arith.constant 0.000000e+00 : f32
    %113 = vector.broadcast %cst_72 : f32 to vector<4x128xf32>
    %114 = arith.maximumf %112, %113 : vector<4x128xf32>
    %115 = vector.extract_strided_slice %114 {offsets = [0, 0], sizes = [4, 64], strides = [1, 1]} : vector<4x128xf32> to vector<4x64xf32>
    %116 = vector.extract_strided_slice %114 {offsets = [0, 64], sizes = [4, 64], strides = [1, 1]} : vector<4x128xf32> to vector<4x64xf32>
    %117 = arith.maximumf %115, %116 : vector<4x64xf32>
    %c2_73 = arith.constant 2 : index
    %c0_74 = arith.constant 0 : index
    %c0_75 = arith.constant 0 : index
    %118 = vector.load %arg5[%c2_73, %c0_74, %c0_75] : memref<4x4x64xf32, #tpu.memory_space<vmem>>, vector<1x4x64xf32>
    %119 = vector.shape_cast %118 : vector<1x4x64xf32> to vector<4x64xf32>
    %120 = arith.mulf %117, %119 : vector<4x64xf32>
    %121 = vector.shape_cast %120 : vector<4x64xf32> to vector<1x4x64xf32>
    %cst_76 = arith.constant dense<0.000000e+00> : vector<1xf32>
    %122 = vector.multi_reduction <add>, %121, %cst_76 [1, 2] : vector<1x4x64xf32> to vector<1xf32>
    %123 = vector.shape_cast %122 : vector<1xf32> to vector<1x1x1xf32>
    %124 = vector.extract %123[0, 0, 0] : f32 from vector<1x1x1xf32>
    %125 = arith.addf %85, %124 : f32
    %c0_77 = arith.constant 0 : index
    %c6_78 = arith.constant 6 : index
    %c0_79 = arith.constant 0 : index
    %c0_80 = arith.constant 0 : index
    %126 = vector.load %arg1[%c0_77, %c6_78, %c0_79, %c0_80] : memref<1x11x6x128xf32, #tpu.memory_space<vmem>>, vector<1x1x6x128xf32>
    %127 = vector.shape_cast %126 : vector<1x1x6x128xf32> to vector<6x128xf32>
    %c0_81 = arith.constant 0 : index
    %c7_82 = arith.constant 7 : index
    %c0_83 = arith.constant 0 : index
    %c0_84 = arith.constant 0 : index
    %128 = vector.load %arg1[%c0_81, %c7_82, %c0_83, %c0_84] : memref<1x11x6x128xf32, #tpu.memory_space<vmem>>, vector<1x1x6x128xf32>
    %129 = vector.shape_cast %128 : vector<1x1x6x128xf32> to vector<6x128xf32>
    %c0_85 = arith.constant 0 : index
    %c8 = arith.constant 8 : index
    %c0_86 = arith.constant 0 : index
    %c0_87 = arith.constant 0 : index
    %130 = vector.load %arg1[%c0_85, %c8, %c0_86, %c0_87] : memref<1x11x6x128xf32, #tpu.memory_space<vmem>>, vector<1x1x6x128xf32>
    %131 = vector.shape_cast %130 : vector<1x1x6x128xf32> to vector<6x128xf32>
    %c0_88 = arith.constant 0 : index
    %c9 = arith.constant 9 : index
    %c0_89 = arith.constant 0 : index
    %c0_90 = arith.constant 0 : index
    %132 = vector.load %arg1[%c0_88, %c9, %c0_89, %c0_90] : memref<1x11x6x128xf32, #tpu.memory_space<vmem>>, vector<1x1x6x128xf32>
    %133 = vector.shape_cast %132 : vector<1x1x6x128xf32> to vector<6x128xf32>
    %134 = vector.extract_strided_slice %127 {offsets = [0, 0], sizes = [4, 128], strides = [1, 1]} : vector<6x128xf32> to vector<4x128xf32>
    %135 = vector.extract_strided_slice %129 {offsets = [0, 0], sizes = [4, 128], strides = [1, 1]} : vector<6x128xf32> to vector<4x128xf32>
    %136 = vector.extract_strided_slice %131 {offsets = [0, 0], sizes = [4, 128], strides = [1, 1]} : vector<6x128xf32> to vector<4x128xf32>
    %137 = vector.extract_strided_slice %133 {offsets = [0, 0], sizes = [4, 128], strides = [1, 1]} : vector<6x128xf32> to vector<4x128xf32>
    %138 = vector.extract_strided_slice %127 {offsets = [1, 0], sizes = [4, 128], strides = [1, 1]} : vector<6x128xf32> to vector<4x128xf32>
    %139 = vector.extract_strided_slice %129 {offsets = [1, 0], sizes = [4, 128], strides = [1, 1]} : vector<6x128xf32> to vector<4x128xf32>
    %140 = vector.extract_strided_slice %131 {offsets = [1, 0], sizes = [4, 128], strides = [1, 1]} : vector<6x128xf32> to vector<4x128xf32>
    %141 = vector.extract_strided_slice %133 {offsets = [1, 0], sizes = [4, 128], strides = [1, 1]} : vector<6x128xf32> to vector<4x128xf32>
    %142 = tpu.concatenate %134, %138, %135, %139, %136, %140 in 1 : vector<4x128xf32>, vector<4x128xf32>, vector<4x128xf32>, vector<4x128xf32>, vector<4x128xf32>, vector<4x128xf32> -> vector<4x768xf32>
    %c0_91 = arith.constant 0 : index
    %c0_92 = arith.constant 0 : index
    %143 = vector.load %arg2[%c0_91, %c0_92] : memref<768x128xf32, #tpu.memory_space<vmem>>, vector<768x128xf32>
    %cst_93 = arith.constant dense<0.000000e+00> : vector<4x128xf32>
    %144 = tpu.matmul %142, %143, %cst_93 {dimension_numbers = #tpu.dot_dimension_numbers<[1], [0], [0], [1], [0, 0, 1, 1], [], []>} : vector<4x768xf32>, vector<768x128xf32>, vector<4x128xf32> -> vector<4x128xf32>
    %145 = arith.mulf %144, %2 : vector<4x128xf32>
    %146 = arith.addf %145, %5 : vector<4x128xf32>
    %147 = tpu.concatenate %135, %139, %136, %140, %137, %141 in 1 : vector<4x128xf32>, vector<4x128xf32>, vector<4x128xf32>, vector<4x128xf32>, vector<4x128xf32>, vector<4x128xf32> -> vector<4x768xf32>
    %c0_94 = arith.constant 0 : index
    %c0_95 = arith.constant 0 : index
    %148 = vector.load %arg2[%c0_94, %c0_95] : memref<768x128xf32, #tpu.memory_space<vmem>>, vector<768x128xf32>
    %cst_96 = arith.constant dense<0.000000e+00> : vector<4x128xf32>
    %149 = tpu.matmul %147, %148, %cst_96 {dimension_numbers = #tpu.dot_dimension_numbers<[1], [0], [0], [1], [0, 0, 1, 1], [], []>} : vector<4x768xf32>, vector<768x128xf32>, vector<4x128xf32> -> vector<4x128xf32>
    %150 = arith.mulf %149, %2 : vector<4x128xf32>
    %151 = arith.addf %150, %5 : vector<4x128xf32>
    %152 = arith.maximumf %146, %151 : vector<4x128xf32>
    %cst_97 = arith.constant 0.000000e+00 : f32
    %153 = vector.broadcast %cst_97 : f32 to vector<4x128xf32>
    %154 = arith.maximumf %152, %153 : vector<4x128xf32>
    %155 = vector.extract_strided_slice %154 {offsets = [0, 0], sizes = [4, 64], strides = [1, 1]} : vector<4x128xf32> to vector<4x64xf32>
    %156 = vector.extract_strided_slice %154 {offsets = [0, 64], sizes = [4, 64], strides = [1, 1]} : vector<4x128xf32> to vector<4x64xf32>
    %157 = arith.maximumf %155, %156 : vector<4x64xf32>
    %c3_98 = arith.constant 3 : index
    %c0_99 = arith.constant 0 : index
    %c0_100 = arith.constant 0 : index
    %158 = vector.load %arg5[%c3_98, %c0_99, %c0_100] : memref<4x4x64xf32, #tpu.memory_space<vmem>>, vector<1x4x64xf32>
    %159 = vector.shape_cast %158 : vector<1x4x64xf32> to vector<4x64xf32>
    %160 = arith.mulf %157, %159 : vector<4x64xf32>
    %161 = vector.shape_cast %160 : vector<4x64xf32> to vector<1x4x64xf32>
    %cst_101 = arith.constant dense<0.000000e+00> : vector<1xf32>
    %162 = vector.multi_reduction <add>, %161, %cst_101 [1, 2] : vector<1x4x64xf32> to vector<1xf32>
    %163 = vector.shape_cast %162 : vector<1xf32> to vector<1x1x1xf32>
    %164 = vector.extract %163[0, 0, 0] : f32 from vector<1x1x1xf32>
    %165 = arith.addf %125, %164 : f32
    %c0_102 = arith.constant 0 : index
    %c0_103 = arith.constant 0 : index
    %166 = vector.load %arg6[%c0_102, %c0_103] : memref<1x1xf32, #tpu.memory_space<vmem>>, vector<1x1xf32>
    %167 = vector.broadcast %165 : f32 to vector<1x1xf32>
    %168 = arith.addf %167, %166 : vector<1x1xf32>
    %c0_104 = arith.constant 0 : index
    %c0_105 = arith.constant 0 : index
    %c0_106 = arith.constant 0 : index
    %169 = vector.load %arg7[%c0_104, %c0_105, %c0_106] : memref<1x1x1xf32, #tpu.memory_space<vmem>>, vector<1x1x1xf32>
    %170 = vector.shape_cast %169 : vector<1x1x1xf32> to vector<1x1xf32>
    %171 = vector.shape_cast %168 : vector<1x1xf32> to vector<1x1x1xf32>
    tpu.vector_store %arg7[%c0_104, %c0_105, %c0_106], %171 {strides = array<i32>} : memref<1x1x1xf32, #tpu.memory_space<vmem>>, vector<1x1x1xf32>,
    return
  }
  func.func @transform_0(%arg0: i32) -> (i32, i32, i32, i32) {
    %c0_i32 = arith.constant 0 : i32
    %c0_i32_0 = arith.constant 0 : i32
    %c0_i32_1 = arith.constant 0 : i32
    %c0_i32_2 = arith.constant 0 : i32
    return %arg0, %c0_i32, %c0_i32_0, %c0_i32_1 : i32, i32, i32, i32
  }
  func.func @transform_1(%arg0: i32) -> (i32, i32) {
    %c0_i32 = arith.constant 0 : i32
    %c0_i32_0 = arith.constant 0 : i32
    %c0_i32_1 = arith.constant 0 : i32
    return %c0_i32, %c0_i32_0 : i32, i32
  }
  func.func @transform_2(%arg0: i32) -> (i32, i32) {
    %c0_i32 = arith.constant 0 : i32
    %c0_i32_0 = arith.constant 0 : i32
    %c0_i32_1 = arith.constant 0 : i32
    return %c0_i32, %c0_i32_0 : i32, i32
  }
  func.func @transform_3(%arg0: i32) -> (i32, i32) {
    %c0_i32 = arith.constant 0 : i32
    %c0_i32_0 = arith.constant 0 : i32
    %c0_i32_1 = arith.constant 0 : i32
    return %c0_i32, %c0_i32_0 : i32, i32
  }
  func.func @transform_4(%arg0: i32) -> (i32, i32, i32) {
    %c0_i32 = arith.constant 0 : i32
    %c0_i32_0 = arith.constant 0 : i32
    %c0_i32_1 = arith.constant 0 : i32
    %c0_i32_2 = arith.constant 0 : i32
    return %c0_i32, %c0_i32_0, %c0_i32_1 : i32, i32, i32
  }
  func.func @transform_5(%arg0: i32) -> (i32, i32) {
    %c0_i32 = arith.constant 0 : i32
    %c0_i32_0 = arith.constant 0 : i32
    %c0_i32_1 = arith.constant 0 : i32
    return %c0_i32, %c0_i32_0 : i32, i32
  }
  func.func @transform_6(%arg0: i32) -> (i32, i32, i32) {
    %c0_i32 = arith.constant 0 : i32
    %c0_i32_0 = arith.constant 0 : i32
    %c0_i32_1 = arith.constant 0 : i32
    return %arg0, %c0_i32, %c0_i32_0 : i32, i32, i32
  }
}

</mosaic_0001>

<llo_original>
// kernel: tile.43
$region0: #{tile.43}
  #allocation0 [shape = 's32[1]{0}', space=sflag, size = 0x4, scoped, tag = 'scoped memory for tile.43']
  %s0 = inlined_call_operand.vmem [shape: f32[64], index: 0, kind: input, shape index: {}]
  %s1 = inlined_call_operand.vmem [shape: f32[2,64], index: 1, kind: output, shape index: {}]
  // Predicated region
  $region2: #{tile.43} parent=0 // pred_check
    _
  $region3: #{tile.43} parent=0 // pred_check_branch
    %3 = sbr.rel (0) target = $region5
  $region4: #{tile.43} parent=0 // pred_region
    _
  $region5: #{tile.43} parent=0 // pred_fallthru
    _
  %v4 = vld [vmem:[%s0] ss:$0 sm:$0xff]
  %5 = vst [vmem:[%s1] sm:$0x3] %v4

// kernel: tile.44
$region0: #{tile.44}
  %s0 = inlined_call_operand.vmem [shape: f32[2,64], index: 0, kind: input, shape index: {}]
  %s1 = inlined_call_operand.vmem [shape: f32[1,128], index: 1, kind: output, shape index: {}]
  $region1: #{tile.44} parent=0
    #allocation0 [shape = 'u8[4096]{0}', space=vmem, size = 0x1000, scoped, tag = 'scoped mem for output reshape']
    #allocation1 [shape = 'u8[4096]{0}', space=vmem, size = 0x1000, scoped, tag = 'scoped mem for input reshape']
    %s3 = ssub.s32 4, 1
    %v4 = vld [vmem:[%s0] sm:%s3]
    %5 = vst [vmem:[#allocation1] sm:%s3] %v4
    %v6 = vld [vmem:[#allocation1] sm:$0x1]
    %vm7 = vcmask 523264
    %8 = vst.msk [vmem:[#allocation0] sm:$0x1] %vm7, %v6
    %s9 = scalar_lea.vmem [#allocation1], 1
    %v10 = vld [vmem:[%s9] sm:$0x1]
    %11 = vrot.lane.b32.xlu0 %v10, 64
    %v12 = vpop.permute.xlu0 %11
    %vm13 = vcmask 1048064
    %14 = vst.msk [vmem:[#allocation0] sm:$0x1] %vm13, %v12
    %s16 = ssub.s32 2, 1
    %v17 = vld [vmem:[#allocation0] sm:%s16]
    %s19 = ssub.s32 2, 1
    %20 = vst [vmem:[%s1] sm:%s19] %v17

// kernel: cnn_encoder_forward.4
$region0: #{cnn_encoder_forward.4}
  #allocation0 [shape = 'u32[]', space=smem, size = 0x4, offset = 0x4, fixed_abs, tag = 'smem constant byte address 0x4 - core index']
  #allocation1 [shape = 'u32[72,128]{1,0:T(1,128)}', space=vmem, size = 0x9000, scoped, tag = 'internal scratch']
  %s0 = inlined_call_operand.vmem [shape: f32[2,82,41,36], index: 0, kind: input, shape index: {}]
  %s1 = inlined_call_operand.vmem [shape: f32[36,128], index: 1, kind: input, shape index: {}]
  %s2 = inlined_call_operand.vmem [shape: f32[1,128], index: 2, kind: input, shape index: {}]
  %s3 = inlined_call_operand.vmem [shape: f32[1,128], index: 3, kind: input, shape index: {}]
  %s4 = inlined_call_operand.vmem [shape: f32[2,41,41,64], index: 4, kind: output, shape index: {}]
  %s5 = sld [smem:[#allocation0]]
  $region56: #{cnn_encoder_forward.4} parent=0
    _
  %s7 = ssub.s32 1, %s5
  %s8 = scalar_select 0, %s7, %s5
  loop: start=0, step=1, limit=4
  $region2: #{cnn_encoder_forward.4} parent=0 // loop_pre_header
    _
  $region3: #{cnn_encoder_forward.4} parent=0 // loop_header
    %s10 = sphi 0, %s14
    %p11 = scmp.ge.s32.totalorder %s10, 4
    %s20 = sphi 0, %s22
    %s23 = sphi 0, %s20
    %s24 = sphi 0, %s23
    %s40 = sphi 0, %s24
    %s44 = sphi 0, %s44
    %s46 = sphi 0, %s44
    %s47 = sphi 0, %s46
    %s61 = sphi 0, %s47
    %s65 = sphi 0, %s65
    %s67 = sphi 0, %s65
    %s68 = sphi 0, %s67
    %s82 = sphi 0, %s68
    %s86 = sphi 0, %s86
    %s88 = sphi 0, %s86
    %s89 = sphi 0, %s88
    %s103 = sphi 0, %s89
    %s109 = sphi 0, %s111
    %s112 = sphi 0, %s109
    %s113 = sphi 0, %s112
    %s129 = sphi 0, %s113
  $region4: #{cnn_encoder_forward.4} parent=0 // loop_header_branch
    %13 = sbr.rel (%p11) target = $region8
  $region5: #{cnn_encoder_forward.4} parent=0 // loop_body
    %s15 = ssub.s32 %s10, 1
    %s16 = ssub.s32 %s10, 2
    %s17 = sadd.s32 %s10, 1
    %s18 = ssub.s32 %s10, %s17
    %p19 = scmp.eq.s32.totalorder %s18, 0
    %s21 = sadd.s32 %s20, 1
    %s22 = scalar_select %p19, %s20, %s21
    %p25 = pneg %p19
    %p26 = scmp.eq.s32.totalorder %s10, 1
    %p27 = por %p25, %p26
    %p28 = scmp.ne.s32.totalorder %s20, %s23
    %p29 = scmp.eq.s32.totalorder %s10, 0
    %p30 = por %p28, %p29
    %p31 = scmp.ne.s32.totalorder %s20, %s23
    %p32 = scmp.eq.s32.totalorder %s15, 1
    %p33 = por %p31, %p32
    %p34 = scmp.ne.s32.totalorder %s23, %s24
    %p35 = scmp.eq.s32.totalorder %s15, 0
    %p36 = por %p34, %p35
    %p37 = scmp.ne.s32.totalorder %s23, %s24
    %p38 = scmp.eq.s32.totalorder %s16, 1
    %p39 = por %p37, %p38
    %p41 = scmp.ne.s32.totalorder %s24, %s40
    %p42 = scmp.eq.s32.totalorder %s16, 0
    %p43 = por %p41, %p42
    %s45 = sadd.s32 %s44, 1
    %p48 = scmp.eq.s32.totalorder %s10, 1
    %p49 = scmp.ne.s32.totalorder %s44, %s46
    %p50 = scmp.eq.s32.totalorder %s10, 0
    %p51 = por %p49, %p50
    %p52 = scmp.ne.s32.totalorder %s44, %s46
    %p53 = scmp.eq.s32.totalorder %s15, 1
    %p54 = por %p52, %p53
    %p55 = scmp.ne.s32.totalorder %s46, %s47
    %p56 = scmp.eq.s32.totalorder %s15, 0
    %p57 = por %p55, %p56
    %p58 = scmp.ne.s32.totalorder %s46, %s47
    %p59 = scmp.eq.s32.totalorder %s16, 1
    %p60 = por %p58, %p59
    %p62 = scmp.ne.s32.totalorder %s47, %s61
    %p63 = scmp.eq.s32.totalorder %s16, 0
    %p64 = por %p62, %p63
    %s66 = sadd.s32 %s65, 1
    %p69 = scmp.eq.s32.totalorder %s10, 1
    %p70 = scmp.ne.s32.totalorder %s65, %s67
    %p71 = scmp.eq.s32.totalorder %s10, 0
    %p72 = por %p70, %p71
    %p73 = scmp.ne.s32.totalorder %s65, %s67
    %p74 = scmp.eq.s32.totalorder %s15, 1
    %p75 = por %p73, %p74
    %p76 = scmp.ne.s32.totalorder %s67, %s68
    %p77 = scmp.eq.s32.totalorder %s15, 0
    %p78 = por %p76, %p77
    %p79 = scmp.ne.s32.totalorder %s67, %s68
    %p80 = scmp.eq.s32.totalorder %s16, 1
    %p81 = por %p79, %p80
    %p83 = scmp.ne.s32.totalorder %s68, %s82
    %p84 = scmp.eq.s32.totalorder %s16, 0
    %p85 = por %p83, %p84
    %s87 = sadd.s32 %s86, 1
    %p90 = scmp.eq.s32.totalorder %s10, 1
    %p91 = scmp.ne.s32.totalorder %s86, %s88
    %p92 = scmp.eq.s32.totalorder %s10, 0
    %p93 = por %p91, %p92
    %p94 = scmp.ne.s32.totalorder %s86, %s88
    %p95 = scmp.eq.s32.totalorder %s15, 1
    %p96 = por %p94, %p95
    %p97 = scmp.ne.s32.totalorder %s88, %s89
    %p98 = scmp.eq.s32.totalorder %s15, 0
    %p99 = por %p97, %p98
    %p100 = scmp.ne.s32.totalorder %s88, %s89
    %p101 = scmp.eq.s32.totalorder %s16, 1
    %p102 = por %p100, %p101
    %p104 = scmp.ne.s32.totalorder %s89, %s103
    %p105 = scmp.eq.s32.totalorder %s16, 0
    %p106 = por %p104, %p105
    %s107 = ssub.s32 %s10, %s17
    %p108 = scmp.eq.s32.totalorder %s107, 0
    %s110 = sadd.s32 %s109, 1
    %s111 = scalar_select %p108, %s109, %s110
    %p114 = pneg %p108
    %p115 = scmp.eq.s32.totalorder %s10, 1
    %p116 = por %p114, %p115
    %p117 = scmp.ne.s32.totalorder %s109, %s112
    %p118 = scmp.eq.s32.totalorder %s10, 0
    %p119 = por %p117, %p118
    %p120 = scmp.ne.s32.totalorder %s109, %s112
    %p121 = scmp.eq.s32.totalorder %s15, 1
    %p122 = por %p120, %p121
    %p123 = scmp.ne.s32.totalorder %s112, %s113
    %p124 = scmp.eq.s32.totalorder %s15, 0
    %p125 = por %p123, %p124
    %p126 = scmp.ne.s32.totalorder %s112, %s113
    %p127 = scmp.eq.s32.totalorder %s16, 1
    %p128 = por %p126, %p127
    %p130 = scmp.ne.s32.totalorder %s113, %s129
    %p131 = scmp.eq.s32.totalorder %s16, 0
    %p132 = por %p130, %p131
    %p133 = scmp.le.s32.totalorder 1, %s10
    %p134 = scmp.lt.s32.totalorder %s10, 3
    %p135 = pnand %p133, %p134
    %p136 = pneg %p135
    // Predicated region
    $region9: #{cnn_encoder_forward.4} parent=5 // pred_check
      _
    $region10: #{cnn_encoder_forward.4} parent=5 // pred_check_branch
      %138 = sbr.rel (%p135) target = $region12
    $region11: #{cnn_encoder_forward.4} parent=5 // pred_region
      %s139 = ssub.s32 %s10, 1
      // Predicated region
      $region13: #{cnn_encoder_forward.4} parent=11 // pred_check
        %p140 = pneg %p57
      $region14: #{cnn_encoder_forward.4} parent=11 // pred_check_branch
        %142 = sbr.rel (%p140) target = $region16
      $region15: #{cnn_encoder_forward.4} parent=11 // pred_region
        _
      $region16: #{cnn_encoder_forward.4} parent=11 // pred_fallthru
        _
      // Predicated region
      $region17: #{cnn_encoder_forward.4} parent=11 // pred_check
        %p143 = pneg %p78
      $region18: #{cnn_encoder_forward.4} parent=11 // pred_check_branch
        %145 = sbr.rel (%p143) target = $region20
      $region19: #{cnn_encoder_forward.4} parent=11 // pred_region
        _
      $region20: #{cnn_encoder_forward.4} parent=11 // pred_fallthru
        _
      // Predicated region
      $region21: #{cnn_encoder_forward.4} parent=11 // pred_check
        %p146 = pneg %p99
      $region22: #{cnn_encoder_forward.4} parent=11 // pred_check_branch
        %148 = sbr.rel (%p146) target = $region24
      $region23: #{cnn_encoder_forward.4} parent=11 // pred_region
        _
      $region24: #{cnn_encoder_forward.4} parent=11 // pred_fallthru
        _
    $region12: #{cnn_encoder_forward.4} parent=5 // pred_fallthru
      _
    %p149 = scmp.lt.s32.totalorder %s10, 2
    // Predicated region
    $region25: #{cnn_encoder_forward.4} parent=5 // pred_check
      %p150 = pneg %p149
    $region26: #{cnn_encoder_forward.4} parent=5 // pred_check_branch
      %152 = sbr.rel (%p150) target = $region28
    $region27: #{cnn_encoder_forward.4} parent=5 // pred_region
      // Predicated region
      $region29: #{cnn_encoder_forward.4} parent=27 // pred_check
        %p153 = pneg %p30
      $region30: #{cnn_encoder_forward.4} parent=27 // pred_check_branch
        %155 = sbr.rel (%p153) target = $region32
      $region31: #{cnn_encoder_forward.4} parent=27 // pred_region
        %p156 = scmp.lt.s32.totalorder %s10, 1
        %s157 = scalar_select %p156, %s10, 1
        %s158 = smul.addr %s157, 492
        %s159 = smul.addr %s158, 8
        %s160 = scalar_lea.vmem %s0, %s159
      $region32: #{cnn_encoder_forward.4} parent=27 // pred_fallthru
        _
    $region28: #{cnn_encoder_forward.4} parent=5 // pred_fallthru
      _
    %p161 = scmp.le.s32.totalorder 1, %s10
    %p162 = scmp.lt.s32.totalorder %s10, 3
    %p163 = pnand %p161, %p162
    %p164 = pneg %p163
    // Predicated region
    $region33: #{cnn_encoder_forward.4} parent=5 // pred_check
      _
    $region34: #{cnn_encoder_forward.4} parent=5 // pred_check_branch
      %166 = sbr.rel (%p163) target = $region36
    $region35: #{cnn_encoder_forward.4} parent=5 // pred_region
      %s167 = ssub.s32 %s10, 1
      %p168 = scmp.lt.s32.totalorder %s15, 1
      %s169 = scalar_select %p168, %s15, 1
      %s170 = smul.addr %s169, 492
      %s171 = smul.addr %s170, 8
      %s172 = scalar_lea.vmem %s0, %s171
      %p173 = pneg %p36
      %p174 = pneg %p33
      %p175 = pneg %p57
      %p176 = pneg %p54
      %p177 = pneg %p78
      %p178 = pneg %p75
      %p179 = pneg %p99
      %p180 = pneg %p96
      %p181 = pneg %p125
      %p182 = pneg %p122
      %p183 = scmp.lt.s32.totalorder %s15, 1
      %s184 = scalar_select %p183, %s15, 1
      %s185 = smul.addr %s184, 246
      %s186 = smul.addr %s185, 8
      %s187 = scalar_lea.vmem %s4, %s186
      %p188 = scmp.lt.s32.totalorder %s15, 1
      %s189 = scalar_select %p188, %s15, 1
      %s190 = smul.addr %s189, 492
      %s191 = smul.addr %s190, 8
      %s192 = scalar_lea.vmem %s0, %s191
      %p193 = scmp.lt.s32.totalorder %s15, 1
      %s194 = scalar_select %p193, %s15, 1
      %s195 = smul.addr %s194, 246
      %s196 = smul.addr %s195, 8
      %s197 = scalar_lea.vmem %s4, %s196
      %v198 = vld [vmem:[%s2] sm:$0x1]
      %v200 = vperm.slane %v198, 0
      %v202 = vld [vmem:[%s3] sm:$0x1]
      %v204 = vperm.slane %v202, 0
      loop: start=0, step=1, limit=41
      $region37: #{cnn_encoder_forward.4} parent=35 // loop_pre_header
        _
      $region38: #{cnn_encoder_forward.4} parent=35 // loop_header
        %s207 = sphi 0, %s211
        %p208 = scmp.ge.s32.totalorder %s207, 41
      $region39: #{cnn_encoder_forward.4} parent=35 // loop_header_branch
        %210 = sbr.rel (%p208) target = $region43
      $region40: #{cnn_encoder_forward.4} parent=35 // loop_body
        %s212 = smul.u32 %s207, 2
        %s213 = smul.u32 %s212, 48
        %s214 = scalar_lea.vmem %s192, %s213
        %v215 = vld [vmem:[%s214] sm:$0xff]
        %v216 = vld [vmem:[%s214 + $0x8] sm:$0xff]
        %v217 = vld [vmem:[%s214 + $0x10] sm:$0xff]
        %v218 = vld [vmem:[%s214 + $0x18] sm:$0xff]
        %v219 = vld [vmem:[%s214 + $0x20] sm:$0xff]
        %v220 = vld [vmem:[%s214 + $0x28] sm:$0x1]
        %v221 = vld [vmem:[%s1] sm:$0xff]
        %v222 = vld [vmem:[%s1 + $0x8] sm:$0xff]
        %v223 = vld [vmem:[%s1 + $0x10] sm:$0xff]
        %v224 = vld [vmem:[%s1 + $0x18] sm:$0xff]
        %v225 = vld [vmem:[%s1 + $0x20] sm:$0xf]
        %vm226 = vcmask 293888
        %v228 = vsel %vm226, %v215, 0
        %v231 = vsel %vm226, %v216, 0
        %v234 = vsel %vm226, %v217, 0
        %v237 = vsel %vm226, %v218, 0
        %v240 = vsel %vm226, %v219, 0
        %v243 = vsel %vm226, %v220, 0
        %vm245 = vcmask 1043456
        %v247 = vsel %vm245, %v225, 0
        %249 = vmatpush.msra.mxu0 0.0
        %250 = vmatpush.msra.mxu0 0.0
        %251 = vmatpush.msra.mxu0 0.0
        %252 = vmatpush.msra.mxu0 0.0
        %253 = vmatpush.msra.mxu0 0.0
        %254 = vmatpush.msra.mxu0 0.0
        %255 = vmatpush.msra.mxu0 0.0
        %256 = vmatpush.msra.mxu0 0.0
        %257 = vmatpush.msra.mxu0 0.0
        %258 = vmatpush.msra.mxu0 0.0
        %259 = vmatpush.msra.mxu0 0.0
        %260 = vmatpush.msra.mxu0 %v247
        %261 = vmatpush.msra.mxu0 %v224
        %262 = vmatpush.msra.mxu0 %v223
        %263 = vmatpush.msra.mxu0 %v222
        %264 = vmatpush.msra.mxu0 %v221
        %265 = vmatmul.f32.gmra.mxu0 %v228
        %v266 = vpop.f32.mrf.mxu0
        %v267 = vadd.f32 0.0, %v266
        %268 = vmatmul.f32.gmra.mxu0 %v231
        %v269 = vpop.f32.mrf.mxu0
        %v270 = vadd.f32 0.0, %v269
        %271 = vmatmul.f32.gmra.mxu0 %v234
        %v272 = vpop.f32.mrf.mxu0
        %v273 = vadd.f32 0.0, %v272
        %274 = vmatmul.f32.gmra.mxu0 %v237
        %v275 = vpop.f32.mrf.mxu0
        %v276 = vadd.f32 0.0, %v275
        %277 = vmatmul.f32.gmra.mxu0 %v240
        %v278 = vpop.f32.mrf.mxu0
        %v279 = vadd.f32 0.0, %v278
        %280 = vmatmul.f32.gmra.mxu0 %v243
        %v281 = vpop.f32.mrf.mxu0
        %v282 = vadd.f32 0.0, %v281
        %283 = vdwg.mxu0
        %v284 = vmul.f32 %v267, %v200
        %v285 = vmul.f32 %v270, %v200
        %v286 = vmul.f32 %v273, %v200
        %v287 = vmul.f32 %v276, %v200
        %v288 = vmul.f32 %v279, %v200
        %v289 = vmul.f32 %v282, %v200
        %v290 = vadd.f32 %v284, %v204
        %v291 = vadd.f32 %v285, %v204
        %v292 = vadd.f32 %v286, %v204
        %v293 = vadd.f32 %v287, %v204
        %v294 = vadd.f32 %v288, %v204
        %v295 = vadd.f32 %v289, %v204
        %s296 = sadd.s32 %s212, 1
        %s297 = smul.u32 %s296, 48
        %s298 = scalar_lea.vmem %s192, %s297
        %v299 = vld [vmem:[%s298] sm:$0xff]
        %v300 = vld [vmem:[%s298 + $0x8] sm:$0xff]
        %v301 = vld [vmem:[%s298 + $0x10] sm:$0xff]
        %v302 = vld [vmem:[%s298 + $0x18] sm:$0xff]
        %v303 = vld [vmem:[%s298 + $0x20] sm:$0xff]
        %v304 = vld [vmem:[%s298 + $0x28] sm:$0x1]
        %v306 = vsel %vm226, %v299, 0
        %v309 = vsel %vm226, %v300, 0
        %v312 = vsel %vm226, %v301, 0
        %v315 = vsel %vm226, %v302, 0
        %v318 = vsel %vm226, %v303, 0
        %v321 = vsel %vm226, %v304, 0
        %323 = vmatpush.msra.mxu0 0.0
        %324 = vmatpush.msra.mxu0 0.0
        %325 = vmatpush.msra.mxu0 0.0
        %326 = vmatpush.msra.mxu0 0.0
        %327 = vmatpush.msra.mxu0 0.0
        %328 = vmatpush.msra.mxu0 0.0
        %329 = vmatpush.msra.mxu0 0.0
        %330 = vmatpush.msra.mxu0 0.0
        %331 = vmatpush.msra.mxu0 0.0
        %332 = vmatpush.msra.mxu0 0.0
        %333 = vmatpush.msra.mxu0 0.0
        %334 = vmatpush.msra.mxu0 %v247
        %335 = vmatpush.msra.mxu0 %v224
        %336 = vmatpush.msra.mxu0 %v223
        %337 = vmatpush.msra.mxu0 %v222
        %338 = vmatpush.msra.mxu0 %v221
        %339 = vmatmul.f32.gmra.mxu0 %v306
        %v340 = vpop.f32.mrf.mxu0
        %v341 = vadd.f32 0.0, %v340
        %342 = vmatmul.f32.gmra.mxu0 %v309
        %v343 = vpop.f32.mrf.mxu0
        %v344 = vadd.f32 0.0, %v343
        %345 = vmatmul.f32.gmra.mxu0 %v312
        %v346 = vpop.f32.mrf.mxu0
        %v347 = vadd.f32 0.0, %v346
        %348 = vmatmul.f32.gmra.mxu0 %v315
        %v349 = vpop.f32.mrf.mxu0
        %v350 = vadd.f32 0.0, %v349
        %351 = vmatmul.f32.gmra.mxu0 %v318
        %v352 = vpop.f32.mrf.mxu0
        %v353 = vadd.f32 0.0, %v352
        %354 = vmatmul.f32.gmra.mxu0 %v321
        %v355 = vpop.f32.mrf.mxu0
        %v356 = vadd.f32 0.0, %v355
        %357 = vdwg.mxu0
        %v358 = vmul.f32 %v341, %v200
        %v359 = vmul.f32 %v344, %v200
        %v360 = vmul.f32 %v347, %v200
        %v361 = vmul.f32 %v350, %v200
        %v362 = vmul.f32 %v353, %v200
        %v363 = vmul.f32 %v356, %v200
        %v364 = vadd.f32 %v358, %v204
        %v365 = vadd.f32 %v359, %v204
        %v366 = vadd.f32 %v360, %v204
        %v367 = vadd.f32 %v361, %v204
        %v368 = vadd.f32 %v362, %v204
        %v369 = vadd.f32 %v363, %v204
        %v370 = vmax.f32 %v290, %v364
        %v371 = vmax.f32 %v291, %v365
        %v372 = vmax.f32 %v292, %v366
        %v373 = vmax.f32 %v293, %v367
        %v374 = vmax.f32 %v294, %v368
        %v375 = vmax.f32 %v295, %v369
        %v376 = vmax.f32 %v370, 0.0
        %v377 = vmax.f32 %v371, 0.0
        %v378 = vmax.f32 %v372, 0.0
        %v379 = vmax.f32 %v373, 0.0
        %v380 = vmax.f32 %v374, 0.0
        %v381 = vmax.f32 %v375, 0.0
        %388 = vrot.lane.b32.xlu0 %v376, 64
        %v389 = vpop.permute.xlu0 %388
        %390 = vrot.lane.b32.xlu0 %v377, 64
        %v391 = vpop.permute.xlu0 %390
        %392 = vrot.lane.b32.xlu0 %v378, 64
        %v393 = vpop.permute.xlu0 %392
        %394 = vrot.lane.b32.xlu0 %v379, 64
        %v395 = vpop.permute.xlu0 %394
        %396 = vrot.lane.b32.xlu0 %v380, 64
        %v397 = vpop.permute.xlu0 %396
        %398 = vrot.lane.b32.xlu0 %v381, 64
        %v399 = vpop.permute.xlu0 %398
        %v406 = vmax.f32 %v376, %v389
        %v407 = vmax.f32 %v377, %v391
        %v408 = vmax.f32 %v378, %v393
        %v409 = vmax.f32 %v379, %v395
        %v410 = vmax.f32 %v380, %v397
        %v411 = vmax.f32 %v381, %v399
        %s412 = smul.u32 %s207, 48
        %s413 = scalar_lea.vmem %s197, %s412
        %vm414 = vcmask 523264
        %415 = vst.msk [vmem:[%s413] sm:$0xff] %vm414, %v406
        %416 = vst.msk [vmem:[%s413 + $0x8] sm:$0xff] %vm414, %v407
        %417 = vst.msk [vmem:[%s413 + $0x10] sm:$0xff] %vm414, %v408
        %418 = vst.msk [vmem:[%s413 + $0x18] sm:$0xff] %vm414, %v409
        %419 = vst.msk [vmem:[%s413 + $0x20] sm:$0xff] %vm414, %v410
        %vm420 = vcmask 516096
        %421 = vst.msk [vmem:[%s413 + $0x28] sm:$0x1] %vm420, %v411
      $region41: #{cnn_encoder_forward.4} parent=35 // loop_footer
        %s211 = sadd.s32 1, %s207
      $region42: #{cnn_encoder_forward.4} parent=35 // loop_footer_branch
        %206 = sbr.rel target = $region38
      $region43: #{cnn_encoder_forward.4} parent=35 // loop_exit
        _
      %p422 = scmp.lt.s32.totalorder %s15, 1
      %s423 = scalar_select %p422, %s15, 1
      %s424 = smul.addr %s423, 246
      %s425 = smul.addr %s424, 8
      %s426 = scalar_lea.vmem %s4, %s425
      // Predicated region
      $region44: #{cnn_encoder_forward.4} parent=35 // pred_check
        %p427 = pneg %p122
      $region45: #{cnn_encoder_forward.4} parent=35 // pred_check_branch
        %429 = sbr.rel (%p427) target = $region47
      $region46: #{cnn_encoder_forward.4} parent=35 // pred_region
        _
      $region47: #{cnn_encoder_forward.4} parent=35 // pred_fallthru
        _
    $region36: #{cnn_encoder_forward.4} parent=5 // pred_fallthru
      _
    %p430 = scmp.le.s32.totalorder 2, %s10
    // Predicated region
    $region48: #{cnn_encoder_forward.4} parent=5 // pred_check
      %p431 = pneg %p430
    $region49: #{cnn_encoder_forward.4} parent=5 // pred_check_branch
      %433 = sbr.rel (%p431) target = $region51
    $region50: #{cnn_encoder_forward.4} parent=5 // pred_region
      %s434 = ssub.s32 %s10, 2
      // Predicated region
      $region52: #{cnn_encoder_forward.4} parent=50 // pred_check
        %p435 = pneg %p128
      $region53: #{cnn_encoder_forward.4} parent=50 // pred_check_branch
        %437 = sbr.rel (%p435) target = $region55
      $region54: #{cnn_encoder_forward.4} parent=50 // pred_region
        %p438 = scmp.lt.s32.totalorder %s16, 1
        %s439 = scalar_select %p438, %s16, 1
        %s440 = smul.addr %s439, 246
        %s441 = smul.addr %s440, 8
        %s442 = scalar_lea.vmem %s4, %s441
      $region55: #{cnn_encoder_forward.4} parent=50 // pred_fallthru
        _
    $region51: #{cnn_encoder_forward.4} parent=5 // pred_fallthru
      _
  $region6: #{cnn_encoder_forward.4} parent=0 // loop_footer
    %s14 = sadd.s32 1, %s10
  $region7: #{cnn_encoder_forward.4} parent=0 // loop_footer_branch
    %9 = sbr.rel target = $region3
  $region8: #{cnn_encoder_forward.4} parent=0 // loop_exit
    _

// kernel: cnn_encoder_forward.5
$region0: #{cnn_encoder_forward.5}
  #allocation0 [shape = 'u32[]', space=smem, size = 0x4, offset = 0x4, fixed_abs, tag = 'smem constant byte address 0x4 - core index']
  #allocation1 [shape = 'u32[72,128]{1,0:T(1,128)}', space=vmem, size = 0x9000, scoped, tag = 'internal scratch']
  %s0 = inlined_call_operand.vmem [shape: f32[2,41,21,128], index: 0, kind: input, shape index: {}]
  %s1 = inlined_call_operand.vmem [shape: f32[768,128], index: 1, kind: input, shape index: {}]
  %s2 = inlined_call_operand.vmem [shape: f32[1,128], index: 2, kind: input, shape index: {}]
  %s3 = inlined_call_operand.vmem [shape: f32[1,128], index: 3, kind: input, shape index: {}]
  %s4 = inlined_call_operand.vmem [shape: f32[2,19,19,64], index: 4, kind: output, shape index: {}]
  %s5 = sld [smem:[#allocation0]]
  $region56: #{cnn_encoder_forward.5} parent=0
    _
  %s7 = ssub.s32 1, %s5
  %s8 = scalar_select 0, %s7, %s5
  loop: start=0, step=1, limit=4
  $region2: #{cnn_encoder_forward.5} parent=0 // loop_pre_header
    _
  $region3: #{cnn_encoder_forward.5} parent=0 // loop_header
    %s10 = sphi 0, %s14
    %p11 = scmp.ge.s32.totalorder %s10, 4
    %s20 = sphi 0, %s22
    %s23 = sphi 0, %s20
    %s24 = sphi 0, %s23
    %s40 = sphi 0, %s24
    %s44 = sphi 0, %s44
    %s46 = sphi 0, %s44
    %s47 = sphi 0, %s46
    %s61 = sphi 0, %s47
    %s65 = sphi 0, %s65
    %s67 = sphi 0, %s65
    %s68 = sphi 0, %s67
    %s82 = sphi 0, %s68
    %s86 = sphi 0, %s86
    %s88 = sphi 0, %s86
    %s89 = sphi 0, %s88
    %s103 = sphi 0, %s89
    %s109 = sphi 0, %s111
    %s112 = sphi 0, %s109
    %s113 = sphi 0, %s112
    %s129 = sphi 0, %s113
  $region4: #{cnn_encoder_forward.5} parent=0 // loop_header_branch
    %13 = sbr.rel (%p11) target = $region8
  $region5: #{cnn_encoder_forward.5} parent=0 // loop_body
    %s15 = ssub.s32 %s10, 1
    %s16 = ssub.s32 %s10, 2
    %s17 = sadd.s32 %s10, 1
    %s18 = ssub.s32 %s10, %s17
    %p19 = scmp.eq.s32.totalorder %s18, 0
    %s21 = sadd.s32 %s20, 1
    %s22 = scalar_select %p19, %s20, %s21
    %p25 = pneg %p19
    %p26 = scmp.eq.s32.totalorder %s10, 1
    %p27 = por %p25, %p26
    %p28 = scmp.ne.s32.totalorder %s20, %s23
    %p29 = scmp.eq.s32.totalorder %s10, 0
    %p30 = por %p28, %p29
    %p31 = scmp.ne.s32.totalorder %s20, %s23
    %p32 = scmp.eq.s32.totalorder %s15, 1
    %p33 = por %p31, %p32
    %p34 = scmp.ne.s32.totalorder %s23, %s24
    %p35 = scmp.eq.s32.totalorder %s15, 0
    %p36 = por %p34, %p35
    %p37 = scmp.ne.s32.totalorder %s23, %s24
    %p38 = scmp.eq.s32.totalorder %s16, 1
    %p39 = por %p37, %p38
    %p41 = scmp.ne.s32.totalorder %s24, %s40
    %p42 = scmp.eq.s32.totalorder %s16, 0
    %p43 = por %p41, %p42
    %s45 = sadd.s32 %s44, 1
    %p48 = scmp.eq.s32.totalorder %s10, 1
    %p49 = scmp.ne.s32.totalorder %s44, %s46
    %p50 = scmp.eq.s32.totalorder %s10, 0
    %p51 = por %p49, %p50
    %p52 = scmp.ne.s32.totalorder %s44, %s46
    %p53 = scmp.eq.s32.totalorder %s15, 1
    %p54 = por %p52, %p53
    %p55 = scmp.ne.s32.totalorder %s46, %s47
    %p56 = scmp.eq.s32.totalorder %s15, 0
    %p57 = por %p55, %p56
    %p58 = scmp.ne.s32.totalorder %s46, %s47
    %p59 = scmp.eq.s32.totalorder %s16, 1
    %p60 = por %p58, %p59
    %p62 = scmp.ne.s32.totalorder %s47, %s61
    %p63 = scmp.eq.s32.totalorder %s16, 0
    %p64 = por %p62, %p63
    %s66 = sadd.s32 %s65, 1
    %p69 = scmp.eq.s32.totalorder %s10, 1
    %p70 = scmp.ne.s32.totalorder %s65, %s67
    %p71 = scmp.eq.s32.totalorder %s10, 0
    %p72 = por %p70, %p71
    %p73 = scmp.ne.s32.totalorder %s65, %s67
    %p74 = scmp.eq.s32.totalorder %s15, 1
    %p75 = por %p73, %p74
    %p76 = scmp.ne.s32.totalorder %s67, %s68
    %p77 = scmp.eq.s32.totalorder %s15, 0
    %p78 = por %p76, %p77
    %p79 = scmp.ne.s32.totalorder %s67, %s68
    %p80 = scmp.eq.s32.totalorder %s16, 1
    %p81 = por %p79, %p80
    %p83 = scmp.ne.s32.totalorder %s68, %s82
    %p84 = scmp.eq.s32.totalorder %s16, 0
    %p85 = por %p83, %p84
    %s87 = sadd.s32 %s86, 1
    %p90 = scmp.eq.s32.totalorder %s10, 1
    %p91 = scmp.ne.s32.totalorder %s86, %s88
    %p92 = scmp.eq.s32.totalorder %s10, 0
    %p93 = por %p91, %p92
    %p94 = scmp.ne.s32.totalorder %s86, %s88
    %p95 = scmp.eq.s32.totalorder %s15, 1
    %p96 = por %p94, %p95
    %p97 = scmp.ne.s32.totalorder %s88, %s89
    %p98 = scmp.eq.s32.totalorder %s15, 0
    %p99 = por %p97, %p98
    %p100 = scmp.ne.s32.totalorder %s88, %s89
    %p101 = scmp.eq.s32.totalorder %s16, 1
    %p102 = por %p100, %p101
    %p104 = scmp.ne.s32.totalorder %s89, %s103
    %p105 = scmp.eq.s32.totalorder %s16, 0
    %p106 = por %p104, %p105
    %s107 = ssub.s32 %s10, %s17
    %p108 = scmp.eq.s32.totalorder %s107, 0
    %s110 = sadd.s32 %s109, 1
    %s111 = scalar_select %p108, %s109, %s110
    %p114 = pneg %p108
    %p115 = scmp.eq.s32.totalorder %s10, 1
    %p116 = por %p114, %p115
    %p117 = scmp.ne.s32.totalorder %s109, %s112
    %p118 = scmp.eq.s32.totalorder %s10, 0
    %p119 = por %p117, %p118
    %p120 = scmp.ne.s32.totalorder %s109, %s112
    %p121 = scmp.eq.s32.totalorder %s15, 1
    %p122 = por %p120, %p121
    %p123 = scmp.ne.s32.totalorder %s112, %s113
    %p124 = scmp.eq.s32.totalorder %s15, 0
    %p125 = por %p123, %p124
    %p126 = scmp.ne.s32.totalorder %s112, %s113
    %p127 = scmp.eq.s32.totalorder %s16, 1
    %p128 = por %p126, %p127
    %p130 = scmp.ne.s32.totalorder %s113, %s129
    %p131 = scmp.eq.s32.totalorder %s16, 0
    %p132 = por %p130, %p131
    %p133 = scmp.le.s32.totalorder 1, %s10
    %p134 = scmp.lt.s32.totalorder %s10, 3
    %p135 = pnand %p133, %p134
    %p136 = pneg %p135
    // Predicated region
    $region9: #{cnn_encoder_forward.5} parent=5 // pred_check
      _
    $region10: #{cnn_encoder_forward.5} parent=5 // pred_check_branch
      %138 = sbr.rel (%p135) target = $region12
    $region11: #{cnn_encoder_forward.5} parent=5 // pred_region
      %s139 = ssub.s32 %s10, 1
      // Predicated region
      $region13: #{cnn_encoder_forward.5} parent=11 // pred_check
        %p140 = pneg %p57
      $region14: #{cnn_encoder_forward.5} parent=11 // pred_check_branch
        %142 = sbr.rel (%p140) target = $region16
      $region15: #{cnn_encoder_forward.5} parent=11 // pred_region
        _
      $region16: #{cnn_encoder_forward.5} parent=11 // pred_fallthru
        _
      // Predicated region
      $region17: #{cnn_encoder_forward.5} parent=11 // pred_check
        %p143 = pneg %p78
      $region18: #{cnn_encoder_forward.5} parent=11 // pred_check_branch
        %145 = sbr.rel (%p143) target = $region20
      $region19: #{cnn_encoder_forward.5} parent=11 // pred_region
        _
      $region20: #{cnn_encoder_forward.5} parent=11 // pred_fallthru
        _
      // Predicated region
      $region21: #{cnn_encoder_forward.5} parent=11 // pred_check
        %p146 = pneg %p99
      $region22: #{cnn_encoder_forward.5} parent=11 // pred_check_branch
        %148 = sbr.rel (%p146) target = $region24
      $region23: #{cnn_encoder_forward.5} parent=11 // pred_region
        _
      $region24: #{cnn_encoder_forward.5} parent=11 // pred_fallthru
        _
    $region12: #{cnn_encoder_forward.5} parent=5 // pred_fallthru
      _
    %p149 = scmp.lt.s32.totalorder %s10, 2
    // Predicated region
    $region25: #{cnn_encoder_forward.5} parent=5 // pred_check
      %p150 = pneg %p149
    $region26: #{cnn_encoder_forward.5} parent=5 // pred_check_branch
      %152 = sbr.rel (%p150) target = $region28
    $region27: #{cnn_encoder_forward.5} parent=5 // pred_region
      // Predicated region
      $region29: #{cnn_encoder_forward.5} parent=27 // pred_check
        %p153 = pneg %p30
      $region30: #{cnn_encoder_forward.5} parent=27 // pred_check_branch
        %155 = sbr.rel (%p153) target = $region32
      $region31: #{cnn_encoder_forward.5} parent=27 // pred_region
        %p156 = scmp.lt.s32.totalorder %s10, 1
        %s157 = scalar_select %p156, %s10, 1
        %s158 = smul.addr %s157, 123
        %s159 = smul.addr %s158, 8
        %s160 = scalar_lea.vmem %s0, %s159
      $region32: #{cnn_encoder_forward.5} parent=27 // pred_fallthru
        _
    $region28: #{cnn_encoder_forward.5} parent=5 // pred_fallthru
      _
    %p161 = scmp.le.s32.totalorder 1, %s10
    %p162 = scmp.lt.s32.totalorder %s10, 3
    %p163 = pnand %p161, %p162
    %p164 = pneg %p163
    // Predicated region
    $region33: #{cnn_encoder_forward.5} parent=5 // pred_check
      _
    $region34: #{cnn_encoder_forward.5} parent=5 // pred_check_branch
      %166 = sbr.rel (%p163) target = $region36
    $region35: #{cnn_encoder_forward.5} parent=5 // pred_region
      %s167 = ssub.s32 %s10, 1
      %p168 = scmp.lt.s32.totalorder %s15, 1
      %s169 = scalar_select %p168, %s15, 1
      %s170 = smul.addr %s169, 123
      %s171 = smul.addr %s170, 8
      %s172 = scalar_lea.vmem %s0, %s171
      %p173 = pneg %p36
      %p174 = pneg %p33
      %p175 = pneg %p57
      %p176 = pneg %p54
      %p177 = pneg %p78
      %p178 = pneg %p75
      %p179 = pneg %p99
      %p180 = pneg %p96
      %p181 = pneg %p125
      %p182 = pneg %p122
      %p183 = scmp.lt.s32.totalorder %s15, 1
      %s184 = scalar_select %p183, %s15, 1
      %s185 = smul.addr %s184, 57
      %s186 = smul.addr %s185, 8
      %s187 = scalar_lea.vmem %s4, %s186
      %p188 = scmp.lt.s32.totalorder %s15, 1
      %s189 = scalar_select %p188, %s15, 1
      %s190 = smul.addr %s189, 123
      %s191 = smul.addr %s190, 8
      %s192 = scalar_lea.vmem %s0, %s191
      %p193 = scmp.lt.s32.totalorder %s15, 1
      %s194 = scalar_select %p193, %s15, 1
      %s195 = smul.addr %s194, 57
      %s196 = smul.addr %s195, 8
      %s197 = scalar_lea.vmem %s4, %s196
      %v198 = vld [vmem:[%s2] sm:$0x1]
      %v200 = vperm.slane %v198, 0
      %v202 = vld [vmem:[%s3] sm:$0x1]
      %v204 = vperm.slane %v202, 0
      loop: start=0, step=1, limit=19
      $region37: #{cnn_encoder_forward.5} parent=35 // loop_pre_header
        _
      $region38: #{cnn_encoder_forward.5} parent=35 // loop_header
        %s207 = sphi 0, %s211
        %p208 = scmp.ge.s32.totalorder %s207, 19
      $region39: #{cnn_encoder_forward.5} parent=35 // loop_header_branch
        %210 = sbr.rel (%p208) target = $region43
      $region40: #{cnn_encoder_forward.5} parent=35 // loop_body
        %s212 = smul.u32 %s207, 2
        %s213 = smul.u32 %s212, 24
        %s214 = scalar_lea.vmem %s192, %s213
        %v215 = vld [vmem:[%s214] sm:$0xff]
        %v216 = vld [vmem:[%s214 + $0x8] sm:$0xff]
        %v217 = vld [vmem:[%s214 + $0x10] sm:$0x1f]
        %s218 = sadd.s32 %s212, 1
        %s219 = smul.u32 %s218, 24
        %s220 = scalar_lea.vmem %s192, %s219
        %v221 = vld [vmem:[%s220] sm:$0xff]
        %v222 = vld [vmem:[%s220 + $0x8] sm:$0xff]
        %v223 = vld [vmem:[%s220 + $0x10] sm:$0x1f]
        %s224 = sadd.s32 %s212, 2
        %s225 = smul.u32 %s224, 24
        %s226 = scalar_lea.vmem %s192, %s225
        %v227 = vld [vmem:[%s226] sm:$0xff]
        %v228 = vld [vmem:[%s226 + $0x8] sm:$0xff]
        %v229 = vld [vmem:[%s226 + $0x10] sm:$0x1f]
        %s230 = sadd.s32 %s212, 3
        %s231 = smul.u32 %s230, 24
        %s232 = scalar_lea.vmem %s192, %s231
        %v233 = vld [vmem:[%s232] sm:$0xff]
        %v234 = vld [vmem:[%s232 + $0x8] sm:$0xff]
        %v235 = vld [vmem:[%s232 + $0x10] sm:$0x1f]
        %vm239 = vcmask 1046528
        %v240 = vrot.slane %v215, 1
        %v241 = vrot.slane %v216, 1
        %v242 = vsel %vm239, %v240, %v241
        %v243 = vrot.slane %v217, 1
        %v244 = vsel %vm239, %v241, %v243
        %v251 = vrot.slane %v221, 1
        %v252 = vrot.slane %v222, 1
        %v253 = vsel %vm239, %v251, %v252
        %v254 = vrot.slane %v223, 1
        %v255 = vsel %vm239, %v252, %v254
        %v262 = vrot.slane %v227, 1
        %v263 = vrot.slane %v228, 1
        %v264 = vsel %vm239, %v262, %v263
        %v265 = vrot.slane %v229, 1
        %v266 = vsel %vm239, %v263, %v265
        %v270 = vld [vmem:[%s1] sm:$0xff]
        %v271 = vld [vmem:[%s1 + $0x8] sm:$0xff]
        %v272 = vld [vmem:[%s1 + $0x10] sm:$0xff]
        %v273 = vld [vmem:[%s1 + $0x18] sm:$0xff]
        %v274 = vld [vmem:[%s1 + $0x20] sm:$0xff]
        %v275 = vld [vmem:[%s1 + $0x28] sm:$0xff]
        %v276 = vld [vmem:[%s1 + $0x30] sm:$0xff]
        %v277 = vld [vmem:[%s1 + $0x38] sm:$0xff]
        %v278 = vld [vmem:[%s1 + $0x40] sm:$0xff]
        %v279 = vld [vmem:[%s1 + $0x48] sm:$0xff]
        %v280 = vld [vmem:[%s1 + $0x50] sm:$0xff]
        %v281 = vld [vmem:[%s1 + $0x58] sm:$0xff]
        %v282 = vld [vmem:[%s1 + $0x60] sm:$0xff]
        %v283 = vld [vmem:[%s1 + $0x68] sm:$0xff]
        %v284 = vld [vmem:[%s1 + $0x70] sm:$0xff]
        %v285 = vld [vmem:[%s1 + $0x78] sm:$0xff]
        %v286 = vld [vmem:[%s1 + $0x80] sm:$0xff]
        %v287 = vld [vmem:[%s1 + $0x88] sm:$0xff]
        %v288 = vld [vmem:[%s1 + $0x90] sm:$0xff]
        %v289 = vld [vmem:[%s1 + $0x98] sm:$0xff]
        %v290 = vld [vmem:[%s1 + $0xa0] sm:$0xff]
        %v291 = vld [vmem:[%s1 + $0xa8] sm:$0xff]
        %v292 = vld [vmem:[%s1 + $0xb0] sm:$0xff]
        %v293 = vld [vmem:[%s1 + $0xb8] sm:$0xff]
        %v294 = vld [vmem:[%s1 + $0xc0] sm:$0xff]
        %v295 = vld [vmem:[%s1 + $0xc8] sm:$0xff]
        %v296 = vld [vmem:[%s1 + $0xd0] sm:$0xff]
        %v297 = vld [vmem:[%s1 + $0xd8] sm:$0xff]
        %v298 = vld [vmem:[%s1 + $0xe0] sm:$0xff]
        %v299 = vld [vmem:[%s1 + $0xe8] sm:$0xff]
        %v300 = vld [vmem:[%s1 + $0xf0] sm:$0xff]
        %v301 = vld [vmem:[%s1 + $0xf8] sm:$0xff]
        %v302 = vld [vmem:[%s1 + $0x100] sm:$0xff]
        %v303 = vld [vmem:[%s1 + $0x108] sm:$0xff]
        %v304 = vld [vmem:[%s1 + $0x110] sm:$0xff]
        %v305 = vld [vmem:[%s1 + $0x118] sm:$0xff]
        %v306 = vld [vmem:[%s1 + $0x120] sm:$0xff]
        %v307 = vld [vmem:[%s1 + $0x128] sm:$0xff]
        %v308 = vld [vmem:[%s1 + $0x130] sm:$0xff]
        %v309 = vld [vmem:[%s1 + $0x138] sm:$0xff]
        %v310 = vld [vmem:[%s1 + $0x140] sm:$0xff]
        %v311 = vld [vmem:[%s1 + $0x148] sm:$0xff]
        %v312 = vld [vmem:[%s1 + $0x150] sm:$0xff]
        %v313 = vld [vmem:[%s1 + $0x158] sm:$0xff]
        %v314 = vld [vmem:[%s1 + $0x160] sm:$0xff]
        %v315 = vld [vmem:[%s1 + $0x168] sm:$0xff]
        %v316 = vld [vmem:[%s1 + $0x170] sm:$0xff]
        %v317 = vld [vmem:[%s1 + $0x178] sm:$0xff]
        %v318 = vld [vmem:[%s1 + $0x180] sm:$0xff]
        %v319 = vld [vmem:[%s1 + $0x188] sm:$0xff]
        %v320 = vld [vmem:[%s1 + $0x190] sm:$0xff]
        %v321 = vld [vmem:[%s1 + $0x198] sm:$0xff]
        %v322 = vld [vmem:[%s1 + $0x1a0] sm:$0xff]
        %v323 = vld [vmem:[%s1 + $0x1a8] sm:$0xff]
        %v324 = vld [vmem:[%s1 + $0x1b0] sm:$0xff]
        %v325 = vld [vmem:[%s1 + $0x1b8] sm:$0xff]
        %v326 = vld [vmem:[%s1 + $0x1c0] sm:$0xff]
        %v327 = vld [vmem:[%s1 + $0x1c8] sm:$0xff]
        %v328 = vld [vmem:[%s1 + $0x1d0] sm:$0xff]
        %v329 = vld [vmem:[%s1 + $0x1d8] sm:$0xff]
        %v330 = vld [vmem:[%s1 + $0x1e0] sm:$0xff]
        %v331 = vld [vmem:[%s1 + $0x1e8] sm:$0xff]
        %v332 = vld [vmem:[%s1 + $0x1f0] sm:$0xff]
        %v333 = vld [vmem:[%s1 + $0x1f8] sm:$0xff]
        %v334 = vld [vmem:[%s1 + $0x200] sm:$0xff]
        %v335 = vld [vmem:[%s1 + $0x208] sm:$0xff]
        %v336 = vld [vmem:[%s1 + $0x210] sm:$0xff]
        %v337 = vld [vmem:[%s1 + $0x218] sm:$0xff]
        %v338 = vld [vmem:[%s1 + $0x220] sm:$0xff]
        %v339 = vld [vmem:[%s1 + $0x228] sm:$0xff]
        %v340 = vld [vmem:[%s1 + $0x230] sm:$0xff]
        %v341 = vld [vmem:[%s1 + $0x238] sm:$0xff]
        %v342 = vld [vmem:[%s1 + $0x240] sm:$0xff]
        %v343 = vld [vmem:[%s1 + $0x248] sm:$0xff]
        %v344 = vld [vmem:[%s1 + $0x250] sm:$0xff]
        %v345 = vld [vmem:[%s1 + $0x258] sm:$0xff]
        %v346 = vld [vmem:[%s1 + $0x260] sm:$0xff]
        %v347 = vld [vmem:[%s1 + $0x268] sm:$0xff]
        %v348 = vld [vmem:[%s1 + $0x270] sm:$0xff]
        %v349 = vld [vmem:[%s1 + $0x278] sm:$0xff]
        %v350 = vld [vmem:[%s1 + $0x280] sm:$0xff]
        %v351 = vld [vmem:[%s1 + $0x288] sm:$0xff]
        %v352 = vld [vmem:[%s1 + $0x290] sm:$0xff]
        %v353 = vld [vmem:[%s1 + $0x298] sm:$0xff]
        %v354 = vld [vmem:[%s1 + $0x2a0] sm:$0xff]
        %v355 = vld [vmem:[%s1 + $0x2a8] sm:$0xff]
        %v356 = vld [vmem:[%s1 + $0x2b0] sm:$0xff]
        %v357 = vld [vmem:[%s1 + $0x2b8] sm:$0xff]
        %v358 = vld [vmem:[%s1 + $0x2c0] sm:$0xff]
        %v359 = vld [vmem:[%s1 + $0x2c8] sm:$0xff]
        %v360 = vld [vmem:[%s1 + $0x2d0] sm:$0xff]
        %v361 = vld [vmem:[%s1 + $0x2d8] sm:$0xff]
        %v362 = vld [vmem:[%s1 + $0x2e0] sm:$0xff]
        %v363 = vld [vmem:[%s1 + $0x2e8] sm:$0xff]
        %v364 = vld [vmem:[%s1 + $0x2f0] sm:$0xff]
        %v365 = vld [vmem:[%s1 + $0x2f8] sm:$0xff]
        %366 = vmatpush.msra.mxu0 %v285
        %367 = vmatpush.msra.mxu0 %v284
        %368 = vmatpush.msra.mxu0 %v283
        %369 = vmatpush.msra.mxu0 %v282
        %370 = vmatpush.msra.mxu0 %v281
        %371 = vmatpush.msra.mxu0 %v280
        %372 = vmatpush.msra.mxu0 %v279
        %373 = vmatpush.msra.mxu0 %v278
        %374 = vmatpush.msra.mxu0 %v277
        %375 = vmatpush.msra.mxu0 %v276
        %376 = vmatpush.msra.mxu0 %v275
        %377 = vmatpush.msra.mxu0 %v274
        %378 = vmatpush.msra.mxu0 %v273
        %379 = vmatpush.msra.mxu0 %v272
        %380 = vmatpush.msra.mxu0 %v271
        %381 = vmatpush.msra.mxu0 %v270
        %382 = vmatmul.f32.gmra.mxu0 %v215
        %v383 = vpop.f32.mrf.mxu0
        %v384 = vadd.f32 0.0, %v383
        %385 = vmatmul.f32.gmra.mxu0 %v216
        %v386 = vpop.f32.mrf.mxu0
        %v387 = vadd.f32 0.0, %v386
        %388 = vmatmul.f32.gmra.mxu0 %v217
        %v389 = vpop.f32.mrf.mxu0
        %v390 = vadd.f32 0.0, %v389
        %391 = vdwg.mxu0
        %392 = vmatpush.msra.mxu0 %v301
        %393 = vmatpush.msra.mxu0 %v300
        %394 = vmatpush.msra.mxu0 %v299
        %395 = vmatpush.msra.mxu0 %v298
        %396 = vmatpush.msra.mxu0 %v297
        %397 = vmatpush.msra.mxu0 %v296
        %398 = vmatpush.msra.mxu0 %v295
        %399 = vmatpush.msra.mxu0 %v294
        %400 = vmatpush.msra.mxu0 %v293
        %401 = vmatpush.msra.mxu0 %v292
        %402 = vmatpush.msra.mxu0 %v291
        %403 = vmatpush.msra.mxu0 %v290
        %404 = vmatpush.msra.mxu0 %v289
        %405 = vmatpush.msra.mxu0 %v288
        %406 = vmatpush.msra.mxu0 %v287
        %407 = vmatpush.msra.mxu0 %v286
        %408 = vmatmul.f32.gmra.mxu0 %v242
        %v409 = vpop.f32.mrf.mxu0
        %v410 = vadd.f32 %v384, %v409
        %411 = vmatmul.f32.gmra.mxu0 %v244
        %v412 = vpop.f32.mrf.mxu0
        %v413 = vadd.f32 %v387, %v412
        %414 = vmatmul.f32.gmra.mxu0 %v243
        %v415 = vpop.f32.mrf.mxu0
        %v416 = vadd.f32 %v390, %v415
        %417 = vdwg.mxu0
        %418 = vmatpush.msra.mxu0 %v317
        %419 = vmatpush.msra.mxu0 %v316
        %420 = vmatpush.msra.mxu0 %v315
        %421 = vmatpush.msra.mxu0 %v314
        %422 = vmatpush.msra.mxu0 %v313
        %423 = vmatpush.msra.mxu0 %v312
        %424 = vmatpush.msra.mxu0 %v311
        %425 = vmatpush.msra.mxu0 %v310
        %426 = vmatpush.msra.mxu0 %v309
        %427 = vmatpush.msra.mxu0 %v308
        %428 = vmatpush.msra.mxu0 %v307
        %429 = vmatpush.msra.mxu0 %v306
        %430 = vmatpush.msra.mxu0 %v305
        %431 = vmatpush.msra.mxu0 %v304
        %432 = vmatpush.msra.mxu0 %v303
        %433 = vmatpush.msra.mxu0 %v302
        %434 = vmatmul.f32.gmra.mxu0 %v221
        %v435 = vpop.f32.mrf.mxu0
        %v436 = vadd.f32 %v410, %v435
        %437 = vmatmul.f32.gmra.mxu0 %v222
        %v438 = vpop.f32.mrf.mxu0
        %v439 = vadd.f32 %v413, %v438
        %440 = vmatmul.f32.gmra.mxu0 %v223
        %v441 = vpop.f32.mrf.mxu0
        %v442 = vadd.f32 %v416, %v441
        %443 = vdwg.mxu0
        %444 = vmatpush.msra.mxu0 %v333
        %445 = vmatpush.msra.mxu0 %v332
        %446 = vmatpush.msra.mxu0 %v331
        %447 = vmatpush.msra.mxu0 %v330
        %448 = vmatpush.msra.mxu0 %v329
        %449 = vmatpush.msra.mxu0 %v328
        %450 = vmatpush.msra.mxu0 %v327
        %451 = vmatpush.msra.mxu0 %v326
        %452 = vmatpush.msra.mxu0 %v325
        %453 = vmatpush.msra.mxu0 %v324
        %454 = vmatpush.msra.mxu0 %v323
        %455 = vmatpush.msra.mxu0 %v322
        %456 = vmatpush.msra.mxu0 %v321
        %457 = vmatpush.msra.mxu0 %v320
        %458 = vmatpush.msra.mxu0 %v319
        %459 = vmatpush.msra.mxu0 %v318
        %460 = vmatmul.f32.gmra.mxu0 %v253
        %v461 = vpop.f32.mrf.mxu0
        %v462 = vadd.f32 %v436, %v461
        %463 = vmatmul.f32.gmra.mxu0 %v255
        %v464 = vpop.f32.mrf.mxu0
        %v465 = vadd.f32 %v439, %v464
        %466 = vmatmul.f32.gmra.mxu0 %v254
        %v467 = vpop.f32.mrf.mxu0
        %v468 = vadd.f32 %v442, %v467
        %469 = vdwg.mxu0
        %470 = vmatpush.msra.mxu0 %v349
        %471 = vmatpush.msra.mxu0 %v348
        %472 = vmatpush.msra.mxu0 %v347
        %473 = vmatpush.msra.mxu0 %v346
        %474 = vmatpush.msra.mxu0 %v345
        %475 = vmatpush.msra.mxu0 %v344
        %476 = vmatpush.msra.mxu0 %v343
        %477 = vmatpush.msra.mxu0 %v342
        %478 = vmatpush.msra.mxu0 %v341
        %479 = vmatpush.msra.mxu0 %v340
        %480 = vmatpush.msra.mxu0 %v339
        %481 = vmatpush.msra.mxu0 %v338
        %482 = vmatpush.msra.mxu0 %v337
        %483 = vmatpush.msra.mxu0 %v336
        %484 = vmatpush.msra.mxu0 %v335
        %485 = vmatpush.msra.mxu0 %v334
        %486 = vmatmul.f32.gmra.mxu0 %v227
        %v487 = vpop.f32.mrf.mxu0
        %v488 = vadd.f32 %v462, %v487
        %489 = vmatmul.f32.gmra.mxu0 %v228
        %v490 = vpop.f32.mrf.mxu0
        %v491 = vadd.f32 %v465, %v490
        %492 = vmatmul.f32.gmra.mxu0 %v229
        %v493 = vpop.f32.mrf.mxu0
        %v494 = vadd.f32 %v468, %v493
        %495 = vdwg.mxu0
        %496 = vmatpush.msra.mxu0 %v365
        %497 = vmatpush.msra.mxu0 %v364
        %498 = vmatpush.msra.mxu0 %v363
        %499 = vmatpush.msra.mxu0 %v362
        %500 = vmatpush.msra.mxu0 %v361
        %501 = vmatpush.msra.mxu0 %v360
        %502 = vmatpush.msra.mxu0 %v359
        %503 = vmatpush.msra.mxu0 %v358
        %504 = vmatpush.msra.mxu0 %v357
        %505 = vmatpush.msra.mxu0 %v356
        %506 = vmatpush.msra.mxu0 %v355
        %507 = vmatpush.msra.mxu0 %v354
        %508 = vmatpush.msra.mxu0 %v353
        %509 = vmatpush.msra.mxu0 %v352
        %510 = vmatpush.msra.mxu0 %v351
        %511 = vmatpush.msra.mxu0 %v350
        %512 = vmatmul.f32.gmra.mxu0 %v264
        %v513 = vpop.f32.mrf.mxu0
        %v514 = vadd.f32 %v488, %v513
        %515 = vmatmul.f32.gmra.mxu0 %v266
        %v516 = vpop.f32.mrf.mxu0
        %v517 = vadd.f32 %v491, %v516
        %518 = vmatmul.f32.gmra.mxu0 %v265
        %v519 = vpop.f32.mrf.mxu0
        %v520 = vadd.f32 %v494, %v519
        %521 = vdwg.mxu0
        %v522 = vmul.f32 %v514, %v200
        %v523 = vmul.f32 %v517, %v200
        %v524 = vmul.f32 %v520, %v200
        %v525 = vadd.f32 %v522, %v204
        %v526 = vadd.f32 %v523, %v204
        %v527 = vadd.f32 %v524, %v204
        %v531 = vrot.slane %v233, 1
        %v532 = vrot.slane %v234, 1
        %v533 = vsel %vm239, %v531, %v532
        %v534 = vrot.slane %v235, 1
        %v535 = vsel %vm239, %v532, %v534
        %539 = vmatpush.msra.mxu0 %v285
        %540 = vmatpush.msra.mxu0 %v284
        %541 = vmatpush.msra.mxu0 %v283
        %542 = vmatpush.msra.mxu0 %v282
        %543 = vmatpush.msra.mxu0 %v281
        %544 = vmatpush.msra.mxu0 %v280
        %545 = vmatpush.msra.mxu0 %v279
        %546 = vmatpush.msra.mxu0 %v278
        %547 = vmatpush.msra.mxu0 %v277
        %548 = vmatpush.msra.mxu0 %v276
        %549 = vmatpush.msra.mxu0 %v275
        %550 = vmatpush.msra.mxu0 %v274
        %551 = vmatpush.msra.mxu0 %v273
        %552 = vmatpush.msra.mxu0 %v272
        %553 = vmatpush.msra.mxu0 %v271
        %554 = vmatpush.msra.mxu0 %v270
        %555 = vmatmul.f32.gmra.mxu0 %v221
        %v556 = vpop.f32.mrf.mxu0
        %v557 = vadd.f32 0.0, %v556
        %558 = vmatmul.f32.gmra.mxu0 %v222
        %v559 = vpop.f32.mrf.mxu0
        %v560 = vadd.f32 0.0, %v559
        %561 = vmatmul.f32.gmra.mxu0 %v223
        %v562 = vpop.f32.mrf.mxu0
        %v563 = vadd.f32 0.0, %v562
        %564 = vdwg.mxu0
        %565 = vmatpush.msra.mxu0 %v301
        %566 = vmatpush.msra.mxu0 %v300
        %567 = vmatpush.msra.mxu0 %v299
        %568 = vmatpush.msra.mxu0 %v298
        %569 = vmatpush.msra.mxu0 %v297
        %570 = vmatpush.msra.mxu0 %v296
        %571 = vmatpush.msra.mxu0 %v295
        %572 = vmatpush.msra.mxu0 %v294
        %573 = vmatpush.msra.mxu0 %v293
        %574 = vmatpush.msra.mxu0 %v292
        %575 = vmatpush.msra.mxu0 %v291
        %576 = vmatpush.msra.mxu0 %v290
        %577 = vmatpush.msra.mxu0 %v289
        %578 = vmatpush.msra.mxu0 %v288
        %579 = vmatpush.msra.mxu0 %v287
        %580 = vmatpush.msra.mxu0 %v286
        %581 = vmatmul.f32.gmra.mxu0 %v253
        %v582 = vpop.f32.mrf.mxu0
        %v583 = vadd.f32 %v557, %v582
        %584 = vmatmul.f32.gmra.mxu0 %v255
        %v585 = vpop.f32.mrf.mxu0
        %v586 = vadd.f32 %v560, %v585
        %587 = vmatmul.f32.gmra.mxu0 %v254
        %v588 = vpop.f32.mrf.mxu0
        %v589 = vadd.f32 %v563, %v588
        %590 = vdwg.mxu0
        %591 = vmatpush.msra.mxu0 %v317
        %592 = vmatpush.msra.mxu0 %v316
        %593 = vmatpush.msra.mxu0 %v315
        %594 = vmatpush.msra.mxu0 %v314
        %595 = vmatpush.msra.mxu0 %v313
        %596 = vmatpush.msra.mxu0 %v312
        %597 = vmatpush.msra.mxu0 %v311
        %598 = vmatpush.msra.mxu0 %v310
        %599 = vmatpush.msra.mxu0 %v309
        %600 = vmatpush.msra.mxu0 %v308
        %601 = vmatpush.msra.mxu0 %v307
        %602 = vmatpush.msra.mxu0 %v306
        %603 = vmatpush.msra.mxu0 %v305
        %604 = vmatpush.msra.mxu0 %v304
        %605 = vmatpush.msra.mxu0 %v303
        %606 = vmatpush.msra.mxu0 %v302
        %607 = vmatmul.f32.gmra.mxu0 %v227
        %v608 = vpop.f32.mrf.mxu0
        %v609 = vadd.f32 %v583, %v608
        %610 = vmatmul.f32.gmra.mxu0 %v228
        %v611 = vpop.f32.mrf.mxu0
        %v612 = vadd.f32 %v586, %v611
        %613 = vmatmul.f32.gmra.mxu0 %v229
        %v614 = vpop.f32.mrf.mxu0
        %v615 = vadd.f32 %v589, %v614
        %616 = vdwg.mxu0
        %617 = vmatpush.msra.mxu0 %v333
        %618 = vmatpush.msra.mxu0 %v332
        %619 = vmatpush.msra.mxu0 %v331
        %620 = vmatpush.msra.mxu0 %v330
        %621 = vmatpush.msra.mxu0 %v329
        %622 = vmatpush.msra.mxu0 %v328
        %623 = vmatpush.msra.mxu0 %v327
        %624 = vmatpush.msra.mxu0 %v326
        %625 = vmatpush.msra.mxu0 %v325
        %626 = vmatpush.msra.mxu0 %v324
        %627 = vmatpush.msra.mxu0 %v323
        %628 = vmatpush.msra.mxu0 %v322
        %629 = vmatpush.msra.mxu0 %v321
        %630 = vmatpush.msra.mxu0 %v320
        %631 = vmatpush.msra.mxu0 %v319
        %632 = vmatpush.msra.mxu0 %v318
        %633 = vmatmul.f32.gmra.mxu0 %v264
        %v634 = vpop.f32.mrf.mxu0
        %v635 = vadd.f32 %v609, %v634
        %636 = vmatmul.f32.gmra.mxu0 %v266
        %v637 = vpop.f32.mrf.mxu0
        %v638 = vadd.f32 %v612, %v637
        %639 = vmatmul.f32.gmra.mxu0 %v265
        %v640 = vpop.f32.mrf.mxu0
        %v641 = vadd.f32 %v615, %v640
        %642 = vdwg.mxu0
        %643 = vmatpush.msra.mxu0 %v349
        %644 = vmatpush.msra.mxu0 %v348
        %645 = vmatpush.msra.mxu0 %v347
        %646 = vmatpush.msra.mxu0 %v346
        %647 = vmatpush.msra.mxu0 %v345
        %648 = vmatpush.msra.mxu0 %v344
        %649 = vmatpush.msra.mxu0 %v343
        %650 = vmatpush.msra.mxu0 %v342
        %651 = vmatpush.msra.mxu0 %v341
        %652 = vmatpush.msra.mxu0 %v340
        %653 = vmatpush.msra.mxu0 %v339
        %654 = vmatpush.msra.mxu0 %v338
        %655 = vmatpush.msra.mxu0 %v337
        %656 = vmatpush.msra.mxu0 %v336
        %657 = vmatpush.msra.mxu0 %v335
        %658 = vmatpush.msra.mxu0 %v334
        %659 = vmatmul.f32.gmra.mxu0 %v233
        %v660 = vpop.f32.mrf.mxu0
        %v661 = vadd.f32 %v635, %v660
        %662 = vmatmul.f32.gmra.mxu0 %v234
        %v663 = vpop.f32.mrf.mxu0
        %v664 = vadd.f32 %v638, %v663
        %665 = vmatmul.f32.gmra.mxu0 %v235
        %v666 = vpop.f32.mrf.mxu0
        %v667 = vadd.f32 %v641, %v666
        %668 = vdwg.mxu0
        %669 = vmatpush.msra.mxu0 %v365
        %670 = vmatpush.msra.mxu0 %v364
        %671 = vmatpush.msra.mxu0 %v363
        %672 = vmatpush.msra.mxu0 %v362
        %673 = vmatpush.msra.mxu0 %v361
        %674 = vmatpush.msra.mxu0 %v360
        %675 = vmatpush.msra.mxu0 %v359
        %676 = vmatpush.msra.mxu0 %v358
        %677 = vmatpush.msra.mxu0 %v357
        %678 = vmatpush.msra.mxu0 %v356
        %679 = vmatpush.msra.mxu0 %v355
        %680 = vmatpush.msra.mxu0 %v354
        %681 = vmatpush.msra.mxu0 %v353
        %682 = vmatpush.msra.mxu0 %v352
        %683 = vmatpush.msra.mxu0 %v351
        %684 = vmatpush.msra.mxu0 %v350
        %685 = vmatmul.f32.gmra.mxu0 %v533
        %v686 = vpop.f32.mrf.mxu0
        %v687 = vadd.f32 %v661, %v686
        %688 = vmatmul.f32.gmra.mxu0 %v535
        %v689 = vpop.f32.mrf.mxu0
        %v690 = vadd.f32 %v664, %v689
        %691 = vmatmul.f32.gmra.mxu0 %v534
        %v692 = vpop.f32.mrf.mxu0
        %v693 = vadd.f32 %v667, %v692
        %694 = vdwg.mxu0
        %v695 = vmul.f32 %v687, %v200
        %v696 = vmul.f32 %v690, %v200
        %v697 = vmul.f32 %v693, %v200
        %v698 = vadd.f32 %v695, %v204
        %v699 = vadd.f32 %v696, %v204
        %v700 = vadd.f32 %v697, %v204
        %v701 = vmax.f32 %v525, %v698
        %v702 = vmax.f32 %v526, %v699
        %v703 = vmax.f32 %v527, %v700
        %v704 = vmax.f32 %v701, 0.0
        %v705 = vmax.f32 %v702, 0.0
        %v706 = vmax.f32 %v703, 0.0
        %710 = vrot.lane.b32.xlu0 %v704, 64
        %v711 = vpop.permute.xlu0 %710
        %712 = vrot.lane.b32.xlu0 %v705, 64
        %v713 = vpop.permute.xlu0 %712
        %714 = vrot.lane.b32.xlu0 %v706, 64
        %v715 = vpop.permute.xlu0 %714
        %v719 = vmax.f32 %v704, %v711
        %v720 = vmax.f32 %v705, %v713
        %v721 = vmax.f32 %v706, %v715
        %s722 = smul.u32 %s207, 24
        %s723 = scalar_lea.vmem %s197, %s722
        %vm724 = vcmask 523264
        %725 = vst.msk [vmem:[%s723] sm:$0xff] %vm724, %v719
        %726 = vst.msk [vmem:[%s723 + $0x8] sm:$0xff] %vm724, %v720
        %vm727 = vcmask 518144
        %728 = vst.msk [vmem:[%s723 + $0x10] sm:$0x7] %vm727, %v721
      $region41: #{cnn_encoder_forward.5} parent=35 // loop_footer
        %s211 = sadd.s32 1, %s207
      $region42: #{cnn_encoder_forward.5} parent=35 // loop_footer_branch
        %206 = sbr.rel target = $region38
      $region43: #{cnn_encoder_forward.5} parent=35 // loop_exit
        _
      %p729 = scmp.lt.s32.totalorder %s15, 1
      %s730 = scalar_select %p729, %s15, 1
      %s731 = smul.addr %s730, 57
      %s732 = smul.addr %s731, 8
      %s733 = scalar_lea.vmem %s4, %s732
      // Predicated region
      $region44: #{cnn_encoder_forward.5} parent=35 // pred_check
        %p734 = pneg %p122
      $region45: #{cnn_encoder_forward.5} parent=35 // pred_check_branch
        %736 = sbr.rel (%p734) target = $region47
      $region46: #{cnn_encoder_forward.5} parent=35 // pred_region
        _
      $region47: #{cnn_encoder_forward.5} parent=35 // pred_fallthru
        _
    $region36: #{cnn_encoder_forward.5} parent=5 // pred_fallthru
      _
    %p737 = scmp.le.s32.totalorder 2, %s10
    // Predicated region
    $region48: #{cnn_encoder_forward.5} parent=5 // pred_check
      %p738 = pneg %p737
    $region49: #{cnn_encoder_forward.5} parent=5 // pred_check_branch
      %740 = sbr.rel (%p738) target = $region51
    $region50: #{cnn_encoder_forward.5} parent=5 // pred_region
      %s741 = ssub.s32 %s10, 2
      // Predicated region
      $region52: #{cnn_encoder_forward.5} parent=50 // pred_check
        %p742 = pneg %p128
      $region53: #{cnn_encoder_forward.5} parent=50 // pred_check_branch
        %744 = sbr.rel (%p742) target = $region55
      $region54: #{cnn_encoder_forward.5} parent=50 // pred_region
        %p745 = scmp.lt.s32.totalorder %s16, 1
        %s746 = scalar_select %p745, %s16, 1
        %s747 = smul.addr %s746, 57
        %s748 = smul.addr %s747, 8
        %s749 = scalar_lea.vmem %s4, %s748
      $region55: #{cnn_encoder_forward.5} parent=50 // pred_fallthru
        _
    $region51: #{cnn_encoder_forward.5} parent=5 // pred_fallthru
      _
  $region6: #{cnn_encoder_forward.5} parent=0 // loop_footer
    %s14 = sadd.s32 1, %s10
  $region7: #{cnn_encoder_forward.5} parent=0 // loop_footer_branch
    %9 = sbr.rel target = $region3
  $region8: #{cnn_encoder_forward.5} parent=0 // loop_exit
    _

// kernel: squeeze.49
$region0: #{squeeze.49}
  %s0 = inlined_call_operand.vmem [shape: f32[1024], index: 0, kind: input, shape index: {}]
  %s1 = inlined_call_operand.vmem [shape: f32[64,4,4], index: 1, kind: output, shape index: {}]
  $region1: #{squeeze.49} parent=0
    #allocation0 [shape = 'u8[262144]{0}', space=vmem, size = 0x40000, scoped, tag = 'scoped mem for output reshape']
    %v2 = vld [vmem:[%s0] sm:$0xff]
    %vm3 = vcmask 31744
    %4 = vst.msk [vmem:[#allocation0] sm:$0x1] %vm3, %v2
    %s5 = scalar_lea.vmem [#allocation0], 63
    %6 = vst.msk [vmem:[%s5] sm:$0x2] %vm3, %v2
    %s7 = scalar_lea.vmem [#allocation0], 126
    %8 = vst.msk [vmem:[%s7] sm:$0x4] %vm3, %v2
    %s9 = scalar_lea.vmem [#allocation0], 189
    %10 = vst.msk [vmem:[%s9] sm:$0x8] %vm3, %v2
    %s11 = scalar_lea.vmem [#allocation0], 252
    %12 = vst.msk [vmem:[%s11] sm:$0x10] %vm3, %v2
    %s13 = scalar_lea.vmem [#allocation0], 315
    %14 = vst.msk [vmem:[%s13] sm:$0x20] %vm3, %v2
    %s15 = scalar_lea.vmem [#allocation0], 378
    %16 = vst.msk [vmem:[%s15] sm:$0x40] %vm3, %v2
    %s17 = scalar_lea.vmem [#allocation0], 441
    %18 = vst.msk [vmem:[%s17] sm:$0x80] %vm3, %v2
    %v19 = vld [vmem:[%s0] sm:$0xff]
    %20 = vrot.lane.b32.xlu0 %v19, 124
    %v21 = vpop.permute.xlu0 %20
    %vm22 = vcmask 31744
    %s23 = scalar_lea.vmem [#allocation0], 1
    %24 = vst.msk [vmem:[%s23] sm:$0x1] %vm22, %v21
    %s25 = scalar_lea.vmem [#allocation0], 64
    %26 = vst.msk [vmem:[%s25] sm:$0x2] %vm22, %v21
    %s27 = scalar_lea.vmem [#allocation0], 127
    %28 = vst.msk [vmem:[%s27] sm:$0x4] %vm22, %v21
    %s29 = scalar_lea.vmem [#allocation0], 190
    %30 = vst.msk [vmem:[%s29] sm:$0x8] %vm22, %v21
    %s31 = scalar_lea.vmem [#allocation0], 253
    %32 = vst.msk [vmem:[%s31] sm:$0x10] %vm22, %v21
    %s33 = scalar_lea.vmem [#allocation0], 316
    %34 = vst.msk [vmem:[%s33] sm:$0x20] %vm22, %v21
    %s35 = scalar_lea.vmem [#allocation0], 379
    %36 = vst.msk [vmem:[%s35] sm:$0x40] %vm22, %v21
    %s37 = scalar_lea.vmem [#allocation0], 442
    %38 = vst.msk [vmem:[%s37] sm:$0x80] %vm22, %v21
    %v39 = vld [vmem:[%s0] sm:$0xff]
    %40 = vrot.lane.b32.xlu0 %v39, 120
    %v41 = vpop.permute.xlu0 %40
    %vm42 = vcmask 31744
    %s43 = scalar_lea.vmem [#allocation0], 2
    %44 = vst.msk [vmem:[%s43] sm:$0x1] %vm42, %v41
    %s45 = scalar_lea.vmem [#allocation0], 65
    %46 = vst.msk [vmem:[%s45] sm:$0x2] %vm42, %v41
    %s47 = scalar_lea.vmem [#allocation0], 128
    %48 = vst.msk [vmem:[%s47] sm:$0x4] %vm42, %v41
    %s49 = scalar_lea.vmem [#allocation0], 191
    %50 = vst.msk [vmem:[%s49] sm:$0x8] %vm42, %v41
    %s51 = scalar_lea.vmem [#allocation0], 254
    %52 = vst.msk [vmem:[%s51] sm:$0x10] %vm42, %v41
    %s53 = scalar_lea.vmem [#allocation0], 317
    %54 = vst.msk [vmem:[%s53] sm:$0x20] %vm42, %v41
    %s55 = scalar_lea.vmem [#allocation0], 380
    %56 = vst.msk [vmem:[%s55] sm:$0x40] %vm42, %v41
    %s57 = scalar_lea.vmem [#allocation0], 443
    %58 = vst.msk [vmem:[%s57] sm:$0x80] %vm42, %v41
    %v59 = vld [vmem:[%s0] sm:$0xff]
    %60 = vrot.lane.b32.xlu0 %v59, 116
    %v61 = vpop.permute.xlu0 %60
    %vm62 = vcmask 31744
    %s63 = scalar_lea.vmem [#allocation0], 3
    %64 = vst.msk [vmem:[%s63] sm:$0x1] %vm62, %v61
    %s65 = scalar_lea.vmem [#allocation0], 66
    %66 = vst.msk [vmem:[%s65] sm:$0x2] %vm62, %v61
    %s67 = scalar_lea.vmem [#allocation0], 129
    %68 = vst.msk [vmem:[%s67] sm:$0x4] %vm62, %v61
    %s69 = scalar_lea.vmem [#allocation0], 192
    %70 = vst.msk [vmem:[%s69] sm:$0x8] %vm62, %v61
    %s71 = scalar_lea.vmem [#allocation0], 255
    %72 = vst.msk [vmem:[%s71] sm:$0x10] %vm62, %v61
    %s73 = scalar_lea.vmem [#allocation0], 318
    %74 = vst.msk [vmem:[%s73] sm:$0x20] %vm62, %v61
    %s75 = scalar_lea.vmem [#allocation0], 381
    %76 = vst.msk [vmem:[%s75] sm:$0x40] %vm62, %v61
    %s77 = scalar_lea.vmem [#allocation0], 444
    %78 = vst.msk [vmem:[%s77] sm:$0x80] %vm62, %v61
    %v79 = vld [vmem:[%s0] sm:$0xff]
    %80 = vrot.lane.b32.xlu0 %v79, 112
    %v81 = vpop.permute.xlu0 %80
    %vm82 = vcmask 31744
    %s83 = scalar_lea.vmem [#allocation0], 8
    %84 = vst.msk [vmem:[%s83] sm:$0x1] %vm82, %v81
    %s85 = scalar_lea.vmem [#allocation0], 71
    %86 = vst.msk [vmem:[%s85] sm:$0x2] %vm82, %v81
    %s87 = scalar_lea.vmem [#allocation0], 134
    %88 = vst.msk [vmem:[%s87] sm:$0x4] %vm82, %v81
    %s89 = scalar_lea.vmem [#allocation0], 197
    %90 = vst.msk [vmem:[%s89] sm:$0x8] %vm82, %v81
    %s91 = scalar_lea.vmem [#allocation0], 260
    %92 = vst.msk [vmem:[%s91] sm:$0x10] %vm82, %v81
    %s93 = scalar_lea.vmem [#allocation0], 323
    %94 = vst.msk [vmem:[%s93] sm:$0x20] %vm82, %v81
    %s95 = scalar_lea.vmem [#allocation0], 386
    %96 = vst.msk [vmem:[%s95] sm:$0x40] %vm82, %v81
    %s97 = scalar_lea.vmem [#allocation0], 449
    %98 = vst.msk [vmem:[%s97] sm:$0x80] %vm82, %v81
    %v99 = vld [vmem:[%s0] sm:$0xff]
    %100 = vrot.lane.b32.xlu0 %v99, 108
    %v101 = vpop.permute.xlu0 %100
    %vm102 = vcmask 31744
    %s103 = scalar_lea.vmem [#allocation0], 9
    %104 = vst.msk [vmem:[%s103] sm:$0x1] %vm102, %v101
    %s105 = scalar_lea.vmem [#allocation0], 72
    %106 = vst.msk [vmem:[%s105] sm:$0x2] %vm102, %v101
    %s107 = scalar_lea.vmem [#allocation0], 135
    %108 = vst.msk [vmem:[%s107] sm:$0x4] %vm102, %v101
    %s109 = scalar_lea.vmem [#allocation0], 198
    %110 = vst.msk [vmem:[%s109] sm:$0x8] %vm102, %v101
    %s111 = scalar_lea.vmem [#allocation0], 261
    %112 = vst.msk [vmem:[%s111] sm:$0x10] %vm102, %v101
    %s113 = scalar_lea.vmem [#allocation0], 324
    %114 = vst.msk [vmem:[%s113] sm:$0x20] %vm102, %v101
    %s115 = scalar_lea.vmem [#allocation0], 387
    %116 = vst.msk [vmem:[%s115] sm:$0x40] %vm102, %v101
    %s117 = scalar_lea.vmem [#allocation0], 450
    %118 = vst.msk [vmem:[%s117] sm:$0x80] %vm102, %v101
    %v119 = vld [vmem:[%s0] sm:$0xff]
    %120 = vrot.lane.b32.xlu0 %v119, 104
    %v121 = vpop.permute.xlu0 %120
    %vm122 = vcmask 31744
    %s123 = scalar_lea.vmem [#allocation0], 10
    %124 = vst.msk [vmem:[%s123] sm:$0x1] %vm122, %v121
    %s125 = scalar_lea.vmem [#allocation0], 73
    %126 = vst.msk [vmem:[%s125] sm:$0x2] %vm122, %v121
    %s127 = scalar_lea.vmem [#allocation0], 136
    %128 = vst.msk [vmem:[%s127] sm:$0x4] %vm122, %v121
    %s129 = scalar_lea.vmem [#allocation0], 199
    %130 = vst.msk [vmem:[%s129] sm:$0x8] %vm122, %v121
    %s131 = scalar_lea.vmem [#allocation0], 262
    %132 = vst.msk [vmem:[%s131] sm:$0x10] %vm122, %v121
    %s133 = scalar_lea.vmem [#allocation0], 325
    %134 = vst.msk [vmem:[%s133] sm:$0x20] %vm122, %v121
    %s135 = scalar_lea.vmem [#allocation0], 388
    %136 = vst.msk [vmem:[%s135] sm:$0x40] %vm122, %v121
    %s137 = scalar_lea.vmem [#allocation0], 451
    %138 = vst.msk [vmem:[%s137] sm:$0x80] %vm122, %v121
    %v139 = vld [vmem:[%s0] sm:$0xff]
    %140 = vrot.lane.b32.xlu0 %v139, 100
    %v141 = vpop.permute.xlu0 %140
    %vm142 = vcmask 31744
    %s143 = scalar_lea.vmem [#allocation0], 11
    %144 = vst.msk [vmem:[%s143] sm:$0x1] %vm142, %v141
    %s145 = scalar_lea.vmem [#allocation0], 74
    %146 = vst.msk [vmem:[%s145] sm:$0x2] %vm142, %v141
    %s147 = scalar_lea.vmem [#allocation0], 137
    %148 = vst.msk [vmem:[%s147] sm:$0x4] %vm142, %v141
    %s149 = scalar_lea.vmem [#allocation0], 200
    %150 = vst.msk [vmem:[%s149] sm:$0x8] %vm142, %v141
    %s151 = scalar_lea.vmem [#allocation0], 263
    %152 = vst.msk [vmem:[%s151] sm:$0x10] %vm142, %v141
    %s153 = scalar_lea.vmem [#allocation0], 326
    %154 = vst.msk [vmem:[%s153] sm:$0x20] %vm142, %v141
    %s155 = scalar_lea.vmem [#allocation0], 389
    %156 = vst.msk [vmem:[%s155] sm:$0x40] %vm142, %v141
    %s157 = scalar_lea.vmem [#allocation0], 452
    %158 = vst.msk [vmem:[%s157] sm:$0x80] %vm142, %v141
    %v159 = vld [vmem:[%s0] sm:$0xff]
    %160 = vrot.lane.b32.xlu0 %v159, 96
    %v161 = vpop.permute.xlu0 %160
    %vm162 = vcmask 31744
    %s163 = scalar_lea.vmem [#allocation0], 16
    %164 = vst.msk [vmem:[%s163] sm:$0x1] %vm162, %v161
    %s165 = scalar_lea.vmem [#allocation0], 79
    %166 = vst.msk [vmem:[%s165] sm:$0x2] %vm162, %v161
    %s167 = scalar_lea.vmem [#allocation0], 142
    %168 = vst.msk [vmem:[%s167] sm:$0x4] %vm162, %v161
    %s169 = scalar_lea.vmem [#allocation0], 205
    %170 = vst.msk [vmem:[%s169] sm:$0x8] %vm162, %v161
    %s171 = scalar_lea.vmem [#allocation0], 268
    %172 = vst.msk [vmem:[%s171] sm:$0x10] %vm162, %v161
    %s173 = scalar_lea.vmem [#allocation0], 331
    %174 = vst.msk [vmem:[%s173] sm:$0x20] %vm162, %v161
    %s175 = scalar_lea.vmem [#allocation0], 394
    %176 = vst.msk [vmem:[%s175] sm:$0x40] %vm162, %v161
    %s177 = scalar_lea.vmem [#allocation0], 457
    %178 = vst.msk [vmem:[%s177] sm:$0x80] %vm162, %v161
    %v179 = vld [vmem:[%s0] sm:$0xff]
    %180 = vrot.lane.b32.xlu0 %v179, 92
    %v181 = vpop.permute.xlu0 %180
    %vm182 = vcmask 31744
    %s183 = scalar_lea.vmem [#allocation0], 17
    %184 = vst.msk [vmem:[%s183] sm:$0x1] %vm182, %v181
    %s185 = scalar_lea.vmem [#allocation0], 80
    %186 = vst.msk [vmem:[%s185] sm:$0x2] %vm182, %v181
    %s187 = scalar_lea.vmem [#allocation0], 143
    %188 = vst.msk [vmem:[%s187] sm:$0x4] %vm182, %v181
    %s189 = scalar_lea.vmem [#allocation0], 206
    %190 = vst.msk [vmem:[%s189] sm:$0x8] %vm182, %v181
    %s191 = scalar_lea.vmem [#allocation0], 269
    %192 = vst.msk [vmem:[%s191] sm:$0x10] %vm182, %v181
    %s193 = scalar_lea.vmem [#allocation0], 332
    %194 = vst.msk [vmem:[%s193] sm:$0x20] %vm182, %v181
    %s195 = scalar_lea.vmem [#allocation0], 395
    %196 = vst.msk [vmem:[%s195] sm:$0x40] %vm182, %v181
    %s197 = scalar_lea.vmem [#allocation0], 458
    %198 = vst.msk [vmem:[%s197] sm:$0x80] %vm182, %v181
    %v199 = vld [vmem:[%s0] sm:$0xff]
    %200 = vrot.lane.b32.xlu0 %v199, 88
    %v201 = vpop.permute.xlu0 %200
    %vm202 = vcmask 31744
    %s203 = scalar_lea.vmem [#allocation0], 18
    %204 = vst.msk [vmem:[%s203] sm:$0x1] %vm202, %v201
    %s205 = scalar_lea.vmem [#allocation0], 81
    %206 = vst.msk [vmem:[%s205] sm:$0x2] %vm202, %v201
    %s207 = scalar_lea.vmem [#allocation0], 144
    %208 = vst.msk [vmem:[%s207] sm:$0x4] %vm202, %v201
    %s209 = scalar_lea.vmem [#allocation0], 207
    %210 = vst.msk [vmem:[%s209] sm:$0x8] %vm202, %v201
    %s211 = scalar_lea.vmem [#allocation0], 270
    %212 = vst.msk [vmem:[%s211] sm:$0x10] %vm202, %v201
    %s213 = scalar_lea.vmem [#allocation0], 333
    %214 = vst.msk [vmem:[%s213] sm:$0x20] %vm202, %v201
    %s215 = scalar_lea.vmem [#allocation0], 396
    %216 = vst.msk [vmem:[%s215] sm:$0x40] %vm202, %v201
    %s217 = scalar_lea.vmem [#allocation0], 459
    %218 = vst.msk [vmem:[%s217] sm:$0x80] %vm202, %v201
    %v219 = vld [vmem:[%s0] sm:$0xff]
    %220 = vrot.lane.b32.xlu0 %v219, 84
    %v221 = vpop.permute.xlu0 %220
    %vm222 = vcmask 31744
    %s223 = scalar_lea.vmem [#allocation0], 19
    %224 = vst.msk [vmem:[%s223] sm:$0x1] %vm222, %v221
    %s225 = scalar_lea.vmem [#allocation0], 82
    %226 = vst.msk [vmem:[%s225] sm:$0x2] %vm222, %v221
    %s227 = scalar_lea.vmem [#allocation0], 145
    %228 = vst.msk [vmem:[%s227] sm:$0x4] %vm222, %v221
    %s229 = scalar_lea.vmem [#allocation0], 208
    %230 = vst.msk [vmem:[%s229] sm:$0x8] %vm222, %v221
    %s231 = scalar_lea.vmem [#allocation0], 271
    %232 = vst.msk [vmem:[%s231] sm:$0x10] %vm222, %v221
    %s233 = scalar_lea.vmem [#allocation0], 334
    %234 = vst.msk [vmem:[%s233] sm:$0x20] %vm222, %v221
    %s235 = scalar_lea.vmem [#allocation0], 397
    %236 = vst.msk [vmem:[%s235] sm:$0x40] %vm222, %v221
    %s237 = scalar_lea.vmem [#allocation0], 460
    %238 = vst.msk [vmem:[%s237] sm:$0x80] %vm222, %v221
    %v239 = vld [vmem:[%s0] sm:$0xff]
    %240 = vrot.lane.b32.xlu0 %v239, 80
    %v241 = vpop.permute.xlu0 %240
    %vm242 = vcmask 31744
    %s243 = scalar_lea.vmem [#allocation0], 24
    %244 = vst.msk [vmem:[%s243] sm:$0x1] %vm242, %v241
    %s245 = scalar_lea.vmem [#allocation0], 87
    %246 = vst.msk [vmem:[%s245] sm:$0x2] %vm242, %v241
    %s247 = scalar_lea.vmem [#allocation0], 150
    %248 = vst.msk [vmem:[%s247] sm:$0x4] %vm242, %v241
    %s249 = scalar_lea.vmem [#allocation0], 213
    %250 = vst.msk [vmem:[%s249] sm:$0x8] %vm242, %v241
    %s251 = scalar_lea.vmem [#allocation0], 276
    %252 = vst.msk [vmem:[%s251] sm:$0x10] %vm242, %v241
    %s253 = scalar_lea.vmem [#allocation0], 339
    %254 = vst.msk [vmem:[%s253] sm:$0x20] %vm242, %v241
    %s255 = scalar_lea.vmem [#allocation0], 402
    %256 = vst.msk [vmem:[%s255] sm:$0x40] %vm242, %v241
    %s257 = scalar_lea.vmem [#allocation0], 465
    %258 = vst.msk [vmem:[%s257] sm:$0x80] %vm242, %v241
    %v259 = vld [vmem:[%s0] sm:$0xff]
    %260 = vrot.lane.b32.xlu0 %v259, 76
    %v261 = vpop.permute.xlu0 %260
    %vm262 = vcmask 31744
    %s263 = scalar_lea.vmem [#allocation0], 25
    %264 = vst.msk [vmem:[%s263] sm:$0x1] %vm262, %v261
    %s265 = scalar_lea.vmem [#allocation0], 88
    %266 = vst.msk [vmem:[%s265] sm:$0x2] %vm262, %v261
    %s267 = scalar_lea.vmem [#allocation0], 151
    %268 = vst.msk [vmem:[%s267] sm:$0x4] %vm262, %v261
    %s269 = scalar_lea.vmem [#allocation0], 214
    %270 = vst.msk [vmem:[%s269] sm:$0x8] %vm262, %v261
    %s271 = scalar_lea.vmem [#allocation0], 277
    %272 = vst.msk [vmem:[%s271] sm:$0x10] %vm262, %v261
    %s273 = scalar_lea.vmem [#allocation0], 340
    %274 = vst.msk [vmem:[%s273] sm:$0x20] %vm262, %v261
    %s275 = scalar_lea.vmem [#allocation0], 403
    %276 = vst.msk [vmem:[%s275] sm:$0x40] %vm262, %v261
    %s277 = scalar_lea.vmem [#allocation0], 466
    %278 = vst.msk [vmem:[%s277] sm:$0x80] %vm262, %v261
    %v279 = vld [vmem:[%s0] sm:$0xff]
    %280 = vrot.lane.b32.xlu0 %v279, 72
    %v281 = vpop.permute.xlu0 %280
    %vm282 = vcmask 31744
    %s283 = scalar_lea.vmem [#allocation0], 26
    %284 = vst.msk [vmem:[%s283] sm:$0x1] %vm282, %v281
    %s285 = scalar_lea.vmem [#allocation0], 89
    %286 = vst.msk [vmem:[%s285] sm:$0x2] %vm282, %v281
    %s287 = scalar_lea.vmem [#allocation0], 152
    %288 = vst.msk [vmem:[%s287] sm:$0x4] %vm282, %v281
    %s289 = scalar_lea.vmem [#allocation0], 215
    %290 = vst.msk [vmem:[%s289] sm:$0x8] %vm282, %v281
    %s291 = scalar_lea.vmem [#allocation0], 278
    %292 = vst.msk [vmem:[%s291] sm:$0x10] %vm282, %v281
    %s293 = scalar_lea.vmem [#allocation0], 341
    %294 = vst.msk [vmem:[%s293] sm:$0x20] %vm282, %v281
    %s295 = scalar_lea.vmem [#allocation0], 404
    %296 = vst.msk [vmem:[%s295] sm:$0x40] %vm282, %v281
    %s297 = scalar_lea.vmem [#allocation0], 467
    %298 = vst.msk [vmem:[%s297] sm:$0x80] %vm282, %v281
    %v299 = vld [vmem:[%s0] sm:$0xff]
    %300 = vrot.lane.b32.xlu0 %v299, 68
    %v301 = vpop.permute.xlu0 %300
    %vm302 = vcmask 31744
    %s303 = scalar_lea.vmem [#allocation0], 27
    %304 = vst.msk [vmem:[%s303] sm:$0x1] %vm302, %v301
    %s305 = scalar_lea.vmem [#allocation0], 90
    %306 = vst.msk [vmem:[%s305] sm:$0x2] %vm302, %v301
    %s307 = scalar_lea.vmem [#allocation0], 153
    %308 = vst.msk [vmem:[%s307] sm:$0x4] %vm302, %v301
    %s309 = scalar_lea.vmem [#allocation0], 216
    %310 = vst.msk [vmem:[%s309] sm:$0x8] %vm302, %v301
    %s311 = scalar_lea.vmem [#allocation0], 279
    %312 = vst.msk [vmem:[%s311] sm:$0x10] %vm302, %v301
    %s313 = scalar_lea.vmem [#allocation0], 342
    %314 = vst.msk [vmem:[%s313] sm:$0x20] %vm302, %v301
    %s315 = scalar_lea.vmem [#allocation0], 405
    %316 = vst.msk [vmem:[%s315] sm:$0x40] %vm302, %v301
    %s317 = scalar_lea.vmem [#allocation0], 468
    %318 = vst.msk [vmem:[%s317] sm:$0x80] %vm302, %v301
    %v319 = vld [vmem:[%s0] sm:$0xff]
    %320 = vrot.lane.b32.xlu0 %v319, 64
    %v321 = vpop.permute.xlu0 %320
    %vm322 = vcmask 31744
    %s323 = scalar_lea.vmem [#allocation0], 32
    %324 = vst.msk [vmem:[%s323] sm:$0x1] %vm322, %v321
    %s325 = scalar_lea.vmem [#allocation0], 95
    %326 = vst.msk [vmem:[%s325] sm:$0x2] %vm322, %v321
    %s327 = scalar_lea.vmem [#allocation0], 158
    %328 = vst.msk [vmem:[%s327] sm:$0x4] %vm322, %v321
    %s329 = scalar_lea.vmem [#allocation0], 221
    %330 = vst.msk [vmem:[%s329] sm:$0x8] %vm322, %v321
    %s331 = scalar_lea.vmem [#allocation0], 284
    %332 = vst.msk [vmem:[%s331] sm:$0x10] %vm322, %v321
    %s333 = scalar_lea.vmem [#allocation0], 347
    %334 = vst.msk [vmem:[%s333] sm:$0x20] %vm322, %v321
    %s335 = scalar_lea.vmem [#allocation0], 410
    %336 = vst.msk [vmem:[%s335] sm:$0x40] %vm322, %v321
    %s337 = scalar_lea.vmem [#allocation0], 473
    %338 = vst.msk [vmem:[%s337] sm:$0x80] %vm322, %v321
    %v339 = vld [vmem:[%s0] sm:$0xff]
    %340 = vrot.lane.b32.xlu0 %v339, 60
    %v341 = vpop.permute.xlu0 %340
    %vm342 = vcmask 31744
    %s343 = scalar_lea.vmem [#allocation0], 33
    %344 = vst.msk [vmem:[%s343] sm:$0x1] %vm342, %v341
    %s345 = scalar_lea.vmem [#allocation0], 96
    %346 = vst.msk [vmem:[%s345] sm:$0x2] %vm342, %v341
    %s347 = scalar_lea.vmem [#allocation0], 159
    %348 = vst.msk [vmem:[%s347] sm:$0x4] %vm342, %v341
    %s349 = scalar_lea.vmem [#allocation0], 222
    %350 = vst.msk [vmem:[%s349] sm:$0x8] %vm342, %v341
    %s351 = scalar_lea.vmem [#allocation0], 285
    %352 = vst.msk [vmem:[%s351] sm:$0x10] %vm342, %v341
    %s353 = scalar_lea.vmem [#allocation0], 348
    %354 = vst.msk [vmem:[%s353] sm:$0x20] %vm342, %v341
    %s355 = scalar_lea.vmem [#allocation0], 411
    %356 = vst.msk [vmem:[%s355] sm:$0x40] %vm342, %v341
    %s357 = scalar_lea.vmem [#allocation0], 474
    %358 = vst.msk [vmem:[%s357] sm:$0x80] %vm342, %v341
    %v359 = vld [vmem:[%s0] sm:$0xff]
    %360 = vrot.lane.b32.xlu0 %v359, 56
    %v361 = vpop.permute.xlu0 %360
    %vm362 = vcmask 31744
    %s363 = scalar_lea.vmem [#allocation0], 34
    %364 = vst.msk [vmem:[%s363] sm:$0x1] %vm362, %v361
    %s365 = scalar_lea.vmem [#allocation0], 97
    %366 = vst.msk [vmem:[%s365] sm:$0x2] %vm362, %v361
    %s367 = scalar_lea.vmem [#allocation0], 160
    %368 = vst.msk [vmem:[%s367] sm:$0x4] %vm362, %v361
    %s369 = scalar_lea.vmem [#allocation0], 223
    %370 = vst.msk [vmem:[%s369] sm:$0x8] %vm362, %v361
    %s371 = scalar_lea.vmem [#allocation0], 286
    %372 = vst.msk [vmem:[%s371] sm:$0x10] %vm362, %v361
    %s373 = scalar_lea.vmem [#allocation0], 349
    %374 = vst.msk [vmem:[%s373] sm:$0x20] %vm362, %v361
    %s375 = scalar_lea.vmem [#allocation0], 412
    %376 = vst.msk [vmem:[%s375] sm:$0x40] %vm362, %v361
    %s377 = scalar_lea.vmem [#allocation0], 475
    %378 = vst.msk [vmem:[%s377] sm:$0x80] %vm362, %v361
    %v379 = vld [vmem:[%s0] sm:$0xff]
    %380 = vrot.lane.b32.xlu0 %v379, 52
    %v381 = vpop.permute.xlu0 %380
    %vm382 = vcmask 31744
    %s383 = scalar_lea.vmem [#allocation0], 35
    %384 = vst.msk [vmem:[%s383] sm:$0x1] %vm382, %v381
    %s385 = scalar_lea.vmem [#allocation0], 98
    %386 = vst.msk [vmem:[%s385] sm:$0x2] %vm382, %v381
    %s387 = scalar_lea.vmem [#allocation0], 161
    %388 = vst.msk [vmem:[%s387] sm:$0x4] %vm382, %v381
    %s389 = scalar_lea.vmem [#allocation0], 224
    %390 = vst.msk [vmem:[%s389] sm:$0x8] %vm382, %v381
    %s391 = scalar_lea.vmem [#allocation0], 287
    %392 = vst.msk [vmem:[%s391] sm:$0x10] %vm382, %v381
    %s393 = scalar_lea.vmem [#allocation0], 350
    %394 = vst.msk [vmem:[%s393] sm:$0x20] %vm382, %v381
    %s395 = scalar_lea.vmem [#allocation0], 413
    %396 = vst.msk [vmem:[%s395] sm:$0x40] %vm382, %v381
    %s397 = scalar_lea.vmem [#allocation0], 476
    %398 = vst.msk [vmem:[%s397] sm:$0x80] %vm382, %v381
    %v399 = vld [vmem:[%s0] sm:$0xff]
    %400 = vrot.lane.b32.xlu0 %v399, 48
    %v401 = vpop.permute.xlu0 %400
    %vm402 = vcmask 31744
    %s403 = scalar_lea.vmem [#allocation0], 40
    %404 = vst.msk [vmem:[%s403] sm:$0x1] %vm402, %v401
    %s405 = scalar_lea.vmem [#allocation0], 103
    %406 = vst.msk [vmem:[%s405] sm:$0x2] %vm402, %v401
    %s407 = scalar_lea.vmem [#allocation0], 166
    %408 = vst.msk [vmem:[%s407] sm:$0x4] %vm402, %v401
    %s409 = scalar_lea.vmem [#allocation0], 229
    %410 = vst.msk [vmem:[%s409] sm:$0x8] %vm402, %v401
    %s411 = scalar_lea.vmem [#allocation0], 292
    %412 = vst.msk [vmem:[%s411] sm:$0x10] %vm402, %v401
    %s413 = scalar_lea.vmem [#allocation0], 355
    %414 = vst.msk [vmem:[%s413] sm:$0x20] %vm402, %v401
    %s415 = scalar_lea.vmem [#allocation0], 418
    %416 = vst.msk [vmem:[%s415] sm:$0x40] %vm402, %v401
    %s417 = scalar_lea.vmem [#allocation0], 481
    %418 = vst.msk [vmem:[%s417] sm:$0x80] %vm402, %v401
    %v419 = vld [vmem:[%s0] sm:$0xff]
    %420 = vrot.lane.b32.xlu0 %v419, 44
    %v421 = vpop.permute.xlu0 %420
    %vm422 = vcmask 31744
    %s423 = scalar_lea.vmem [#allocation0], 41
    %424 = vst.msk [vmem:[%s423] sm:$0x1] %vm422, %v421
    %s425 = scalar_lea.vmem [#allocation0], 104
    %426 = vst.msk [vmem:[%s425] sm:$0x2] %vm422, %v421
    %s427 = scalar_lea.vmem [#allocation0], 167
    %428 = vst.msk [vmem:[%s427] sm:$0x4] %vm422, %v421
    %s429 = scalar_lea.vmem [#allocation0], 230
    %430 = vst.msk [vmem:[%s429] sm:$0x8] %vm422, %v421
    %s431 = scalar_lea.vmem [#allocation0], 293
    %432 = vst.msk [vmem:[%s431] sm:$0x10] %vm422, %v421
    %s433 = scalar_lea.vmem [#allocation0], 356
    %434 = vst.msk [vmem:[%s433] sm:$0x20] %vm422, %v421
    %s435 = scalar_lea.vmem [#allocation0], 419
    %436 = vst.msk [vmem:[%s435] sm:$0x40] %vm422, %v421
    %s437 = scalar_lea.vmem [#allocation0], 482
    %438 = vst.msk [vmem:[%s437] sm:$0x80] %vm422, %v421
    %v439 = vld [vmem:[%s0] sm:$0xff]
    %440 = vrot.lane.b32.xlu0 %v439, 40
    %v441 = vpop.permute.xlu0 %440
    %vm442 = vcmask 31744
    %s443 = scalar_lea.vmem [#allocation0], 42
    %444 = vst.msk [vmem:[%s443] sm:$0x1] %vm442, %v441
    %s445 = scalar_lea.vmem [#allocation0], 105
    %446 = vst.msk [vmem:[%s445] sm:$0x2] %vm442, %v441
    %s447 = scalar_lea.vmem [#allocation0], 168
    %448 = vst.msk [vmem:[%s447] sm:$0x4] %vm442, %v441
    %s449 = scalar_lea.vmem [#allocation0], 231
    %450 = vst.msk [vmem:[%s449] sm:$0x8] %vm442, %v441
    %s451 = scalar_lea.vmem [#allocation0], 294
    %452 = vst.msk [vmem:[%s451] sm:$0x10] %vm442, %v441
    %s453 = scalar_lea.vmem [#allocation0], 357
    %454 = vst.msk [vmem:[%s453] sm:$0x20] %vm442, %v441
    %s455 = scalar_lea.vmem [#allocation0], 420
    %456 = vst.msk [vmem:[%s455] sm:$0x40] %vm442, %v441
    %s457 = scalar_lea.vmem [#allocation0], 483
    %458 = vst.msk [vmem:[%s457] sm:$0x80] %vm442, %v441
    %v459 = vld [vmem:[%s0] sm:$0xff]
    %460 = vrot.lane.b32.xlu0 %v459, 36
    %v461 = vpop.permute.xlu0 %460
    %vm462 = vcmask 31744
    %s463 = scalar_lea.vmem [#allocation0], 43
    %464 = vst.msk [vmem:[%s463] sm:$0x1] %vm462, %v461
    %s465 = scalar_lea.vmem [#allocation0], 106
    %466 = vst.msk [vmem:[%s465] sm:$0x2] %vm462, %v461
    %s467 = scalar_lea.vmem [#allocation0], 169
    %468 = vst.msk [vmem:[%s467] sm:$0x4] %vm462, %v461
    %s469 = scalar_lea.vmem [#allocation0], 232
    %470 = vst.msk [vmem:[%s469] sm:$0x8] %vm462, %v461
    %s471 = scalar_lea.vmem [#allocation0], 295
    %472 = vst.msk [vmem:[%s471] sm:$0x10] %vm462, %v461
    %s473 = scalar_lea.vmem [#allocation0], 358
    %474 = vst.msk [vmem:[%s473] sm:$0x20] %vm462, %v461
    %s475 = scalar_lea.vmem [#allocation0], 421
    %476 = vst.msk [vmem:[%s475] sm:$0x40] %vm462, %v461
    %s477 = scalar_lea.vmem [#allocation0], 484
    %478 = vst.msk [vmem:[%s477] sm:$0x80] %vm462, %v461
    %v479 = vld [vmem:[%s0] sm:$0xff]
    %480 = vrot.lane.b32.xlu0 %v479, 32
    %v481 = vpop.permute.xlu0 %480
    %vm482 = vcmask 31744
    %s483 = scalar_lea.vmem [#allocation0], 48
    %484 = vst.msk [vmem:[%s483] sm:$0x1] %vm482, %v481
    %s485 = scalar_lea.vmem [#allocation0], 111
    %486 = vst.msk [vmem:[%s485] sm:$0x2] %vm482, %v481
    %s487 = scalar_lea.vmem [#allocation0], 174
    %488 = vst.msk [vmem:[%s487] sm:$0x4] %vm482, %v481
    %s489 = scalar_lea.vmem [#allocation0], 237
    %490 = vst.msk [vmem:[%s489] sm:$0x8] %vm482, %v481
    %s491 = scalar_lea.vmem [#allocation0], 300
    %492 = vst.msk [vmem:[%s491] sm:$0x10] %vm482, %v481
    %s493 = scalar_lea.vmem [#allocation0], 363
    %494 = vst.msk [vmem:[%s493] sm:$0x20] %vm482, %v481
    %s495 = scalar_lea.vmem [#allocation0], 426
    %496 = vst.msk [vmem:[%s495] sm:$0x40] %vm482, %v481
    %s497 = scalar_lea.vmem [#allocation0], 489
    %498 = vst.msk [vmem:[%s497] sm:$0x80] %vm482, %v481
    %v499 = vld [vmem:[%s0] sm:$0xff]
    %500 = vrot.lane.b32.xlu0 %v499, 28
    %v501 = vpop.permute.xlu0 %500
    %vm502 = vcmask 31744
    %s503 = scalar_lea.vmem [#allocation0], 49
    %504 = vst.msk [vmem:[%s503] sm:$0x1] %vm502, %v501
    %s505 = scalar_lea.vmem [#allocation0], 112
    %506 = vst.msk [vmem:[%s505] sm:$0x2] %vm502, %v501
    %s507 = scalar_lea.vmem [#allocation0], 175
    %508 = vst.msk [vmem:[%s507] sm:$0x4] %vm502, %v501
    %s509 = scalar_lea.vmem [#allocation0], 238
    %510 = vst.msk [vmem:[%s509] sm:$0x8] %vm502, %v501
    %s511 = scalar_lea.vmem [#allocation0], 301
    %512 = vst.msk [vmem:[%s511] sm:$0x10] %vm502, %v501
    %s513 = scalar_lea.vmem [#allocation0], 364
    %514 = vst.msk [vmem:[%s513] sm:$0x20] %vm502, %v501
    %s515 = scalar_lea.vmem [#allocation0], 427
    %516 = vst.msk [vmem:[%s515] sm:$0x40] %vm502, %v501
    %s517 = scalar_lea.vmem [#allocation0], 490
    %518 = vst.msk [vmem:[%s517] sm:$0x80] %vm502, %v501
    %v519 = vld [vmem:[%s0] sm:$0xff]
    %520 = vrot.lane.b32.xlu0 %v519, 24
    %v521 = vpop.permute.xlu0 %520
    %vm522 = vcmask 31744
    %s523 = scalar_lea.vmem [#allocation0], 50
    %524 = vst.msk [vmem:[%s523] sm:$0x1] %vm522, %v521
    %s525 = scalar_lea.vmem [#allocation0], 113
    %526 = vst.msk [vmem:[%s525] sm:$0x2] %vm522, %v521
    %s527 = scalar_lea.vmem [#allocation0], 176
    %528 = vst.msk [vmem:[%s527] sm:$0x4] %vm522, %v521
    %s529 = scalar_lea.vmem [#allocation0], 239
    %530 = vst.msk [vmem:[%s529] sm:$0x8] %vm522, %v521
    %s531 = scalar_lea.vmem [#allocation0], 302
    %532 = vst.msk [vmem:[%s531] sm:$0x10] %vm522, %v521
    %s533 = scalar_lea.vmem [#allocation0], 365
    %534 = vst.msk [vmem:[%s533] sm:$0x20] %vm522, %v521
    %s535 = scalar_lea.vmem [#allocation0], 428
    %536 = vst.msk [vmem:[%s535] sm:$0x40] %vm522, %v521
    %s537 = scalar_lea.vmem [#allocation0], 491
    %538 = vst.msk [vmem:[%s537] sm:$0x80] %vm522, %v521
    %v539 = vld [vmem:[%s0] sm:$0xff]
    %540 = vrot.lane.b32.xlu0 %v539, 20
    %v541 = vpop.permute.xlu0 %540
    %vm542 = vcmask 31744
    %s543 = scalar_lea.vmem [#allocation0], 51
    %544 = vst.msk [vmem:[%s543] sm:$0x1] %vm542, %v541
    %s545 = scalar_lea.vmem [#allocation0], 114
    %546 = vst.msk [vmem:[%s545] sm:$0x2] %vm542, %v541
    %s547 = scalar_lea.vmem [#allocation0], 177
    %548 = vst.msk [vmem:[%s547] sm:$0x4] %vm542, %v541
    %s549 = scalar_lea.vmem [#allocation0], 240
    %550 = vst.msk [vmem:[%s549] sm:$0x8] %vm542, %v541
    %s551 = scalar_lea.vmem [#allocation0], 303
    %552 = vst.msk [vmem:[%s551] sm:$0x10] %vm542, %v541
    %s553 = scalar_lea.vmem [#allocation0], 366
    %554 = vst.msk [vmem:[%s553] sm:$0x20] %vm542, %v541
    %s555 = scalar_lea.vmem [#allocation0], 429
    %556 = vst.msk [vmem:[%s555] sm:$0x40] %vm542, %v541
    %s557 = scalar_lea.vmem [#allocation0], 492
    %558 = vst.msk [vmem:[%s557] sm:$0x80] %vm542, %v541
    %v559 = vld [vmem:[%s0] sm:$0xff]
    %560 = vrot.lane.b32.xlu0 %v559, 16
    %v561 = vpop.permute.xlu0 %560
    %vm562 = vcmask 31744
    %s563 = scalar_lea.vmem [#allocation0], 56
    %564 = vst.msk [vmem:[%s563] sm:$0x1] %vm562, %v561
    %s565 = scalar_lea.vmem [#allocation0], 119
    %566 = vst.msk [vmem:[%s565] sm:$0x2] %vm562, %v561
    %s567 = scalar_lea.vmem [#allocation0], 182
    %568 = vst.msk [vmem:[%s567] sm:$0x4] %vm562, %v561
    %s569 = scalar_lea.vmem [#allocation0], 245
    %570 = vst.msk [vmem:[%s569] sm:$0x8] %vm562, %v561
    %s571 = scalar_lea.vmem [#allocation0], 308
    %572 = vst.msk [vmem:[%s571] sm:$0x10] %vm562, %v561
    %s573 = scalar_lea.vmem [#allocation0], 371
    %574 = vst.msk [vmem:[%s573] sm:$0x20] %vm562, %v561
    %s575 = scalar_lea.vmem [#allocation0], 434
    %576 = vst.msk [vmem:[%s575] sm:$0x40] %vm562, %v561
    %s577 = scalar_lea.vmem [#allocation0], 497
    %578 = vst.msk [vmem:[%s577] sm:$0x80] %vm562, %v561
    %v579 = vld [vmem:[%s0] sm:$0xff]
    %580 = vrot.lane.b32.xlu0 %v579, 12
    %v581 = vpop.permute.xlu0 %580
    %vm582 = vcmask 31744
    %s583 = scalar_lea.vmem [#allocation0], 57
    %584 = vst.msk [vmem:[%s583] sm:$0x1] %vm582, %v581
    %s585 = scalar_lea.vmem [#allocation0], 120
    %586 = vst.msk [vmem:[%s585] sm:$0x2] %vm582, %v581
    %s587 = scalar_lea.vmem [#allocation0], 183
    %588 = vst.msk [vmem:[%s587] sm:$0x4] %vm582, %v581
    %s589 = scalar_lea.vmem [#allocation0], 246
    %590 = vst.msk [vmem:[%s589] sm:$0x8] %vm582, %v581
    %s591 = scalar_lea.vmem [#allocation0], 309
    %592 = vst.msk [vmem:[%s591] sm:$0x10] %vm582, %v581
    %s593 = scalar_lea.vmem [#allocation0], 372
    %594 = vst.msk [vmem:[%s593] sm:$0x20] %vm582, %v581
    %s595 = scalar_lea.vmem [#allocation0], 435
    %596 = vst.msk [vmem:[%s595] sm:$0x40] %vm582, %v581
    %s597 = scalar_lea.vmem [#allocation0], 498
    %598 = vst.msk [vmem:[%s597] sm:$0x80] %vm582, %v581
    %v599 = vld [vmem:[%s0] sm:$0xff]
    %600 = vrot.lane.b32.xlu0 %v599, 8
    %v601 = vpop.permute.xlu0 %600
    %vm602 = vcmask 31744
    %s603 = scalar_lea.vmem [#allocation0], 58
    %604 = vst.msk [vmem:[%s603] sm:$0x1] %vm602, %v601
    %s605 = scalar_lea.vmem [#allocation0], 121
    %606 = vst.msk [vmem:[%s605] sm:$0x2] %vm602, %v601
    %s607 = scalar_lea.vmem [#allocation0], 184
    %608 = vst.msk [vmem:[%s607] sm:$0x4] %vm602, %v601
    %s609 = scalar_lea.vmem [#allocation0], 247
    %610 = vst.msk [vmem:[%s609] sm:$0x8] %vm602, %v601
    %s611 = scalar_lea.vmem [#allocation0], 310
    %612 = vst.msk [vmem:[%s611] sm:$0x10] %vm602, %v601
    %s613 = scalar_lea.vmem [#allocation0], 373
    %614 = vst.msk [vmem:[%s613] sm:$0x20] %vm602, %v601
    %s615 = scalar_lea.vmem [#allocation0], 436
    %616 = vst.msk [vmem:[%s615] sm:$0x40] %vm602, %v601
    %s617 = scalar_lea.vmem [#allocation0], 499
    %618 = vst.msk [vmem:[%s617] sm:$0x80] %vm602, %v601
    %v619 = vld [vmem:[%s0] sm:$0xff]
    %620 = vrot.lane.b32.xlu0 %v619, 4
    %v621 = vpop.permute.xlu0 %620
    %vm622 = vcmask 31744
    %s623 = scalar_lea.vmem [#allocation0], 59
    %624 = vst.msk [vmem:[%s623] sm:$0x1] %vm622, %v621
    %s625 = scalar_lea.vmem [#allocation0], 122
    %626 = vst.msk [vmem:[%s625] sm:$0x2] %vm622, %v621
    %s627 = scalar_lea.vmem [#allocation0], 185
    %628 = vst.msk [vmem:[%s627] sm:$0x4] %vm622, %v621
    %s629 = scalar_lea.vmem [#allocation0], 248
    %630 = vst.msk [vmem:[%s629] sm:$0x8] %vm622, %v621
    %s631 = scalar_lea.vmem [#allocation0], 311
    %632 = vst.msk [vmem:[%s631] sm:$0x10] %vm622, %v621
    %s633 = scalar_lea.vmem [#allocation0], 374
    %634 = vst.msk [vmem:[%s633] sm:$0x20] %vm622, %v621
    %s635 = scalar_lea.vmem [#allocation0], 437
    %636 = vst.msk [vmem:[%s635] sm:$0x40] %vm622, %v621
    %s637 = scalar_lea.vmem [#allocation0], 500
    %638 = vst.msk [vmem:[%s637] sm:$0x80] %vm622, %v621
    %s640 = ssub.s32 16, 1
    %v641 = vld [vmem:[#allocation0] sm:%s640]
    %s643 = ssub.s32 16, 1
    %644 = vst [vmem:[%s1] sm:%s643] %v641
    %s645 = scalar_lea.vmem [#allocation0], 8
    %v646 = vld [vmem:[%s645] sm:%s640]
    %s648 = ssub.s32 16, 1
    %s649 = scalar_lea.vmem %s1, 4
    %650 = vst [vmem:[%s649] sm:%s648] %v646
    %s651 = scalar_lea.vmem [#allocation0], 16
    %v652 = vld [vmem:[%s651] sm:%s640]
    %s654 = ssub.s32 16, 1
    %s655 = scalar_lea.vmem %s1, 8
    %656 = vst [vmem:[%s655] sm:%s654] %v652
    %s657 = scalar_lea.vmem [#allocation0], 24
    %v658 = vld [vmem:[%s657] sm:%s640]
    %s660 = ssub.s32 16, 1
    %s661 = scalar_lea.vmem %s1, 12
    %662 = vst [vmem:[%s661] sm:%s660] %v658
    %s663 = scalar_lea.vmem [#allocation0], 32
    %v664 = vld [vmem:[%s663] sm:%s640]
    %s666 = ssub.s32 16, 1
    %s667 = scalar_lea.vmem %s1, 16
    %668 = vst [vmem:[%s667] sm:%s666] %v664
    %s669 = scalar_lea.vmem [#allocation0], 40
    %v670 = vld [vmem:[%s669] sm:%s640]
    %s672 = ssub.s32 16, 1
    %s673 = scalar_lea.vmem %s1, 20
    %674 = vst [vmem:[%s673] sm:%s672] %v670
    %s675 = scalar_lea.vmem [#allocation0], 48
    %v676 = vld [vmem:[%s675] sm:%s640]
    %s678 = ssub.s32 16, 1
    %s679 = scalar_lea.vmem %s1, 24
    %680 = vst [vmem:[%s679] sm:%s678] %v676
    %s681 = scalar_lea.vmem [#allocation0], 56
    %v682 = vld [vmem:[%s681] sm:%s640]
    %s684 = ssub.s32 16, 1
    %s685 = scalar_lea.vmem %s1, 28
    %686 = vst [vmem:[%s685] sm:%s684] %v682
    %s687 = scalar_lea.vmem [#allocation0], 64
    %v688 = vld [vmem:[%s687] sm:%s640]
    %s690 = ssub.s32 16, 1
    %s691 = scalar_lea.vmem %s1, 32
    %692 = vst [vmem:[%s691] sm:%s690] %v688
    %s693 = scalar_lea.vmem [#allocation0], 72
    %v694 = vld [vmem:[%s693] sm:%s640]
    %s696 = ssub.s32 16, 1
    %s697 = scalar_lea.vmem %s1, 36
    %698 = vst [vmem:[%s697] sm:%s696] %v694
    %s699 = scalar_lea.vmem [#allocation0], 80
    %v700 = vld [vmem:[%s699] sm:%s640]
    %s702 = ssub.s32 16, 1
    %s703 = scalar_lea.vmem %s1, 40
    %704 = vst [vmem:[%s703] sm:%s702] %v700
    %s705 = scalar_lea.vmem [#allocation0], 88
    %v706 = vld [vmem:[%s705] sm:%s640]
    %s708 = ssub.s32 16, 1
    %s709 = scalar_lea.vmem %s1, 44
    %710 = vst [vmem:[%s709] sm:%s708] %v706
    %s711 = scalar_lea.vmem [#allocation0], 96
    %v712 = vld [vmem:[%s711] sm:%s640]
    %s714 = ssub.s32 16, 1
    %s715 = scalar_lea.vmem %s1, 48
    %716 = vst [vmem:[%s715] sm:%s714] %v712
    %s717 = scalar_lea.vmem [#allocation0], 104
    %v718 = vld [vmem:[%s717] sm:%s640]
    %s720 = ssub.s32 16, 1
    %s721 = scalar_lea.vmem %s1, 52
    %722 = vst [vmem:[%s721] sm:%s720] %v718
    %s723 = scalar_lea.vmem [#allocation0], 112
    %v724 = vld [vmem:[%s723] sm:%s640]
    %s726 = ssub.s32 16, 1
    %s727 = scalar_lea.vmem %s1, 56
    %728 = vst [vmem:[%s727] sm:%s726] %v724
    %s729 = scalar_lea.vmem [#allocation0], 120
    %v730 = vld [vmem:[%s729] sm:%s640]
    %s732 = ssub.s32 16, 1
    %s733 = scalar_lea.vmem %s1, 60
    %734 = vst [vmem:[%s733] sm:%s732] %v730
    %s735 = scalar_lea.vmem [#allocation0], 128
    %v736 = vld [vmem:[%s735] sm:%s640]
    %s738 = ssub.s32 16, 1
    %s739 = scalar_lea.vmem %s1, 64
    %740 = vst [vmem:[%s739] sm:%s738] %v736
    %s741 = scalar_lea.vmem [#allocation0], 136
    %v742 = vld [vmem:[%s741] sm:%s640]
    %s744 = ssub.s32 16, 1
    %s745 = scalar_lea.vmem %s1, 68
    %746 = vst [vmem:[%s745] sm:%s744] %v742
    %s747 = scalar_lea.vmem [#allocation0], 144
    %v748 = vld [vmem:[%s747] sm:%s640]
    %s750 = ssub.s32 16, 1
    %s751 = scalar_lea.vmem %s1, 72
    %752 = vst [vmem:[%s751] sm:%s750] %v748
    %s753 = scalar_lea.vmem [#allocation0], 152
    %v754 = vld [vmem:[%s753] sm:%s640]
    %s756 = ssub.s32 16, 1
    %s757 = scalar_lea.vmem %s1, 76
    %758 = vst [vmem:[%s757] sm:%s756] %v754
    %s759 = scalar_lea.vmem [#allocation0], 160
    %v760 = vld [vmem:[%s759] sm:%s640]
    %s762 = ssub.s32 16, 1
    %s763 = scalar_lea.vmem %s1, 80
    %764 = vst [vmem:[%s763] sm:%s762] %v760
    %s765 = scalar_lea.vmem [#allocation0], 168
    %v766 = vld [vmem:[%s765] sm:%s640]
    %s768 = ssub.s32 16, 1
    %s769 = scalar_lea.vmem %s1, 84
    %770 = vst [vmem:[%s769] sm:%s768] %v766
    %s771 = scalar_lea.vmem [#allocation0], 176
    %v772 = vld [vmem:[%s771] sm:%s640]
    %s774 = ssub.s32 16, 1
    %s775 = scalar_lea.vmem %s1, 88
    %776 = vst [vmem:[%s775] sm:%s774] %v772
    %s777 = scalar_lea.vmem [#allocation0], 184
    %v778 = vld [vmem:[%s777] sm:%s640]
    %s780 = ssub.s32 16, 1
    %s781 = scalar_lea.vmem %s1, 92
    %782 = vst [vmem:[%s781] sm:%s780] %v778
    %s783 = scalar_lea.vmem [#allocation0], 192
    %v784 = vld [vmem:[%s783] sm:%s640]
    %s786 = ssub.s32 16, 1
    %s787 = scalar_lea.vmem %s1, 96
    %788 = vst [vmem:[%s787] sm:%s786] %v784
    %s789 = scalar_lea.vmem [#allocation0], 200
    %v790 = vld [vmem:[%s789] sm:%s640]
    %s792 = ssub.s32 16, 1
    %s793 = scalar_lea.vmem %s1, 100
    %794 = vst [vmem:[%s793] sm:%s792] %v790
    %s795 = scalar_lea.vmem [#allocation0], 208
    %v796 = vld [vmem:[%s795] sm:%s640]
    %s798 = ssub.s32 16, 1
    %s799 = scalar_lea.vmem %s1, 104
    %800 = vst [vmem:[%s799] sm:%s798] %v796
    %s801 = scalar_lea.vmem [#allocation0], 216
    %v802 = vld [vmem:[%s801] sm:%s640]
    %s804 = ssub.s32 16, 1
    %s805 = scalar_lea.vmem %s1, 108
    %806 = vst [vmem:[%s805] sm:%s804] %v802
    %s807 = scalar_lea.vmem [#allocation0], 224
    %v808 = vld [vmem:[%s807] sm:%s640]
    %s810 = ssub.s32 16, 1
    %s811 = scalar_lea.vmem %s1, 112
    %812 = vst [vmem:[%s811] sm:%s810] %v808
    %s813 = scalar_lea.vmem [#allocation0], 232
    %v814 = vld [vmem:[%s813] sm:%s640]
    %s816 = ssub.s32 16, 1
    %s817 = scalar_lea.vmem %s1, 116
    %818 = vst [vmem:[%s817] sm:%s816] %v814
    %s819 = scalar_lea.vmem [#allocation0], 240
    %v820 = vld [vmem:[%s819] sm:%s640]
    %s822 = ssub.s32 16, 1
    %s823 = scalar_lea.vmem %s1, 120
    %824 = vst [vmem:[%s823] sm:%s822] %v820
    %s825 = scalar_lea.vmem [#allocation0], 248
    %v826 = vld [vmem:[%s825] sm:%s640]
    %s828 = ssub.s32 16, 1
    %s829 = scalar_lea.vmem %s1, 124
    %830 = vst [vmem:[%s829] sm:%s828] %v826
    %s831 = scalar_lea.vmem [#allocation0], 256
    %v832 = vld [vmem:[%s831] sm:%s640]
    %s834 = ssub.s32 16, 1
    %s835 = scalar_lea.vmem %s1, 128
    %836 = vst [vmem:[%s835] sm:%s834] %v832
    %s837 = scalar_lea.vmem [#allocation0], 264
    %v838 = vld [vmem:[%s837] sm:%s640]
    %s840 = ssub.s32 16, 1
    %s841 = scalar_lea.vmem %s1, 132
    %842 = vst [vmem:[%s841] sm:%s840] %v838
    %s843 = scalar_lea.vmem [#allocation0], 272
    %v844 = vld [vmem:[%s843] sm:%s640]
    %s846 = ssub.s32 16, 1
    %s847 = scalar_lea.vmem %s1, 136
    %848 = vst [vmem:[%s847] sm:%s846] %v844
    %s849 = scalar_lea.vmem [#allocation0], 280
    %v850 = vld [vmem:[%s849] sm:%s640]
    %s852 = ssub.s32 16, 1
    %s853 = scalar_lea.vmem %s1, 140
    %854 = vst [vmem:[%s853] sm:%s852] %v850
    %s855 = scalar_lea.vmem [#allocation0], 288
    %v856 = vld [vmem:[%s855] sm:%s640]
    %s858 = ssub.s32 16, 1
    %s859 = scalar_lea.vmem %s1, 144
    %860 = vst [vmem:[%s859] sm:%s858] %v856
    %s861 = scalar_lea.vmem [#allocation0], 296
    %v862 = vld [vmem:[%s861] sm:%s640]
    %s864 = ssub.s32 16, 1
    %s865 = scalar_lea.vmem %s1, 148
    %866 = vst [vmem:[%s865] sm:%s864] %v862
    %s867 = scalar_lea.vmem [#allocation0], 304
    %v868 = vld [vmem:[%s867] sm:%s640]
    %s870 = ssub.s32 16, 1
    %s871 = scalar_lea.vmem %s1, 152
    %872 = vst [vmem:[%s871] sm:%s870] %v868
    %s873 = scalar_lea.vmem [#allocation0], 312
    %v874 = vld [vmem:[%s873] sm:%s640]
    %s876 = ssub.s32 16, 1
    %s877 = scalar_lea.vmem %s1, 156
    %878 = vst [vmem:[%s877] sm:%s876] %v874
    %s879 = scalar_lea.vmem [#allocation0], 320
    %v880 = vld [vmem:[%s879] sm:%s640]
    %s882 = ssub.s32 16, 1
    %s883 = scalar_lea.vmem %s1, 160
    %884 = vst [vmem:[%s883] sm:%s882] %v880
    %s885 = scalar_lea.vmem [#allocation0], 328
    %v886 = vld [vmem:[%s885] sm:%s640]
    %s888 = ssub.s32 16, 1
    %s889 = scalar_lea.vmem %s1, 164
    %890 = vst [vmem:[%s889] sm:%s888] %v886
    %s891 = scalar_lea.vmem [#allocation0], 336
    %v892 = vld [vmem:[%s891] sm:%s640]
    %s894 = ssub.s32 16, 1
    %s895 = scalar_lea.vmem %s1, 168
    %896 = vst [vmem:[%s895] sm:%s894] %v892
    %s897 = scalar_lea.vmem [#allocation0], 344
    %v898 = vld [vmem:[%s897] sm:%s640]
    %s900 = ssub.s32 16, 1
    %s901 = scalar_lea.vmem %s1, 172
    %902 = vst [vmem:[%s901] sm:%s900] %v898
    %s903 = scalar_lea.vmem [#allocation0], 352
    %v904 = vld [vmem:[%s903] sm:%s640]
    %s906 = ssub.s32 16, 1
    %s907 = scalar_lea.vmem %s1, 176
    %908 = vst [vmem:[%s907] sm:%s906] %v904
    %s909 = scalar_lea.vmem [#allocation0], 360
    %v910 = vld [vmem:[%s909] sm:%s640]
    %s912 = ssub.s32 16, 1
    %s913 = scalar_lea.vmem %s1, 180
    %914 = vst [vmem:[%s913] sm:%s912] %v910
    %s915 = scalar_lea.vmem [#allocation0], 368
    %v916 = vld [vmem:[%s915] sm:%s640]
    %s918 = ssub.s32 16, 1
    %s919 = scalar_lea.vmem %s1, 184
    %920 = vst [vmem:[%s919] sm:%s918] %v916
    %s921 = scalar_lea.vmem [#allocation0], 376
    %v922 = vld [vmem:[%s921] sm:%s640]
    %s924 = ssub.s32 16, 1
    %s925 = scalar_lea.vmem %s1, 188
    %926 = vst [vmem:[%s925] sm:%s924] %v922
    %s927 = scalar_lea.vmem [#allocation0], 384
    %v928 = vld [vmem:[%s927] sm:%s640]
    %s930 = ssub.s32 16, 1
    %s931 = scalar_lea.vmem %s1, 192
    %932 = vst [vmem:[%s931] sm:%s930] %v928
    %s933 = scalar_lea.vmem [#allocation0], 392
    %v934 = vld [vmem:[%s933] sm:%s640]
    %s936 = ssub.s32 16, 1
    %s937 = scalar_lea.vmem %s1, 196
    %938 = vst [vmem:[%s937] sm:%s936] %v934
    %s939 = scalar_lea.vmem [#allocation0], 400
    %v940 = vld [vmem:[%s939] sm:%s640]
    %s942 = ssub.s32 16, 1
    %s943 = scalar_lea.vmem %s1, 200
    %944 = vst [vmem:[%s943] sm:%s942] %v940
    %s945 = scalar_lea.vmem [#allocation0], 408
    %v946 = vld [vmem:[%s945] sm:%s640]
    %s948 = ssub.s32 16, 1
    %s949 = scalar_lea.vmem %s1, 204
    %950 = vst [vmem:[%s949] sm:%s948] %v946
    %s951 = scalar_lea.vmem [#allocation0], 416
    %v952 = vld [vmem:[%s951] sm:%s640]
    %s954 = ssub.s32 16, 1
    %s955 = scalar_lea.vmem %s1, 208
    %956 = vst [vmem:[%s955] sm:%s954] %v952
    %s957 = scalar_lea.vmem [#allocation0], 424
    %v958 = vld [vmem:[%s957] sm:%s640]
    %s960 = ssub.s32 16, 1
    %s961 = scalar_lea.vmem %s1, 212
    %962 = vst [vmem:[%s961] sm:%s960] %v958
    %s963 = scalar_lea.vmem [#allocation0], 432
    %v964 = vld [vmem:[%s963] sm:%s640]
    %s966 = ssub.s32 16, 1
    %s967 = scalar_lea.vmem %s1, 216
    %968 = vst [vmem:[%s967] sm:%s966] %v964
    %s969 = scalar_lea.vmem [#allocation0], 440
    %v970 = vld [vmem:[%s969] sm:%s640]
    %s972 = ssub.s32 16, 1
    %s973 = scalar_lea.vmem %s1, 220
    %974 = vst [vmem:[%s973] sm:%s972] %v970
    %s975 = scalar_lea.vmem [#allocation0], 448
    %v976 = vld [vmem:[%s975] sm:%s640]
    %s978 = ssub.s32 16, 1
    %s979 = scalar_lea.vmem %s1, 224
    %980 = vst [vmem:[%s979] sm:%s978] %v976
    %s981 = scalar_lea.vmem [#allocation0], 456
    %v982 = vld [vmem:[%s981] sm:%s640]
    %s984 = ssub.s32 16, 1
    %s985 = scalar_lea.vmem %s1, 228
    %986 = vst [vmem:[%s985] sm:%s984] %v982
    %s987 = scalar_lea.vmem [#allocation0], 464
    %v988 = vld [vmem:[%s987] sm:%s640]
    %s990 = ssub.s32 16, 1
    %s991 = scalar_lea.vmem %s1, 232
    %992 = vst [vmem:[%s991] sm:%s990] %v988
    %s993 = scalar_lea.vmem [#allocation0], 472
    %v994 = vld [vmem:[%s993] sm:%s640]
    %s996 = ssub.s32 16, 1
    %s997 = scalar_lea.vmem %s1, 236
    %998 = vst [vmem:[%s997] sm:%s996] %v994
    %s999 = scalar_lea.vmem [#allocation0], 480
    %v1000 = vld [vmem:[%s999] sm:%s640]
    %s1002 = ssub.s32 16, 1
    %s1003 = scalar_lea.vmem %s1, 240
    %1004 = vst [vmem:[%s1003] sm:%s1002] %v1000
    %s1005 = scalar_lea.vmem [#allocation0], 488
    %v1006 = vld [vmem:[%s1005] sm:%s640]
    %s1008 = ssub.s32 16, 1
    %s1009 = scalar_lea.vmem %s1, 244
    %1010 = vst [vmem:[%s1009] sm:%s1008] %v1006
    %s1011 = scalar_lea.vmem [#allocation0], 496
    %v1012 = vld [vmem:[%s1011] sm:%s640]
    %s1014 = ssub.s32 16, 1
    %s1015 = scalar_lea.vmem %s1, 248
    %1016 = vst [vmem:[%s1015] sm:%s1014] %v1012
    %s1017 = scalar_lea.vmem [#allocation0], 504
    %v1018 = vld [vmem:[%s1017] sm:%s640]
    %s1020 = ssub.s32 16, 1
    %s1021 = scalar_lea.vmem %s1, 252
    %1022 = vst [vmem:[%s1021] sm:%s1020] %v1018

// kernel: cnn_encoder_forward.6
$region0: #{cnn_encoder_forward.6}
  #allocation0 [shape = 'u32[]', space=smem, size = 0x4, offset = 0x4, fixed_abs, tag = 'smem constant byte address 0x4 - core index']
  #allocation1 [shape = 'u32[72,128]{1,0:T(1,128)}', space=vmem, size = 0x9000, scoped, tag = 'internal scratch']
  %s0 = inlined_call_operand.vmem [shape: f32[2,21,11,128], index: 0, kind: input, shape index: {}]
  %s1 = inlined_call_operand.vmem [shape: f32[768,128], index: 1, kind: input, shape index: {}]
  %s2 = inlined_call_operand.vmem [shape: f32[1,128], index: 2, kind: input, shape index: {}]
  %s3 = inlined_call_operand.vmem [shape: f32[1,128], index: 3, kind: input, shape index: {}]
  %s4 = inlined_call_operand.vmem [shape: f32[2,9,9,64], index: 4, kind: output, shape index: {}]
  %s5 = sld [smem:[#allocation0]]
  $region56: #{cnn_encoder_forward.6} parent=0
    _
  %s7 = ssub.s32 1, %s5
  %s8 = scalar_select 0, %s7, %s5
  loop: start=0, step=1, limit=4
  $region2: #{cnn_encoder_forward.6} parent=0 // loop_pre_header
    _
  $region3: #{cnn_encoder_forward.6} parent=0 // loop_header
    %s10 = sphi 0, %s14
    %p11 = scmp.ge.s32.totalorder %s10, 4
    %s20 = sphi 0, %s22
    %s23 = sphi 0, %s20
    %s24 = sphi 0, %s23
    %s40 = sphi 0, %s24
    %s44 = sphi 0, %s44
    %s46 = sphi 0, %s44
    %s47 = sphi 0, %s46
    %s61 = sphi 0, %s47
    %s65 = sphi 0, %s65
    %s67 = sphi 0, %s65
    %s68 = sphi 0, %s67
    %s82 = sphi 0, %s68
    %s86 = sphi 0, %s86
    %s88 = sphi 0, %s86
    %s89 = sphi 0, %s88
    %s103 = sphi 0, %s89
    %s109 = sphi 0, %s111
    %s112 = sphi 0, %s109
    %s113 = sphi 0, %s112
    %s129 = sphi 0, %s113
  $region4: #{cnn_encoder_forward.6} parent=0 // loop_header_branch
    %13 = sbr.rel (%p11) target = $region8
  $region5: #{cnn_encoder_forward.6} parent=0 // loop_body
    %s15 = ssub.s32 %s10, 1
    %s16 = ssub.s32 %s10, 2
    %s17 = sadd.s32 %s10, 1
    %s18 = ssub.s32 %s10, %s17
    %p19 = scmp.eq.s32.totalorder %s18, 0
    %s21 = sadd.s32 %s20, 1
    %s22 = scalar_select %p19, %s20, %s21
    %p25 = pneg %p19
    %p26 = scmp.eq.s32.totalorder %s10, 1
    %p27 = por %p25, %p26
    %p28 = scmp.ne.s32.totalorder %s20, %s23
    %p29 = scmp.eq.s32.totalorder %s10, 0
    %p30 = por %p28, %p29
    %p31 = scmp.ne.s32.totalorder %s20, %s23
    %p32 = scmp.eq.s32.totalorder %s15, 1
    %p33 = por %p31, %p32
    %p34 = scmp.ne.s32.totalorder %s23, %s24
    %p35 = scmp.eq.s32.totalorder %s15, 0
    %p36 = por %p34, %p35
    %p37 = scmp.ne.s32.totalorder %s23, %s24
    %p38 = scmp.eq.s32.totalorder %s16, 1
    %p39 = por %p37, %p38
    %p41 = scmp.ne.s32.totalorder %s24, %s40
    %p42 = scmp.eq.s32.totalorder %s16, 0
    %p43 = por %p41, %p42
    %s45 = sadd.s32 %s44, 1
    %p48 = scmp.eq.s32.totalorder %s10, 1
    %p49 = scmp.ne.s32.totalorder %s44, %s46
    %p50 = scmp.eq.s32.totalorder %s10, 0
    %p51 = por %p49, %p50
    %p52 = scmp.ne.s32.totalorder %s44, %s46
    %p53 = scmp.eq.s32.totalorder %s15, 1
    %p54 = por %p52, %p53
    %p55 = scmp.ne.s32.totalorder %s46, %s47
    %p56 = scmp.eq.s32.totalorder %s15, 0
    %p57 = por %p55, %p56
    %p58 = scmp.ne.s32.totalorder %s46, %s47
    %p59 = scmp.eq.s32.totalorder %s16, 1
    %p60 = por %p58, %p59
    %p62 = scmp.ne.s32.totalorder %s47, %s61
    %p63 = scmp.eq.s32.totalorder %s16, 0
    %p64 = por %p62, %p63
    %s66 = sadd.s32 %s65, 1
    %p69 = scmp.eq.s32.totalorder %s10, 1
    %p70 = scmp.ne.s32.totalorder %s65, %s67
    %p71 = scmp.eq.s32.totalorder %s10, 0
    %p72 = por %p70, %p71
    %p73 = scmp.ne.s32.totalorder %s65, %s67
    %p74 = scmp.eq.s32.totalorder %s15, 1
    %p75 = por %p73, %p74
    %p76 = scmp.ne.s32.totalorder %s67, %s68
    %p77 = scmp.eq.s32.totalorder %s15, 0
    %p78 = por %p76, %p77
    %p79 = scmp.ne.s32.totalorder %s67, %s68
    %p80 = scmp.eq.s32.totalorder %s16, 1
    %p81 = por %p79, %p80
    %p83 = scmp.ne.s32.totalorder %s68, %s82
    %p84 = scmp.eq.s32.totalorder %s16, 0
    %p85 = por %p83, %p84
    %s87 = sadd.s32 %s86, 1
    %p90 = scmp.eq.s32.totalorder %s10, 1
    %p91 = scmp.ne.s32.totalorder %s86, %s88
    %p92 = scmp.eq.s32.totalorder %s10, 0
    %p93 = por %p91, %p92
    %p94 = scmp.ne.s32.totalorder %s86, %s88
    %p95 = scmp.eq.s32.totalorder %s15, 1
    %p96 = por %p94, %p95
    %p97 = scmp.ne.s32.totalorder %s88, %s89
    %p98 = scmp.eq.s32.totalorder %s15, 0
    %p99 = por %p97, %p98
    %p100 = scmp.ne.s32.totalorder %s88, %s89
    %p101 = scmp.eq.s32.totalorder %s16, 1
    %p102 = por %p100, %p101
    %p104 = scmp.ne.s32.totalorder %s89, %s103
    %p105 = scmp.eq.s32.totalorder %s16, 0
    %p106 = por %p104, %p105
    %s107 = ssub.s32 %s10, %s17
    %p108 = scmp.eq.s32.totalorder %s107, 0
    %s110 = sadd.s32 %s109, 1
    %s111 = scalar_select %p108, %s109, %s110
    %p114 = pneg %p108
    %p115 = scmp.eq.s32.totalorder %s10, 1
    %p116 = por %p114, %p115
    %p117 = scmp.ne.s32.totalorder %s109, %s112
    %p118 = scmp.eq.s32.totalorder %s10, 0
    %p119 = por %p117, %p118
    %p120 = scmp.ne.s32.totalorder %s109, %s112
    %p121 = scmp.eq.s32.totalorder %s15, 1
    %p122 = por %p120, %p121
    %p123 = scmp.ne.s32.totalorder %s112, %s113
    %p124 = scmp.eq.s32.totalorder %s15, 0
    %p125 = por %p123, %p124
    %p126 = scmp.ne.s32.totalorder %s112, %s113
    %p127 = scmp.eq.s32.totalorder %s16, 1
    %p128 = por %p126, %p127
    %p130 = scmp.ne.s32.totalorder %s113, %s129
    %p131 = scmp.eq.s32.totalorder %s16, 0
    %p132 = por %p130, %p131
    %p133 = scmp.le.s32.totalorder 1, %s10
    %p134 = scmp.lt.s32.totalorder %s10, 3
    %p135 = pnand %p133, %p134
    %p136 = pneg %p135
    // Predicated region
    $region9: #{cnn_encoder_forward.6} parent=5 // pred_check
      _
    $region10: #{cnn_encoder_forward.6} parent=5 // pred_check_branch
      %138 = sbr.rel (%p135) target = $region12
    $region11: #{cnn_encoder_forward.6} parent=5 // pred_region
      %s139 = ssub.s32 %s10, 1
      // Predicated region
      $region13: #{cnn_encoder_forward.6} parent=11 // pred_check
        %p140 = pneg %p57
      $region14: #{cnn_encoder_forward.6} parent=11 // pred_check_branch
        %142 = sbr.rel (%p140) target = $region16
      $region15: #{cnn_encoder_forward.6} parent=11 // pred_region
        _
      $region16: #{cnn_encoder_forward.6} parent=11 // pred_fallthru
        _
      // Predicated region
      $region17: #{cnn_encoder_forward.6} parent=11 // pred_check
        %p143 = pneg %p78
      $region18: #{cnn_encoder_forward.6} parent=11 // pred_check_branch
        %145 = sbr.rel (%p143) target = $region20
      $region19: #{cnn_encoder_forward.6} parent=11 // pred_region
        _
      $region20: #{cnn_encoder_forward.6} parent=11 // pred_fallthru
        _
      // Predicated region
      $region21: #{cnn_encoder_forward.6} parent=11 // pred_check
        %p146 = pneg %p99
      $region22: #{cnn_encoder_forward.6} parent=11 // pred_check_branch
        %148 = sbr.rel (%p146) target = $region24
      $region23: #{cnn_encoder_forward.6} parent=11 // pred_region
        _
      $region24: #{cnn_encoder_forward.6} parent=11 // pred_fallthru
        _
    $region12: #{cnn_encoder_forward.6} parent=5 // pred_fallthru
      _
    %p149 = scmp.lt.s32.totalorder %s10, 2
    // Predicated region
    $region25: #{cnn_encoder_forward.6} parent=5 // pred_check
      %p150 = pneg %p149
    $region26: #{cnn_encoder_forward.6} parent=5 // pred_check_branch
      %152 = sbr.rel (%p150) target = $region28
    $region27: #{cnn_encoder_forward.6} parent=5 // pred_region
      // Predicated region
      $region29: #{cnn_encoder_forward.6} parent=27 // pred_check
        %p153 = pneg %p30
      $region30: #{cnn_encoder_forward.6} parent=27 // pred_check_branch
        %155 = sbr.rel (%p153) target = $region32
      $region31: #{cnn_encoder_forward.6} parent=27 // pred_region
        %p156 = scmp.lt.s32.totalorder %s10, 1
        %s157 = scalar_select %p156, %s10, 1
        %s158 = smul.addr %s157, 42
        %s159 = smul.addr %s158, 8
        %s160 = scalar_lea.vmem %s0, %s159
      $region32: #{cnn_encoder_forward.6} parent=27 // pred_fallthru
        _
    $region28: #{cnn_encoder_forward.6} parent=5 // pred_fallthru
      _
    %p161 = scmp.le.s32.totalorder 1, %s10
    %p162 = scmp.lt.s32.totalorder %s10, 3
    %p163 = pnand %p161, %p162
    %p164 = pneg %p163
    // Predicated region
    $region33: #{cnn_encoder_forward.6} parent=5 // pred_check
      _
    $region34: #{cnn_encoder_forward.6} parent=5 // pred_check_branch
      %166 = sbr.rel (%p163) target = $region36
    $region35: #{cnn_encoder_forward.6} parent=5 // pred_region
      %s167 = ssub.s32 %s10, 1
      %p168 = scmp.lt.s32.totalorder %s15, 1
      %s169 = scalar_select %p168, %s15, 1
      %s170 = smul.addr %s169, 42
      %s171 = smul.addr %s170, 8
      %s172 = scalar_lea.vmem %s0, %s171
      %p173 = pneg %p36
      %p174 = pneg %p33
      %p175 = pneg %p57
      %p176 = pneg %p54
      %p177 = pneg %p78
      %p178 = pneg %p75
      %p179 = pneg %p99
      %p180 = pneg %p96
      %p181 = pneg %p125
      %p182 = pneg %p122
      %p183 = scmp.lt.s32.totalorder %s15, 1
      %s184 = scalar_select %p183, %s15, 1
      %s185 = smul.addr %s184, 18
      %s186 = smul.addr %s185, 8
      %s187 = scalar_lea.vmem %s4, %s186
      %p188 = scmp.lt.s32.totalorder %s15, 1
      %s189 = scalar_select %p188, %s15, 1
      %s190 = smul.addr %s189, 42
      %s191 = smul.addr %s190, 8
      %s192 = scalar_lea.vmem %s0, %s191
      %p193 = scmp.lt.s32.totalorder %s15, 1
      %s194 = scalar_select %p193, %s15, 1
      %s195 = smul.addr %s194, 18
      %s196 = smul.addr %s195, 8
      %s197 = scalar_lea.vmem %s4, %s196
      %v198 = vld [vmem:[%s2] sm:$0x1]
      %v200 = vperm.slane %v198, 0
      %v202 = vld [vmem:[%s3] sm:$0x1]
      %v204 = vperm.slane %v202, 0
      loop: start=0, step=1, limit=9
      $region37: #{cnn_encoder_forward.6} parent=35 // loop_pre_header
        _
      $region38: #{cnn_encoder_forward.6} parent=35 // loop_header
        %s207 = sphi 0, %s211
        %p208 = scmp.ge.s32.totalorder %s207, 9
      $region39: #{cnn_encoder_forward.6} parent=35 // loop_header_branch
        %210 = sbr.rel (%p208) target = $region43
      $region40: #{cnn_encoder_forward.6} parent=35 // loop_body
        %s212 = smul.u32 %s207, 2
        %s213 = smul.u32 %s212, 16
        %s214 = scalar_lea.vmem %s192, %s213
        %v215 = vld [vmem:[%s214] sm:$0xff]
        %v216 = vld [vmem:[%s214 + $0x8] sm:$0x7]
        %s217 = sadd.s32 %s212, 1
        %s218 = smul.u32 %s217, 16
        %s219 = scalar_lea.vmem %s192, %s218
        %v220 = vld [vmem:[%s219] sm:$0xff]
        %v221 = vld [vmem:[%s219 + $0x8] sm:$0x7]
        %s222 = sadd.s32 %s212, 2
        %s223 = smul.u32 %s222, 16
        %s224 = scalar_lea.vmem %s192, %s223
        %v225 = vld [vmem:[%s224] sm:$0xff]
        %v226 = vld [vmem:[%s224 + $0x8] sm:$0x7]
        %s227 = sadd.s32 %s212, 3
        %s228 = smul.u32 %s227, 16
        %s229 = scalar_lea.vmem %s192, %s228
        %v230 = vld [vmem:[%s229] sm:$0xff]
        %v231 = vld [vmem:[%s229 + $0x8] sm:$0x7]
        %vm234 = vcmask 1046528
        %v235 = vrot.slane %v215, 1
        %v236 = vrot.slane %v216, 1
        %v237 = vsel %vm234, %v235, %v236
        %v242 = vrot.slane %v220, 1
        %v243 = vrot.slane %v221, 1
        %v244 = vsel %vm234, %v242, %v243
        %v249 = vrot.slane %v225, 1
        %v250 = vrot.slane %v226, 1
        %v251 = vsel %vm234, %v249, %v250
        %v254 = vld [vmem:[%s1] sm:$0xff]
        %v255 = vld [vmem:[%s1 + $0x8] sm:$0xff]
        %v256 = vld [vmem:[%s1 + $0x10] sm:$0xff]
        %v257 = vld [vmem:[%s1 + $0x18] sm:$0xff]
        %v258 = vld [vmem:[%s1 + $0x20] sm:$0xff]
        %v259 = vld [vmem:[%s1 + $0x28] sm:$0xff]
        %v260 = vld [vmem:[%s1 + $0x30] sm:$0xff]
        %v261 = vld [vmem:[%s1 + $0x38] sm:$0xff]
        %v262 = vld [vmem:[%s1 + $0x40] sm:$0xff]
        %v263 = vld [vmem:[%s1 + $0x48] sm:$0xff]
        %v264 = vld [vmem:[%s1 + $0x50] sm:$0xff]
        %v265 = vld [vmem:[%s1 + $0x58] sm:$0xff]
        %v266 = vld [vmem:[%s1 + $0x60] sm:$0xff]
        %v267 = vld [vmem:[%s1 + $0x68] sm:$0xff]
        %v268 = vld [vmem:[%s1 + $0x70] sm:$0xff]
        %v269 = vld [vmem:[%s1 + $0x78] sm:$0xff]
        %v270 = vld [vmem:[%s1 + $0x80] sm:$0xff]
        %v271 = vld [vmem:[%s1 + $0x88] sm:$0xff]
        %v272 = vld [vmem:[%s1 + $0x90] sm:$0xff]
        %v273 = vld [vmem:[%s1 + $0x98] sm:$0xff]
        %v274 = vld [vmem:[%s1 + $0xa0] sm:$0xff]
        %v275 = vld [vmem:[%s1 + $0xa8] sm:$0xff]
        %v276 = vld [vmem:[%s1 + $0xb0] sm:$0xff]
        %v277 = vld [vmem:[%s1 + $0xb8] sm:$0xff]
        %v278 = vld [vmem:[%s1 + $0xc0] sm:$0xff]
        %v279 = vld [vmem:[%s1 + $0xc8] sm:$0xff]
        %v280 = vld [vmem:[%s1 + $0xd0] sm:$0xff]
        %v281 = vld [vmem:[%s1 + $0xd8] sm:$0xff]
        %v282 = vld [vmem:[%s1 + $0xe0] sm:$0xff]
        %v283 = vld [vmem:[%s1 + $0xe8] sm:$0xff]
        %v284 = vld [vmem:[%s1 + $0xf0] sm:$0xff]
        %v285 = vld [vmem:[%s1 + $0xf8] sm:$0xff]
        %v286 = vld [vmem:[%s1 + $0x100] sm:$0xff]
        %v287 = vld [vmem:[%s1 + $0x108] sm:$0xff]
        %v288 = vld [vmem:[%s1 + $0x110] sm:$0xff]
        %v289 = vld [vmem:[%s1 + $0x118] sm:$0xff]
        %v290 = vld [vmem:[%s1 + $0x120] sm:$0xff]
        %v291 = vld [vmem:[%s1 + $0x128] sm:$0xff]
        %v292 = vld [vmem:[%s1 + $0x130] sm:$0xff]
        %v293 = vld [vmem:[%s1 + $0x138] sm:$0xff]
        %v294 = vld [vmem:[%s1 + $0x140] sm:$0xff]
        %v295 = vld [vmem:[%s1 + $0x148] sm:$0xff]
        %v296 = vld [vmem:[%s1 + $0x150] sm:$0xff]
        %v297 = vld [vmem:[%s1 + $0x158] sm:$0xff]
        %v298 = vld [vmem:[%s1 + $0x160] sm:$0xff]
        %v299 = vld [vmem:[%s1 + $0x168] sm:$0xff]
        %v300 = vld [vmem:[%s1 + $0x170] sm:$0xff]
        %v301 = vld [vmem:[%s1 + $0x178] sm:$0xff]
        %v302 = vld [vmem:[%s1 + $0x180] sm:$0xff]
        %v303 = vld [vmem:[%s1 + $0x188] sm:$0xff]
        %v304 = vld [vmem:[%s1 + $0x190] sm:$0xff]
        %v305 = vld [vmem:[%s1 + $0x198] sm:$0xff]
        %v306 = vld [vmem:[%s1 + $0x1a0] sm:$0xff]
        %v307 = vld [vmem:[%s1 + $0x1a8] sm:$0xff]
        %v308 = vld [vmem:[%s1 + $0x1b0] sm:$0xff]
        %v309 = vld [vmem:[%s1 + $0x1b8] sm:$0xff]
        %v310 = vld [vmem:[%s1 + $0x1c0] sm:$0xff]
        %v311 = vld [vmem:[%s1 + $0x1c8] sm:$0xff]
        %v312 = vld [vmem:[%s1 + $0x1d0] sm:$0xff]
        %v313 = vld [vmem:[%s1 + $0x1d8] sm:$0xff]
        %v314 = vld [vmem:[%s1 + $0x1e0] sm:$0xff]
        %v315 = vld [vmem:[%s1 + $0x1e8] sm:$0xff]
        %v316 = vld [vmem:[%s1 + $0x1f0] sm:$0xff]
        %v317 = vld [vmem:[%s1 + $0x1f8] sm:$0xff]
        %v318 = vld [vmem:[%s1 + $0x200] sm:$0xff]
        %v319 = vld [vmem:[%s1 + $0x208] sm:$0xff]
        %v320 = vld [vmem:[%s1 + $0x210] sm:$0xff]
        %v321 = vld [vmem:[%s1 + $0x218] sm:$0xff]
        %v322 = vld [vmem:[%s1 + $0x220] sm:$0xff]
        %v323 = vld [vmem:[%s1 + $0x228] sm:$0xff]
        %v324 = vld [vmem:[%s1 + $0x230] sm:$0xff]
        %v325 = vld [vmem:[%s1 + $0x238] sm:$0xff]
        %v326 = vld [vmem:[%s1 + $0x240] sm:$0xff]
        %v327 = vld [vmem:[%s1 + $0x248] sm:$0xff]
        %v328 = vld [vmem:[%s1 + $0x250] sm:$0xff]
        %v329 = vld [vmem:[%s1 + $0x258] sm:$0xff]
        %v330 = vld [vmem:[%s1 + $0x260] sm:$0xff]
        %v331 = vld [vmem:[%s1 + $0x268] sm:$0xff]
        %v332 = vld [vmem:[%s1 + $0x270] sm:$0xff]
        %v333 = vld [vmem:[%s1 + $0x278] sm:$0xff]
        %v334 = vld [vmem:[%s1 + $0x280] sm:$0xff]
        %v335 = vld [vmem:[%s1 + $0x288] sm:$0xff]
        %v336 = vld [vmem:[%s1 + $0x290] sm:$0xff]
        %v337 = vld [vmem:[%s1 + $0x298] sm:$0xff]
        %v338 = vld [vmem:[%s1 + $0x2a0] sm:$0xff]
        %v339 = vld [vmem:[%s1 + $0x2a8] sm:$0xff]
        %v340 = vld [vmem:[%s1 + $0x2b0] sm:$0xff]
        %v341 = vld [vmem:[%s1 + $0x2b8] sm:$0xff]
        %v342 = vld [vmem:[%s1 + $0x2c0] sm:$0xff]
        %v343 = vld [vmem:[%s1 + $0x2c8] sm:$0xff]
        %v344 = vld [vmem:[%s1 + $0x2d0] sm:$0xff]
        %v345 = vld [vmem:[%s1 + $0x2d8] sm:$0xff]
        %v346 = vld [vmem:[%s1 + $0x2e0] sm:$0xff]
        %v347 = vld [vmem:[%s1 + $0x2e8] sm:$0xff]
        %v348 = vld [vmem:[%s1 + $0x2f0] sm:$0xff]
        %v349 = vld [vmem:[%s1 + $0x2f8] sm:$0xff]
        %350 = vmatpush.msra.mxu0 %v269
        %351 = vmatpush.msra.mxu0 %v268
        %352 = vmatpush.msra.mxu0 %v267
        %353 = vmatpush.msra.mxu0 %v266
        %354 = vmatpush.msra.mxu0 %v265
        %355 = vmatpush.msra.mxu0 %v264
        %356 = vmatpush.msra.mxu0 %v263
        %357 = vmatpush.msra.mxu0 %v262
        %358 = vmatpush.msra.mxu0 %v261
        %359 = vmatpush.msra.mxu0 %v260
        %360 = vmatpush.msra.mxu0 %v259
        %361 = vmatpush.msra.mxu0 %v258
        %362 = vmatpush.msra.mxu0 %v257
        %363 = vmatpush.msra.mxu0 %v256
        %364 = vmatpush.msra.mxu0 %v255
        %365 = vmatpush.msra.mxu0 %v254
        %366 = vmatmul.f32.gmra.mxu0 %v215
        %v367 = vpop.f32.mrf.mxu0
        %v368 = vadd.f32 0.0, %v367
        %369 = vmatmul.f32.gmra.mxu0 %v216
        %v370 = vpop.f32.mrf.mxu0
        %v371 = vadd.f32 0.0, %v370
        %372 = vdwg.mxu0
        %373 = vmatpush.msra.mxu0 %v285
        %374 = vmatpush.msra.mxu0 %v284
        %375 = vmatpush.msra.mxu0 %v283
        %376 = vmatpush.msra.mxu0 %v282
        %377 = vmatpush.msra.mxu0 %v281
        %378 = vmatpush.msra.mxu0 %v280
        %379 = vmatpush.msra.mxu0 %v279
        %380 = vmatpush.msra.mxu0 %v278
        %381 = vmatpush.msra.mxu0 %v277
        %382 = vmatpush.msra.mxu0 %v276
        %383 = vmatpush.msra.mxu0 %v275
        %384 = vmatpush.msra.mxu0 %v274
        %385 = vmatpush.msra.mxu0 %v273
        %386 = vmatpush.msra.mxu0 %v272
        %387 = vmatpush.msra.mxu0 %v271
        %388 = vmatpush.msra.mxu0 %v270
        %389 = vmatmul.f32.gmra.mxu0 %v237
        %v390 = vpop.f32.mrf.mxu0
        %v391 = vadd.f32 %v368, %v390
        %392 = vmatmul.f32.gmra.mxu0 %v236
        %v393 = vpop.f32.mrf.mxu0
        %v394 = vadd.f32 %v371, %v393
        %395 = vdwg.mxu0
        %396 = vmatpush.msra.mxu0 %v301
        %397 = vmatpush.msra.mxu0 %v300
        %398 = vmatpush.msra.mxu0 %v299
        %399 = vmatpush.msra.mxu0 %v298
        %400 = vmatpush.msra.mxu0 %v297
        %401 = vmatpush.msra.mxu0 %v296
        %402 = vmatpush.msra.mxu0 %v295
        %403 = vmatpush.msra.mxu0 %v294
        %404 = vmatpush.msra.mxu0 %v293
        %405 = vmatpush.msra.mxu0 %v292
        %406 = vmatpush.msra.mxu0 %v291
        %407 = vmatpush.msra.mxu0 %v290
        %408 = vmatpush.msra.mxu0 %v289
        %409 = vmatpush.msra.mxu0 %v288
        %410 = vmatpush.msra.mxu0 %v287
        %411 = vmatpush.msra.mxu0 %v286
        %412 = vmatmul.f32.gmra.mxu0 %v220
        %v413 = vpop.f32.mrf.mxu0
        %v414 = vadd.f32 %v391, %v413
        %415 = vmatmul.f32.gmra.mxu0 %v221
        %v416 = vpop.f32.mrf.mxu0
        %v417 = vadd.f32 %v394, %v416
        %418 = vdwg.mxu0
        %419 = vmatpush.msra.mxu0 %v317
        %420 = vmatpush.msra.mxu0 %v316
        %421 = vmatpush.msra.mxu0 %v315
        %422 = vmatpush.msra.mxu0 %v314
        %423 = vmatpush.msra.mxu0 %v313
        %424 = vmatpush.msra.mxu0 %v312
        %425 = vmatpush.msra.mxu0 %v311
        %426 = vmatpush.msra.mxu0 %v310
        %427 = vmatpush.msra.mxu0 %v309
        %428 = vmatpush.msra.mxu0 %v308
        %429 = vmatpush.msra.mxu0 %v307
        %430 = vmatpush.msra.mxu0 %v306
        %431 = vmatpush.msra.mxu0 %v305
        %432 = vmatpush.msra.mxu0 %v304
        %433 = vmatpush.msra.mxu0 %v303
        %434 = vmatpush.msra.mxu0 %v302
        %435 = vmatmul.f32.gmra.mxu0 %v244
        %v436 = vpop.f32.mrf.mxu0
        %v437 = vadd.f32 %v414, %v436
        %438 = vmatmul.f32.gmra.mxu0 %v243
        %v439 = vpop.f32.mrf.mxu0
        %v440 = vadd.f32 %v417, %v439
        %441 = vdwg.mxu0
        %442 = vmatpush.msra.mxu0 %v333
        %443 = vmatpush.msra.mxu0 %v332
        %444 = vmatpush.msra.mxu0 %v331
        %445 = vmatpush.msra.mxu0 %v330
        %446 = vmatpush.msra.mxu0 %v329
        %447 = vmatpush.msra.mxu0 %v328
        %448 = vmatpush.msra.mxu0 %v327
        %449 = vmatpush.msra.mxu0 %v326
        %450 = vmatpush.msra.mxu0 %v325
        %451 = vmatpush.msra.mxu0 %v324
        %452 = vmatpush.msra.mxu0 %v323
        %453 = vmatpush.msra.mxu0 %v322
        %454 = vmatpush.msra.mxu0 %v321
        %455 = vmatpush.msra.mxu0 %v320
        %456 = vmatpush.msra.mxu0 %v319
        %457 = vmatpush.msra.mxu0 %v318
        %458 = vmatmul.f32.gmra.mxu0 %v225
        %v459 = vpop.f32.mrf.mxu0
        %v460 = vadd.f32 %v437, %v459
        %461 = vmatmul.f32.gmra.mxu0 %v226
        %v462 = vpop.f32.mrf.mxu0
        %v463 = vadd.f32 %v440, %v462
        %464 = vdwg.mxu0
        %465 = vmatpush.msra.mxu0 %v349
        %466 = vmatpush.msra.mxu0 %v348
        %467 = vmatpush.msra.mxu0 %v347
        %468 = vmatpush.msra.mxu0 %v346
        %469 = vmatpush.msra.mxu0 %v345
        %470 = vmatpush.msra.mxu0 %v344
        %471 = vmatpush.msra.mxu0 %v343
        %472 = vmatpush.msra.mxu0 %v342
        %473 = vmatpush.msra.mxu0 %v341
        %474 = vmatpush.msra.mxu0 %v340
        %475 = vmatpush.msra.mxu0 %v339
        %476 = vmatpush.msra.mxu0 %v338
        %477 = vmatpush.msra.mxu0 %v337
        %478 = vmatpush.msra.mxu0 %v336
        %479 = vmatpush.msra.mxu0 %v335
        %480 = vmatpush.msra.mxu0 %v334
        %481 = vmatmul.f32.gmra.mxu0 %v251
        %v482 = vpop.f32.mrf.mxu0
        %v483 = vadd.f32 %v460, %v482
        %484 = vmatmul.f32.gmra.mxu0 %v250
        %v485 = vpop.f32.mrf.mxu0
        %v486 = vadd.f32 %v463, %v485
        %487 = vdwg.mxu0
        %v488 = vmul.f32 %v483, %v200
        %v489 = vmul.f32 %v486, %v200
        %v490 = vadd.f32 %v488, %v204
        %v491 = vadd.f32 %v489, %v204
        %v494 = vrot.slane %v230, 1
        %v495 = vrot.slane %v231, 1
        %v496 = vsel %vm234, %v494, %v495
        %499 = vmatpush.msra.mxu0 %v269
        %500 = vmatpush.msra.mxu0 %v268
        %501 = vmatpush.msra.mxu0 %v267
        %502 = vmatpush.msra.mxu0 %v266
        %503 = vmatpush.msra.mxu0 %v265
        %504 = vmatpush.msra.mxu0 %v264
        %505 = vmatpush.msra.mxu0 %v263
        %506 = vmatpush.msra.mxu0 %v262
        %507 = vmatpush.msra.mxu0 %v261
        %508 = vmatpush.msra.mxu0 %v260
        %509 = vmatpush.msra.mxu0 %v259
        %510 = vmatpush.msra.mxu0 %v258
        %511 = vmatpush.msra.mxu0 %v257
        %512 = vmatpush.msra.mxu0 %v256
        %513 = vmatpush.msra.mxu0 %v255
        %514 = vmatpush.msra.mxu0 %v254
        %515 = vmatmul.f32.gmra.mxu0 %v220
        %v516 = vpop.f32.mrf.mxu0
        %v517 = vadd.f32 0.0, %v516
        %518 = vmatmul.f32.gmra.mxu0 %v221
        %v519 = vpop.f32.mrf.mxu0
        %v520 = vadd.f32 0.0, %v519
        %521 = vdwg.mxu0
        %522 = vmatpush.msra.mxu0 %v285
        %523 = vmatpush.msra.mxu0 %v284
        %524 = vmatpush.msra.mxu0 %v283
        %525 = vmatpush.msra.mxu0 %v282
        %526 = vmatpush.msra.mxu0 %v281
        %527 = vmatpush.msra.mxu0 %v280
        %528 = vmatpush.msra.mxu0 %v279
        %529 = vmatpush.msra.mxu0 %v278
        %530 = vmatpush.msra.mxu0 %v277
        %531 = vmatpush.msra.mxu0 %v276
        %532 = vmatpush.msra.mxu0 %v275
        %533 = vmatpush.msra.mxu0 %v274
        %534 = vmatpush.msra.mxu0 %v273
        %535 = vmatpush.msra.mxu0 %v272
        %536 = vmatpush.msra.mxu0 %v271
        %537 = vmatpush.msra.mxu0 %v270
        %538 = vmatmul.f32.gmra.mxu0 %v244
        %v539 = vpop.f32.mrf.mxu0
        %v540 = vadd.f32 %v517, %v539
        %541 = vmatmul.f32.gmra.mxu0 %v243
        %v542 = vpop.f32.mrf.mxu0
        %v543 = vadd.f32 %v520, %v542
        %544 = vdwg.mxu0
        %545 = vmatpush.msra.mxu0 %v301
        %546 = vmatpush.msra.mxu0 %v300
        %547 = vmatpush.msra.mxu0 %v299
        %548 = vmatpush.msra.mxu0 %v298
        %549 = vmatpush.msra.mxu0 %v297
        %550 = vmatpush.msra.mxu0 %v296
        %551 = vmatpush.msra.mxu0 %v295
        %552 = vmatpush.msra.mxu0 %v294
        %553 = vmatpush.msra.mxu0 %v293
        %554 = vmatpush.msra.mxu0 %v292
        %555 = vmatpush.msra.mxu0 %v291
        %556 = vmatpush.msra.mxu0 %v290
        %557 = vmatpush.msra.mxu0 %v289
        %558 = vmatpush.msra.mxu0 %v288
        %559 = vmatpush.msra.mxu0 %v287
        %560 = vmatpush.msra.mxu0 %v286
        %561 = vmatmul.f32.gmra.mxu0 %v225
        %v562 = vpop.f32.mrf.mxu0
        %v563 = vadd.f32 %v540, %v562
        %564 = vmatmul.f32.gmra.mxu0 %v226
        %v565 = vpop.f32.mrf.mxu0
        %v566 = vadd.f32 %v543, %v565
        %567 = vdwg.mxu0
        %568 = vmatpush.msra.mxu0 %v317
        %569 = vmatpush.msra.mxu0 %v316
        %570 = vmatpush.msra.mxu0 %v315
        %571 = vmatpush.msra.mxu0 %v314
        %572 = vmatpush.msra.mxu0 %v313
        %573 = vmatpush.msra.mxu0 %v312
        %574 = vmatpush.msra.mxu0 %v311
        %575 = vmatpush.msra.mxu0 %v310
        %576 = vmatpush.msra.mxu0 %v309
        %577 = vmatpush.msra.mxu0 %v308
        %578 = vmatpush.msra.mxu0 %v307
        %579 = vmatpush.msra.mxu0 %v306
        %580 = vmatpush.msra.mxu0 %v305
        %581 = vmatpush.msra.mxu0 %v304
        %582 = vmatpush.msra.mxu0 %v303
        %583 = vmatpush.msra.mxu0 %v302
        %584 = vmatmul.f32.gmra.mxu0 %v251
        %v585 = vpop.f32.mrf.mxu0
        %v586 = vadd.f32 %v563, %v585
        %587 = vmatmul.f32.gmra.mxu0 %v250
        %v588 = vpop.f32.mrf.mxu0
        %v589 = vadd.f32 %v566, %v588
        %590 = vdwg.mxu0
        %591 = vmatpush.msra.mxu0 %v333
        %592 = vmatpush.msra.mxu0 %v332
        %593 = vmatpush.msra.mxu0 %v331
        %594 = vmatpush.msra.mxu0 %v330
        %595 = vmatpush.msra.mxu0 %v329
        %596 = vmatpush.msra.mxu0 %v328
        %597 = vmatpush.msra.mxu0 %v327
        %598 = vmatpush.msra.mxu0 %v326
        %599 = vmatpush.msra.mxu0 %v325
        %600 = vmatpush.msra.mxu0 %v324
        %601 = vmatpush.msra.mxu0 %v323
        %602 = vmatpush.msra.mxu0 %v322
        %603 = vmatpush.msra.mxu0 %v321
        %604 = vmatpush.msra.mxu0 %v320
        %605 = vmatpush.msra.mxu0 %v319
        %606 = vmatpush.msra.mxu0 %v318
        %607 = vmatmul.f32.gmra.mxu0 %v230
        %v608 = vpop.f32.mrf.mxu0
        %v609 = vadd.f32 %v586, %v608
        %610 = vmatmul.f32.gmra.mxu0 %v231
        %v611 = vpop.f32.mrf.mxu0
        %v612 = vadd.f32 %v589, %v611
        %613 = vdwg.mxu0
        %614 = vmatpush.msra.mxu0 %v349
        %615 = vmatpush.msra.mxu0 %v348
        %616 = vmatpush.msra.mxu0 %v347
        %617 = vmatpush.msra.mxu0 %v346
        %618 = vmatpush.msra.mxu0 %v345
        %619 = vmatpush.msra.mxu0 %v344
        %620 = vmatpush.msra.mxu0 %v343
        %621 = vmatpush.msra.mxu0 %v342
        %622 = vmatpush.msra.mxu0 %v341
        %623 = vmatpush.msra.mxu0 %v340
        %624 = vmatpush.msra.mxu0 %v339
        %625 = vmatpush.msra.mxu0 %v338
        %626 = vmatpush.msra.mxu0 %v337
        %627 = vmatpush.msra.mxu0 %v336
        %628 = vmatpush.msra.mxu0 %v335
        %629 = vmatpush.msra.mxu0 %v334
        %630 = vmatmul.f32.gmra.mxu0 %v496
        %v631 = vpop.f32.mrf.mxu0
        %v632 = vadd.f32 %v609, %v631
        %633 = vmatmul.f32.gmra.mxu0 %v495
        %v634 = vpop.f32.mrf.mxu0
        %v635 = vadd.f32 %v612, %v634
        %636 = vdwg.mxu0
        %v637 = vmul.f32 %v632, %v200
        %v638 = vmul.f32 %v635, %v200
        %v639 = vadd.f32 %v637, %v204
        %v640 = vadd.f32 %v638, %v204
        %v641 = vmax.f32 %v490, %v639
        %v642 = vmax.f32 %v491, %v640
        %v643 = vmax.f32 %v641, 0.0
        %v644 = vmax.f32 %v642, 0.0
        %647 = vrot.lane.b32.xlu0 %v643, 64
        %v648 = vpop.permute.xlu0 %647
        %649 = vrot.lane.b32.xlu0 %v644, 64
        %v650 = vpop.permute.xlu0 %649
        %v653 = vmax.f32 %v643, %v648
        %v654 = vmax.f32 %v644, %v650
        %s655 = smul.u32 %s207, 16
        %s656 = scalar_lea.vmem %s197, %s655
        %vm657 = vcmask 523264
        %658 = vst.msk [vmem:[%s656] sm:$0xff] %vm657, %v653
        %vm659 = vcmask 516096
        %660 = vst.msk [vmem:[%s656 + $0x8] sm:$0x1] %vm659, %v654
      $region41: #{cnn_encoder_forward.6} parent=35 // loop_footer
        %s211 = sadd.s32 1, %s207
      $region42: #{cnn_encoder_forward.6} parent=35 // loop_footer_branch
        %206 = sbr.rel target = $region38
      $region43: #{cnn_encoder_forward.6} parent=35 // loop_exit
        _
      %p661 = scmp.lt.s32.totalorder %s15, 1
      %s662 = scalar_select %p661, %s15, 1
      %s663 = smul.addr %s662, 18
      %s664 = smul.addr %s663, 8
      %s665 = scalar_lea.vmem %s4, %s664
      // Predicated region
      $region44: #{cnn_encoder_forward.6} parent=35 // pred_check
        %p666 = pneg %p122
      $region45: #{cnn_encoder_forward.6} parent=35 // pred_check_branch
        %668 = sbr.rel (%p666) target = $region47
      $region46: #{cnn_encoder_forward.6} parent=35 // pred_region
        _
      $region47: #{cnn_encoder_forward.6} parent=35 // pred_fallthru
        _
    $region36: #{cnn_encoder_forward.6} parent=5 // pred_fallthru
      _
    %p669 = scmp.le.s32.totalorder 2, %s10
    // Predicated region
    $region48: #{cnn_encoder_forward.6} parent=5 // pred_check
      %p670 = pneg %p669
    $region49: #{cnn_encoder_forward.6} parent=5 // pred_check_branch
      %672 = sbr.rel (%p670) target = $region51
    $region50: #{cnn_encoder_forward.6} parent=5 // pred_region
      %s673 = ssub.s32 %s10, 2
      // Predicated region
      $region52: #{cnn_encoder_forward.6} parent=50 // pred_check
        %p674 = pneg %p128
      $region53: #{cnn_encoder_forward.6} parent=50 // pred_check_branch
        %676 = sbr.rel (%p674) target = $region55
      $region54: #{cnn_encoder_forward.6} parent=50 // pred_region
        %p677 = scmp.lt.s32.totalorder %s16, 1
        %s678 = scalar_select %p677, %s16, 1
        %s679 = smul.addr %s678, 18
        %s680 = smul.addr %s679, 8
        %s681 = scalar_lea.vmem %s4, %s680
      $region55: #{cnn_encoder_forward.6} parent=50 // pred_fallthru
        _
    $region51: #{cnn_encoder_forward.6} parent=5 // pred_fallthru
      _
  $region6: #{cnn_encoder_forward.6} parent=0 // loop_footer
    %s14 = sadd.s32 1, %s10
  $region7: #{cnn_encoder_forward.6} parent=0 // loop_footer_branch
    %9 = sbr.rel target = $region3
  $region8: #{cnn_encoder_forward.6} parent=0 // loop_exit
    _

// kernel: cnn_encoder_forward.7
$region0: #{cnn_encoder_forward.7}
  #allocation0 [shape = 'u32[]', space=smem, size = 0x4, offset = 0x4, fixed_abs, tag = 'smem constant byte address 0x4 - core index']
  #allocation1 [shape = 'u32[72,128]{1,0:T(1,128)}', space=vmem, size = 0x9000, scoped, tag = 'internal scratch']
  #allocation2 [shape = 'f32[1,1]{1,0:T(1,128)S(1)}', space=vmem, size = 0x200, scoped, tag = 'scoped memory for cnn_encoder_forward.7']
  %s0 = inlined_call_operand.vmem [shape: f32[2,11,6,128], index: 0, kind: input, shape index: {}]
  %s1 = inlined_call_operand.vmem [shape: f32[768,128], index: 1, kind: input, shape index: {}]
  %s2 = inlined_call_operand.vmem [shape: f32[1,128], index: 2, kind: input, shape index: {}]
  %s3 = inlined_call_operand.vmem [shape: f32[1,128], index: 3, kind: input, shape index: {}]
  %s4 = inlined_call_operand.vmem [shape: f32[4,4,64], index: 4, kind: input, shape index: {}]
  %s5 = inlined_call_operand.<no memory space> [shape: f32[1,1], index: 5, kind: input, shape index: {}]
  %s6 = inlined_call_operand.vmem [shape: f32[2,1,1], index: 6, kind: output, shape index: {}]
  %s7 = sld [smem:[#allocation0]]
  $region57: #{cnn_encoder_forward.7} parent=0
    _
  %s9 = ssub.s32 1, %s7
  %s10 = scalar_select 0, %s9, %s7
  %v11 = vstv %s5
  %12 = vst [vmem:[#allocation2] sm:$0x1] %v11
  loop: start=0, step=1, limit=4
  $region2: #{cnn_encoder_forward.7} parent=0 // loop_pre_header
    _
  $region3: #{cnn_encoder_forward.7} parent=0 // loop_header
    %s14 = sphi 0, %s18
    %p15 = scmp.ge.s32.totalorder %s14, 4
    %s24 = sphi 0, %s26
    %s27 = sphi 0, %s24
    %s28 = sphi 0, %s27
    %s44 = sphi 0, %s28
    %s48 = sphi 0, %s48
    %s50 = sphi 0, %s48
    %s51 = sphi 0, %s50
    %s65 = sphi 0, %s51
    %s69 = sphi 0, %s69
    %s71 = sphi 0, %s69
    %s72 = sphi 0, %s71
    %s86 = sphi 0, %s72
    %s90 = sphi 0, %s90
    %s92 = sphi 0, %s90
    %s93 = sphi 0, %s92
    %s107 = sphi 0, %s93
    %s111 = sphi 0, %s111
    %s113 = sphi 0, %s111
    %s114 = sphi 0, %s113
    %s128 = sphi 0, %s114
    %s132 = sphi 0, %s132
    %s134 = sphi 0, %s132
    %s135 = sphi 0, %s134
    %s149 = sphi 0, %s135
    %s155 = sphi 0, %s157
    %s158 = sphi 0, %s155
    %s159 = sphi 0, %s158
    %s175 = sphi 0, %s159
  $region4: #{cnn_encoder_forward.7} parent=0 // loop_header_branch
    %17 = sbr.rel (%p15) target = $region8
  $region5: #{cnn_encoder_forward.7} parent=0 // loop_body
    %s19 = ssub.s32 %s14, 1
    %s20 = ssub.s32 %s14, 2
    %s21 = sadd.s32 %s14, 1
    %s22 = ssub.s32 %s14, %s21
    %p23 = scmp.eq.s32.totalorder %s22, 0
    %s25 = sadd.s32 %s24, 1
    %s26 = scalar_select %p23, %s24, %s25
    %p29 = pneg %p23
    %p30 = scmp.eq.s32.totalorder %s14, 1
    %p31 = por %p29, %p30
    %p32 = scmp.ne.s32.totalorder %s24, %s27
    %p33 = scmp.eq.s32.totalorder %s14, 0
    %p34 = por %p32, %p33
    %p35 = scmp.ne.s32.totalorder %s24, %s27
    %p36 = scmp.eq.s32.totalorder %s19, 1
    %p37 = por %p35, %p36
    %p38 = scmp.ne.s32.totalorder %s27, %s28
    %p39 = scmp.eq.s32.totalorder %s19, 0
    %p40 = por %p38, %p39
    %p41 = scmp.ne.s32.totalorder %s27, %s28
    %p42 = scmp.eq.s32.totalorder %s20, 1
    %p43 = por %p41, %p42
    %p45 = scmp.ne.s32.totalorder %s28, %s44
    %p46 = scmp.eq.s32.totalorder %s20, 0
    %p47 = por %p45, %p46
    %s49 = sadd.s32 %s48, 1
    %p52 = scmp.eq.s32.totalorder %s14, 1
    %p53 = scmp.ne.s32.totalorder %s48, %s50
    %p54 = scmp.eq.s32.totalorder %s14, 0
    %p55 = por %p53, %p54
    %p56 = scmp.ne.s32.totalorder %s48, %s50
    %p57 = scmp.eq.s32.totalorder %s19, 1
    %p58 = por %p56, %p57
    %p59 = scmp.ne.s32.totalorder %s50, %s51
    %p60 = scmp.eq.s32.totalorder %s19, 0
    %p61 = por %p59, %p60
    %p62 = scmp.ne.s32.totalorder %s50, %s51
    %p63 = scmp.eq.s32.totalorder %s20, 1
    %p64 = por %p62, %p63
    %p66 = scmp.ne.s32.totalorder %s51, %s65
    %p67 = scmp.eq.s32.totalorder %s20, 0
    %p68 = por %p66, %p67
    %s70 = sadd.s32 %s69, 1
    %p73 = scmp.eq.s32.totalorder %s14, 1
    %p74 = scmp.ne.s32.totalorder %s69, %s71
    %p75 = scmp.eq.s32.totalorder %s14, 0
    %p76 = por %p74, %p75
    %p77 = scmp.ne.s32.totalorder %s69, %s71
    %p78 = scmp.eq.s32.totalorder %s19, 1
    %p79 = por %p77, %p78
    %p80 = scmp.ne.s32.totalorder %s71, %s72
    %p81 = scmp.eq.s32.totalorder %s19, 0
    %p82 = por %p80, %p81
    %p83 = scmp.ne.s32.totalorder %s71, %s72
    %p84 = scmp.eq.s32.totalorder %s20, 1
    %p85 = por %p83, %p84
    %p87 = scmp.ne.s32.totalorder %s72, %s86
    %p88 = scmp.eq.s32.totalorder %s20, 0
    %p89 = por %p87, %p88
    %s91 = sadd.s32 %s90, 1
    %p94 = scmp.eq.s32.totalorder %s14, 1
    %p95 = scmp.ne.s32.totalorder %s90, %s92
    %p96 = scmp.eq.s32.totalorder %s14, 0
    %p97 = por %p95, %p96
    %p98 = scmp.ne.s32.totalorder %s90, %s92
    %p99 = scmp.eq.s32.totalorder %s19, 1
    %p100 = por %p98, %p99
    %p101 = scmp.ne.s32.totalorder %s92, %s93
    %p102 = scmp.eq.s32.totalorder %s19, 0
    %p103 = por %p101, %p102
    %p104 = scmp.ne.s32.totalorder %s92, %s93
    %p105 = scmp.eq.s32.totalorder %s20, 1
    %p106 = por %p104, %p105
    %p108 = scmp.ne.s32.totalorder %s93, %s107
    %p109 = scmp.eq.s32.totalorder %s20, 0
    %p110 = por %p108, %p109
    %s112 = sadd.s32 %s111, 1
    %p115 = scmp.eq.s32.totalorder %s14, 1
    %p116 = scmp.ne.s32.totalorder %s111, %s113
    %p117 = scmp.eq.s32.totalorder %s14, 0
    %p118 = por %p116, %p117
    %p119 = scmp.ne.s32.totalorder %s111, %s113
    %p120 = scmp.eq.s32.totalorder %s19, 1
    %p121 = por %p119, %p120
    %p122 = scmp.ne.s32.totalorder %s113, %s114
    %p123 = scmp.eq.s32.totalorder %s19, 0
    %p124 = por %p122, %p123
    %p125 = scmp.ne.s32.totalorder %s113, %s114
    %p126 = scmp.eq.s32.totalorder %s20, 1
    %p127 = por %p125, %p126
    %p129 = scmp.ne.s32.totalorder %s114, %s128
    %p130 = scmp.eq.s32.totalorder %s20, 0
    %p131 = por %p129, %p130
    %s133 = sadd.s32 %s132, 1
    %p136 = scmp.eq.s32.totalorder %s14, 1
    %p137 = scmp.ne.s32.totalorder %s132, %s134
    %p138 = scmp.eq.s32.totalorder %s14, 0
    %p139 = por %p137, %p138
    %p140 = scmp.ne.s32.totalorder %s132, %s134
    %p141 = scmp.eq.s32.totalorder %s19, 1
    %p142 = por %p140, %p141
    %p143 = scmp.ne.s32.totalorder %s134, %s135
    %p144 = scmp.eq.s32.totalorder %s19, 0
    %p145 = por %p143, %p144
    %p146 = scmp.ne.s32.totalorder %s134, %s135
    %p147 = scmp.eq.s32.totalorder %s20, 1
    %p148 = por %p146, %p147
    %p150 = scmp.ne.s32.totalorder %s135, %s149
    %p151 = scmp.eq.s32.totalorder %s20, 0
    %p152 = por %p150, %p151
    %s153 = ssub.s32 %s14, %s21
    %p154 = scmp.eq.s32.totalorder %s153, 0
    %s156 = sadd.s32 %s155, 1
    %s157 = scalar_select %p154, %s155, %s156
    %p160 = pneg %p154
    %p161 = scmp.eq.s32.totalorder %s14, 1
    %p162 = por %p160, %p161
    %p163 = scmp.ne.s32.totalorder %s155, %s158
    %p164 = scmp.eq.s32.totalorder %s14, 0
    %p165 = por %p163, %p164
    %p166 = scmp.ne.s32.totalorder %s155, %s158
    %p167 = scmp.eq.s32.totalorder %s19, 1
    %p168 = por %p166, %p167
    %p169 = scmp.ne.s32.totalorder %s158, %s159
    %p170 = scmp.eq.s32.totalorder %s19, 0
    %p171 = por %p169, %p170
    %p172 = scmp.ne.s32.totalorder %s158, %s159
    %p173 = scmp.eq.s32.totalorder %s20, 1
    %p174 = por %p172, %p173
    %p176 = scmp.ne.s32.totalorder %s159, %s175
    %p177 = scmp.eq.s32.totalorder %s20, 0
    %p178 = por %p176, %p177
    %p179 = scmp.le.s32.totalorder 1, %s14
    %p180 = scmp.lt.s32.totalorder %s14, 3
    %p181 = pnand %p179, %p180
    %p182 = pneg %p181
    // Predicated region
    $region9: #{cnn_encoder_forward.7} parent=5 // pred_check
      _
    $region10: #{cnn_encoder_forward.7} parent=5 // pred_check_branch
      %184 = sbr.rel (%p181) target = $region12
    $region11: #{cnn_encoder_forward.7} parent=5 // pred_region
      %s185 = ssub.s32 %s14, 1
      // Predicated region
      $region13: #{cnn_encoder_forward.7} parent=11 // pred_check
        %p186 = pneg %p61
      $region14: #{cnn_encoder_forward.7} parent=11 // pred_check_branch
        %188 = sbr.rel (%p186) target = $region16
      $region15: #{cnn_encoder_forward.7} parent=11 // pred_region
        _
      $region16: #{cnn_encoder_forward.7} parent=11 // pred_fallthru
        _
      // Predicated region
      $region17: #{cnn_encoder_forward.7} parent=11 // pred_check
        %p189 = pneg %p82
      $region18: #{cnn_encoder_forward.7} parent=11 // pred_check_branch
        %191 = sbr.rel (%p189) target = $region20
      $region19: #{cnn_encoder_forward.7} parent=11 // pred_region
        _
      $region20: #{cnn_encoder_forward.7} parent=11 // pred_fallthru
        _
      // Predicated region
      $region21: #{cnn_encoder_forward.7} parent=11 // pred_check
        %p192 = pneg %p103
      $region22: #{cnn_encoder_forward.7} parent=11 // pred_check_branch
        %194 = sbr.rel (%p192) target = $region24
      $region23: #{cnn_encoder_forward.7} parent=11 // pred_region
        _
      $region24: #{cnn_encoder_forward.7} parent=11 // pred_fallthru
        _
      // Predicated region
      $region25: #{cnn_encoder_forward.7} parent=11 // pred_check
        %p195 = pneg %p124
      $region26: #{cnn_encoder_forward.7} parent=11 // pred_check_branch
        %197 = sbr.rel (%p195) target = $region28
      $region27: #{cnn_encoder_forward.7} parent=11 // pred_region
        _
      $region28: #{cnn_encoder_forward.7} parent=11 // pred_fallthru
        _
      // Predicated region
      $region29: #{cnn_encoder_forward.7} parent=11 // pred_check
        %p198 = pneg %p145
      $region30: #{cnn_encoder_forward.7} parent=11 // pred_check_branch
        %200 = sbr.rel (%p198) target = $region32
      $region31: #{cnn_encoder_forward.7} parent=11 // pred_region
        _
      $region32: #{cnn_encoder_forward.7} parent=11 // pred_fallthru
        _
    $region12: #{cnn_encoder_forward.7} parent=5 // pred_fallthru
      _
    %p201 = scmp.lt.s32.totalorder %s14, 2
    // Predicated region
    $region33: #{cnn_encoder_forward.7} parent=5 // pred_check
      %p202 = pneg %p201
    $region34: #{cnn_encoder_forward.7} parent=5 // pred_check_branch
      %204 = sbr.rel (%p202) target = $region36
    $region35: #{cnn_encoder_forward.7} parent=5 // pred_region
      // Predicated region
      $region37: #{cnn_encoder_forward.7} parent=35 // pred_check
        %p205 = pneg %p34
      $region38: #{cnn_encoder_forward.7} parent=35 // pred_check_branch
        %207 = sbr.rel (%p205) target = $region40
      $region39: #{cnn_encoder_forward.7} parent=35 // pred_region
        %p208 = scmp.lt.s32.totalorder %s14, 1
        %s209 = scalar_select %p208, %s14, 1
        %s210 = smul.addr %s209, 11
        %s211 = smul.addr %s210, 8
        %s212 = scalar_lea.vmem %s0, %s211
      $region40: #{cnn_encoder_forward.7} parent=35 // pred_fallthru
        _
    $region36: #{cnn_encoder_forward.7} parent=5 // pred_fallthru
      _
    %p213 = scmp.le.s32.totalorder 1, %s14
    %p214 = scmp.lt.s32.totalorder %s14, 3
    %p215 = pnand %p213, %p214
    %p216 = pneg %p215
    // Predicated region
    $region41: #{cnn_encoder_forward.7} parent=5 // pred_check
      _
    $region42: #{cnn_encoder_forward.7} parent=5 // pred_check_branch
      %218 = sbr.rel (%p215) target = $region44
    $region43: #{cnn_encoder_forward.7} parent=5 // pred_region
      %s219 = ssub.s32 %s14, 1
      %p220 = scmp.lt.s32.totalorder %s19, 1
      %s221 = scalar_select %p220, %s19, 1
      %s222 = smul.addr %s221, 11
      %s223 = smul.addr %s222, 8
      %s224 = scalar_lea.vmem %s0, %s223
      %p225 = pneg %p40
      %p226 = pneg %p37
      %p227 = pneg %p61
      %p228 = pneg %p58
      %p229 = pneg %p82
      %p230 = pneg %p79
      %p231 = pneg %p103
      %p232 = pneg %p100
      %p233 = pneg %p124
      %p234 = pneg %p121
      %p235 = pneg %p145
      %p236 = pneg %p142
      %p237 = pneg %p171
      %p238 = pneg %p168
      %p239 = scmp.lt.s32.totalorder %s19, 1
      %s240 = scalar_select %p239, %s19, 1
      %s241 = scalar_lea.vmem %s6, %s240
      %p242 = scmp.lt.s32.totalorder %s19, 1
      %s243 = scalar_select %p242, %s19, 1
      %s244 = smul.addr %s243, 11
      %s245 = smul.addr %s244, 8
      %s246 = scalar_lea.vmem %s0, %s245
      %p247 = scmp.lt.s32.totalorder %s19, 1
      %s248 = scalar_select %p247, %s19, 1
      %s249 = scalar_lea.vmem %s6, %s248
      %v250 = vld [vmem:[%s2] sm:$0x1]
      %v252 = vperm.slane %v250, 0
      %v254 = vld [vmem:[%s3] sm:$0x1]
      %v256 = vperm.slane %v254, 0
      %v258 = vld [vmem:[%s246] sm:$0x3f]
      %s259 = scalar_lea.vmem %s246, 8
      %v260 = vld [vmem:[%s259] sm:$0x3f]
      %s261 = scalar_lea.vmem %s246, 16
      %v262 = vld [vmem:[%s261] sm:$0x3f]
      %s263 = scalar_lea.vmem %s246, 24
      %v264 = vld [vmem:[%s263] sm:$0x3f]
      %v266 = vrot.slane %v258, 1
      %v269 = vrot.slane %v260, 1
      %v272 = vrot.slane %v262, 1
      %v274 = vld [vmem:[%s1] sm:$0xff]
      %v275 = vld [vmem:[%s1 + $0x8] sm:$0xff]
      %v276 = vld [vmem:[%s1 + $0x10] sm:$0xff]
      %v277 = vld [vmem:[%s1 + $0x18] sm:$0xff]
      %v278 = vld [vmem:[%s1 + $0x20] sm:$0xff]
      %v279 = vld [vmem:[%s1 + $0x28] sm:$0xff]
      %v280 = vld [vmem:[%s1 + $0x30] sm:$0xff]
      %v281 = vld [vmem:[%s1 + $0x38] sm:$0xff]
      %v282 = vld [vmem:[%s1 + $0x40] sm:$0xff]
      %v283 = vld [vmem:[%s1 + $0x48] sm:$0xff]
      %v284 = vld [vmem:[%s1 + $0x50] sm:$0xff]
      %v285 = vld [vmem:[%s1 + $0x58] sm:$0xff]
      %v286 = vld [vmem:[%s1 + $0x60] sm:$0xff]
      %v287 = vld [vmem:[%s1 + $0x68] sm:$0xff]
      %v288 = vld [vmem:[%s1 + $0x70] sm:$0xff]
      %v289 = vld [vmem:[%s1 + $0x78] sm:$0xff]
      %v290 = vld [vmem:[%s1 + $0x80] sm:$0xff]
      %v291 = vld [vmem:[%s1 + $0x88] sm:$0xff]
      %v292 = vld [vmem:[%s1 + $0x90] sm:$0xff]
      %v293 = vld [vmem:[%s1 + $0x98] sm:$0xff]
      %v294 = vld [vmem:[%s1 + $0xa0] sm:$0xff]
      %v295 = vld [vmem:[%s1 + $0xa8] sm:$0xff]
      %v296 = vld [vmem:[%s1 + $0xb0] sm:$0xff]
      %v297 = vld [vmem:[%s1 + $0xb8] sm:$0xff]
      %v298 = vld [vmem:[%s1 + $0xc0] sm:$0xff]
      %v299 = vld [vmem:[%s1 + $0xc8] sm:$0xff]
      %v300 = vld [vmem:[%s1 + $0xd0] sm:$0xff]
      %v301 = vld [vmem:[%s1 + $0xd8] sm:$0xff]
      %v302 = vld [vmem:[%s1 + $0xe0] sm:$0xff]
      %v303 = vld [vmem:[%s1 + $0xe8] sm:$0xff]
      %v304 = vld [vmem:[%s1 + $0xf0] sm:$0xff]
      %v305 = vld [vmem:[%s1 + $0xf8] sm:$0xff]
      %v306 = vld [vmem:[%s1 + $0x100] sm:$0xff]
      %v307 = vld [vmem:[%s1 + $0x108] sm:$0xff]
      %v308 = vld [vmem:[%s1 + $0x110] sm:$0xff]
      %v309 = vld [vmem:[%s1 + $0x118] sm:$0xff]
      %v310 = vld [vmem:[%s1 + $0x120] sm:$0xff]
      %v311 = vld [vmem:[%s1 + $0x128] sm:$0xff]
      %v312 = vld [vmem:[%s1 + $0x130] sm:$0xff]
      %v313 = vld [vmem:[%s1 + $0x138] sm:$0xff]
      %v314 = vld [vmem:[%s1 + $0x140] sm:$0xff]
      %v315 = vld [vmem:[%s1 + $0x148] sm:$0xff]
      %v316 = vld [vmem:[%s1 + $0x150] sm:$0xff]
      %v317 = vld [vmem:[%s1 + $0x158] sm:$0xff]
      %v318 = vld [vmem:[%s1 + $0x160] sm:$0xff]
      %v319 = vld [vmem:[%s1 + $0x168] sm:$0xff]
      %v320 = vld [vmem:[%s1 + $0x170] sm:$0xff]
      %v321 = vld [vmem:[%s1 + $0x178] sm:$0xff]
      %v322 = vld [vmem:[%s1 + $0x180] sm:$0xff]
      %v323 = vld [vmem:[%s1 + $0x188] sm:$0xff]
      %v324 = vld [vmem:[%s1 + $0x190] sm:$0xff]
      %v325 = vld [vmem:[%s1 + $0x198] sm:$0xff]
      %v326 = vld [vmem:[%s1 + $0x1a0] sm:$0xff]
      %v327 = vld [vmem:[%s1 + $0x1a8] sm:$0xff]
      %v328 = vld [vmem:[%s1 + $0x1b0] sm:$0xff]
      %v329 = vld [vmem:[%s1 + $0x1b8] sm:$0xff]
      %v330 = vld [vmem:[%s1 + $0x1c0] sm:$0xff]
      %v331 = vld [vmem:[%s1 + $0x1c8] sm:$0xff]
      %v332 = vld [vmem:[%s1 + $0x1d0] sm:$0xff]
      %v333 = vld [vmem:[%s1 + $0x1d8] sm:$0xff]
      %v334 = vld [vmem:[%s1 + $0x1e0] sm:$0xff]
      %v335 = vld [vmem:[%s1 + $0x1e8] sm:$0xff]
      %v336 = vld [vmem:[%s1 + $0x1f0] sm:$0xff]
      %v337 = vld [vmem:[%s1 + $0x1f8] sm:$0xff]
      %v338 = vld [vmem:[%s1 + $0x200] sm:$0xff]
      %v339 = vld [vmem:[%s1 + $0x208] sm:$0xff]
      %v340 = vld [vmem:[%s1 + $0x210] sm:$0xff]
      %v341 = vld [vmem:[%s1 + $0x218] sm:$0xff]
      %v342 = vld [vmem:[%s1 + $0x220] sm:$0xff]
      %v343 = vld [vmem:[%s1 + $0x228] sm:$0xff]
      %v344 = vld [vmem:[%s1 + $0x230] sm:$0xff]
      %v345 = vld [vmem:[%s1 + $0x238] sm:$0xff]
      %v346 = vld [vmem:[%s1 + $0x240] sm:$0xff]
      %v347 = vld [vmem:[%s1 + $0x248] sm:$0xff]
      %v348 = vld [vmem:[%s1 + $0x250] sm:$0xff]
      %v349 = vld [vmem:[%s1 + $0x258] sm:$0xff]
      %v350 = vld [vmem:[%s1 + $0x260] sm:$0xff]
      %v351 = vld [vmem:[%s1 + $0x268] sm:$0xff]
      %v352 = vld [vmem:[%s1 + $0x270] sm:$0xff]
      %v353 = vld [vmem:[%s1 + $0x278] sm:$0xff]
      %v354 = vld [vmem:[%s1 + $0x280] sm:$0xff]
      %v355 = vld [vmem:[%s1 + $0x288] sm:$0xff]
      %v356 = vld [vmem:[%s1 + $0x290] sm:$0xff]
      %v357 = vld [vmem:[%s1 + $0x298] sm:$0xff]
      %v358 = vld [vmem:[%s1 + $0x2a0] sm:$0xff]
      %v359 = vld [vmem:[%s1 + $0x2a8] sm:$0xff]
      %v360 = vld [vmem:[%s1 + $0x2b0] sm:$0xff]
      %v361 = vld [vmem:[%s1 + $0x2b8] sm:$0xff]
      %v362 = vld [vmem:[%s1 + $0x2c0] sm:$0xff]
      %v363 = vld [vmem:[%s1 + $0x2c8] sm:$0xff]
      %v364 = vld [vmem:[%s1 + $0x2d0] sm:$0xff]
      %v365 = vld [vmem:[%s1 + $0x2d8] sm:$0xff]
      %v366 = vld [vmem:[%s1 + $0x2e0] sm:$0xff]
      %v367 = vld [vmem:[%s1 + $0x2e8] sm:$0xff]
      %v368 = vld [vmem:[%s1 + $0x2f0] sm:$0xff]
      %v369 = vld [vmem:[%s1 + $0x2f8] sm:$0xff]
      %370 = vmatpush.msra.mxu0 %v289
      %371 = vmatpush.msra.mxu0 %v288
      %372 = vmatpush.msra.mxu0 %v287
      %373 = vmatpush.msra.mxu0 %v286
      %374 = vmatpush.msra.mxu0 %v285
      %375 = vmatpush.msra.mxu0 %v284
      %376 = vmatpush.msra.mxu0 %v283
      %377 = vmatpush.msra.mxu0 %v282
      %378 = vmatpush.msra.mxu0 %v281
      %379 = vmatpush.msra.mxu0 %v280
      %380 = vmatpush.msra.mxu0 %v279
      %381 = vmatpush.msra.mxu0 %v278
      %382 = vmatpush.msra.mxu0 %v277
      %383 = vmatpush.msra.mxu0 %v276
      %384 = vmatpush.msra.mxu0 %v275
      %385 = vmatpush.msra.mxu0 %v274
      %386 = vmatmul.f32.gmra.mxu0 %v258
      %v387 = vpop.f32.mrf.mxu0
      %v388 = vadd.f32 0.0, %v387
      %389 = vdwg.mxu0
      %390 = vmatpush.msra.mxu0 %v305
      %391 = vmatpush.msra.mxu0 %v304
      %392 = vmatpush.msra.mxu0 %v303
      %393 = vmatpush.msra.mxu0 %v302
      %394 = vmatpush.msra.mxu0 %v301
      %395 = vmatpush.msra.mxu0 %v300
      %396 = vmatpush.msra.mxu0 %v299
      %397 = vmatpush.msra.mxu0 %v298
      %398 = vmatpush.msra.mxu0 %v297
      %399 = vmatpush.msra.mxu0 %v296
      %400 = vmatpush.msra.mxu0 %v295
      %401 = vmatpush.msra.mxu0 %v294
      %402 = vmatpush.msra.mxu0 %v293
      %403 = vmatpush.msra.mxu0 %v292
      %404 = vmatpush.msra.mxu0 %v291
      %405 = vmatpush.msra.mxu0 %v290
      %406 = vmatmul.f32.gmra.mxu0 %v266
      %v407 = vpop.f32.mrf.mxu0
      %v408 = vadd.f32 %v388, %v407
      %409 = vdwg.mxu0
      %410 = vmatpush.msra.mxu0 %v321
      %411 = vmatpush.msra.mxu0 %v320
      %412 = vmatpush.msra.mxu0 %v319
      %413 = vmatpush.msra.mxu0 %v318
      %414 = vmatpush.msra.mxu0 %v317
      %415 = vmatpush.msra.mxu0 %v316
      %416 = vmatpush.msra.mxu0 %v315
      %417 = vmatpush.msra.mxu0 %v314
      %418 = vmatpush.msra.mxu0 %v313
      %419 = vmatpush.msra.mxu0 %v312
      %420 = vmatpush.msra.mxu0 %v311
      %421 = vmatpush.msra.mxu0 %v310
      %422 = vmatpush.msra.mxu0 %v309
      %423 = vmatpush.msra.mxu0 %v308
      %424 = vmatpush.msra.mxu0 %v307
      %425 = vmatpush.msra.mxu0 %v306
      %426 = vmatmul.f32.gmra.mxu0 %v260
      %v427 = vpop.f32.mrf.mxu0
      %v428 = vadd.f32 %v408, %v427
      %429 = vdwg.mxu0
      %430 = vmatpush.msra.mxu0 %v337
      %431 = vmatpush.msra.mxu0 %v336
      %432 = vmatpush.msra.mxu0 %v335
      %433 = vmatpush.msra.mxu0 %v334
      %434 = vmatpush.msra.mxu0 %v333
      %435 = vmatpush.msra.mxu0 %v332
      %436 = vmatpush.msra.mxu0 %v331
      %437 = vmatpush.msra.mxu0 %v330
      %438 = vmatpush.msra.mxu0 %v329
      %439 = vmatpush.msra.mxu0 %v328
      %440 = vmatpush.msra.mxu0 %v327
      %441 = vmatpush.msra.mxu0 %v326
      %442 = vmatpush.msra.mxu0 %v325
      %443 = vmatpush.msra.mxu0 %v324
      %444 = vmatpush.msra.mxu0 %v323
      %445 = vmatpush.msra.mxu0 %v322
      %446 = vmatmul.f32.gmra.mxu0 %v269
      %v447 = vpop.f32.mrf.mxu0
      %v448 = vadd.f32 %v428, %v447
      %449 = vdwg.mxu0
      %450 = vmatpush.msra.mxu0 %v353
      %451 = vmatpush.msra.mxu0 %v352
      %452 = vmatpush.msra.mxu0 %v351
      %453 = vmatpush.msra.mxu0 %v350
      %454 = vmatpush.msra.mxu0 %v349
      %455 = vmatpush.msra.mxu0 %v348
      %456 = vmatpush.msra.mxu0 %v347
      %457 = vmatpush.msra.mxu0 %v346
      %458 = vmatpush.msra.mxu0 %v345
      %459 = vmatpush.msra.mxu0 %v344
      %460 = vmatpush.msra.mxu0 %v343
      %461 = vmatpush.msra.mxu0 %v342
      %462 = vmatpush.msra.mxu0 %v341
      %463 = vmatpush.msra.mxu0 %v340
      %464 = vmatpush.msra.mxu0 %v339
      %465 = vmatpush.msra.mxu0 %v338
      %466 = vmatmul.f32.gmra.mxu0 %v262
      %v467 = vpop.f32.mrf.mxu0
      %v468 = vadd.f32 %v448, %v467
      %469 = vdwg.mxu0
      %470 = vmatpush.msra.mxu0 %v369
      %471 = vmatpush.msra.mxu0 %v368
      %472 = vmatpush.msra.mxu0 %v367
      %473 = vmatpush.msra.mxu0 %v366
      %474 = vmatpush.msra.mxu0 %v365
      %475 = vmatpush.msra.mxu0 %v364
      %476 = vmatpush.msra.mxu0 %v363
      %477 = vmatpush.msra.mxu0 %v362
      %478 = vmatpush.msra.mxu0 %v361
      %479 = vmatpush.msra.mxu0 %v360
      %480 = vmatpush.msra.mxu0 %v359
      %481 = vmatpush.msra.mxu0 %v358
      %482 = vmatpush.msra.mxu0 %v357
      %483 = vmatpush.msra.mxu0 %v356
      %484 = vmatpush.msra.mxu0 %v355
      %485 = vmatpush.msra.mxu0 %v354
      %486 = vmatmul.f32.gmra.mxu0 %v272
      %v487 = vpop.f32.mrf.mxu0
      %v488 = vadd.f32 %v468, %v487
      %489 = vdwg.mxu0
      %v490 = vmul.f32 %v488, %v252
      %v491 = vadd.f32 %v490, %v256
      %v493 = vrot.slane %v264, 1
      %495 = vmatpush.msra.mxu0 %v289
      %496 = vmatpush.msra.mxu0 %v288
      %497 = vmatpush.msra.mxu0 %v287
      %498 = vmatpush.msra.mxu0 %v286
      %499 = vmatpush.msra.mxu0 %v285
      %500 = vmatpush.msra.mxu0 %v284
      %501 = vmatpush.msra.mxu0 %v283
      %502 = vmatpush.msra.mxu0 %v282
      %503 = vmatpush.msra.mxu0 %v281
      %504 = vmatpush.msra.mxu0 %v280
      %505 = vmatpush.msra.mxu0 %v279
      %506 = vmatpush.msra.mxu0 %v278
      %507 = vmatpush.msra.mxu0 %v277
      %508 = vmatpush.msra.mxu0 %v276
      %509 = vmatpush.msra.mxu0 %v275
      %510 = vmatpush.msra.mxu0 %v274
      %511 = vmatmul.f32.gmra.mxu0 %v260
      %v512 = vpop.f32.mrf.mxu0
      %v513 = vadd.f32 0.0, %v512
      %514 = vdwg.mxu0
      %515 = vmatpush.msra.mxu0 %v305
      %516 = vmatpush.msra.mxu0 %v304
      %517 = vmatpush.msra.mxu0 %v303
      %518 = vmatpush.msra.mxu0 %v302
      %519 = vmatpush.msra.mxu0 %v301
      %520 = vmatpush.msra.mxu0 %v300
      %521 = vmatpush.msra.mxu0 %v299
      %522 = vmatpush.msra.mxu0 %v298
      %523 = vmatpush.msra.mxu0 %v297
      %524 = vmatpush.msra.mxu0 %v296
      %525 = vmatpush.msra.mxu0 %v295
      %526 = vmatpush.msra.mxu0 %v294
      %527 = vmatpush.msra.mxu0 %v293
      %528 = vmatpush.msra.mxu0 %v292
      %529 = vmatpush.msra.mxu0 %v291
      %530 = vmatpush.msra.mxu0 %v290
      %531 = vmatmul.f32.gmra.mxu0 %v269
      %v532 = vpop.f32.mrf.mxu0
      %v533 = vadd.f32 %v513, %v532
      %534 = vdwg.mxu0
      %535 = vmatpush.msra.mxu0 %v321
      %536 = vmatpush.msra.mxu0 %v320
      %537 = vmatpush.msra.mxu0 %v319
      %538 = vmatpush.msra.mxu0 %v318
      %539 = vmatpush.msra.mxu0 %v317
      %540 = vmatpush.msra.mxu0 %v316
      %541 = vmatpush.msra.mxu0 %v315
      %542 = vmatpush.msra.mxu0 %v314
      %543 = vmatpush.msra.mxu0 %v313
      %544 = vmatpush.msra.mxu0 %v312
      %545 = vmatpush.msra.mxu0 %v311
      %546 = vmatpush.msra.mxu0 %v310
      %547 = vmatpush.msra.mxu0 %v309
      %548 = vmatpush.msra.mxu0 %v308
      %549 = vmatpush.msra.mxu0 %v307
      %550 = vmatpush.msra.mxu0 %v306
      %551 = vmatmul.f32.gmra.mxu0 %v262
      %v552 = vpop.f32.mrf.mxu0
      %v553 = vadd.f32 %v533, %v552
      %554 = vdwg.mxu0
      %555 = vmatpush.msra.mxu0 %v337
      %556 = vmatpush.msra.mxu0 %v336
      %557 = vmatpush.msra.mxu0 %v335
      %558 = vmatpush.msra.mxu0 %v334
      %559 = vmatpush.msra.mxu0 %v333
      %560 = vmatpush.msra.mxu0 %v332
      %561 = vmatpush.msra.mxu0 %v331
      %562 = vmatpush.msra.mxu0 %v330
      %563 = vmatpush.msra.mxu0 %v329
      %564 = vmatpush.msra.mxu0 %v328
      %565 = vmatpush.msra.mxu0 %v327
      %566 = vmatpush.msra.mxu0 %v326
      %567 = vmatpush.msra.mxu0 %v325
      %568 = vmatpush.msra.mxu0 %v324
      %569 = vmatpush.msra.mxu0 %v323
      %570 = vmatpush.msra.mxu0 %v322
      %571 = vmatmul.f32.gmra.mxu0 %v272
      %v572 = vpop.f32.mrf.mxu0
      %v573 = vadd.f32 %v553, %v572
      %574 = vdwg.mxu0
      %575 = vmatpush.msra.mxu0 %v353
      %576 = vmatpush.msra.mxu0 %v352
      %577 = vmatpush.msra.mxu0 %v351
      %578 = vmatpush.msra.mxu0 %v350
      %579 = vmatpush.msra.mxu0 %v349
      %580 = vmatpush.msra.mxu0 %v348
      %581 = vmatpush.msra.mxu0 %v347
      %582 = vmatpush.msra.mxu0 %v346
      %583 = vmatpush.msra.mxu0 %v345
      %584 = vmatpush.msra.mxu0 %v344
      %585 = vmatpush.msra.mxu0 %v343
      %586 = vmatpush.msra.mxu0 %v342
      %587 = vmatpush.msra.mxu0 %v341
      %588 = vmatpush.msra.mxu0 %v340
      %589 = vmatpush.msra.mxu0 %v339
      %590 = vmatpush.msra.mxu0 %v338
      %591 = vmatmul.f32.gmra.mxu0 %v264
      %v592 = vpop.f32.mrf.mxu0
      %v593 = vadd.f32 %v573, %v592
      %594 = vdwg.mxu0
      %595 = vmatpush.msra.mxu0 %v369
      %596 = vmatpush.msra.mxu0 %v368
      %597 = vmatpush.msra.mxu0 %v367
      %598 = vmatpush.msra.mxu0 %v366
      %599 = vmatpush.msra.mxu0 %v365
      %600 = vmatpush.msra.mxu0 %v364
      %601 = vmatpush.msra.mxu0 %v363
      %602 = vmatpush.msra.mxu0 %v362
      %603 = vmatpush.msra.mxu0 %v361
      %604 = vmatpush.msra.mxu0 %v360
      %605 = vmatpush.msra.mxu0 %v359
      %606 = vmatpush.msra.mxu0 %v358
      %607 = vmatpush.msra.mxu0 %v357
      %608 = vmatpush.msra.mxu0 %v356
      %609 = vmatpush.msra.mxu0 %v355
      %610 = vmatpush.msra.mxu0 %v354
      %611 = vmatmul.f32.gmra.mxu0 %v493
      %v612 = vpop.f32.mrf.mxu0
      %v613 = vadd.f32 %v593, %v612
      %614 = vdwg.mxu0
      %v615 = vmul.f32 %v613, %v252
      %v616 = vadd.f32 %v615, %v256
      %v617 = vmax.f32 %v491, %v616
      %v618 = vmax.f32 %v617, 0.0
      %620 = vrot.lane.b32.xlu0 %v618, 64
      %v621 = vpop.permute.xlu0 %620
      %v623 = vmax.f32 %v618, %v621
      %v624 = vld [vmem:[%s4] sm:$0xf]
      %v625 = vmul.f32 %v623, %v624
      %vm626 = vcmask 519168
      %v627 = vsel %vm626, %v625, 0.0
      %628 = vadd.xlane.f32.xlu0 %v627
      %v629 = vpop.xlane.xlu0 %628
      %v630 = vrot.slane %v629, 4
      %v631 = vadd.f32 %v629, %v630
      %v632 = vrot.slane %v631, 2
      %v633 = vadd.f32 %v631, %v632
      %v634 = vrot.slane %v633, 1
      %v635 = vadd.f32 %v633, %v634
      %s636 = vtos %v635
      %s637 = sadd.f32 %s636, 0.0
      %s638 = scalar_lea.vmem %s246, 32
      %v639 = vld [vmem:[%s638] sm:$0x3f]
      %s640 = scalar_lea.vmem %s246, 40
      %v641 = vld [vmem:[%s640] sm:$0x3f]
      %v643 = vrot.slane %v639, 1
      %645 = vmatpush.msra.mxu0 %v289
      %646 = vmatpush.msra.mxu0 %v288
      %647 = vmatpush.msra.mxu0 %v287
      %648 = vmatpush.msra.mxu0 %v286
      %649 = vmatpush.msra.mxu0 %v285
      %650 = vmatpush.msra.mxu0 %v284
      %651 = vmatpush.msra.mxu0 %v283
      %652 = vmatpush.msra.mxu0 %v282
      %653 = vmatpush.msra.mxu0 %v281
      %654 = vmatpush.msra.mxu0 %v280
      %655 = vmatpush.msra.mxu0 %v279
      %656 = vmatpush.msra.mxu0 %v278
      %657 = vmatpush.msra.mxu0 %v277
      %658 = vmatpush.msra.mxu0 %v276
      %659 = vmatpush.msra.mxu0 %v275
      %660 = vmatpush.msra.mxu0 %v274
      %661 = vmatmul.f32.gmra.mxu0 %v262
      %v662 = vpop.f32.mrf.mxu0
      %v663 = vadd.f32 0.0, %v662
      %664 = vdwg.mxu0
      %665 = vmatpush.msra.mxu0 %v305
      %666 = vmatpush.msra.mxu0 %v304
      %667 = vmatpush.msra.mxu0 %v303
      %668 = vmatpush.msra.mxu0 %v302
      %669 = vmatpush.msra.mxu0 %v301
      %670 = vmatpush.msra.mxu0 %v300
      %671 = vmatpush.msra.mxu0 %v299
      %672 = vmatpush.msra.mxu0 %v298
      %673 = vmatpush.msra.mxu0 %v297
      %674 = vmatpush.msra.mxu0 %v296
      %675 = vmatpush.msra.mxu0 %v295
      %676 = vmatpush.msra.mxu0 %v294
      %677 = vmatpush.msra.mxu0 %v293
      %678 = vmatpush.msra.mxu0 %v292
      %679 = vmatpush.msra.mxu0 %v291
      %680 = vmatpush.msra.mxu0 %v290
      %681 = vmatmul.f32.gmra.mxu0 %v272
      %v682 = vpop.f32.mrf.mxu0
      %v683 = vadd.f32 %v663, %v682
      %684 = vdwg.mxu0
      %685 = vmatpush.msra.mxu0 %v321
      %686 = vmatpush.msra.mxu0 %v320
      %687 = vmatpush.msra.mxu0 %v319
      %688 = vmatpush.msra.mxu0 %v318
      %689 = vmatpush.msra.mxu0 %v317
      %690 = vmatpush.msra.mxu0 %v316
      %691 = vmatpush.msra.mxu0 %v315
      %692 = vmatpush.msra.mxu0 %v314
      %693 = vmatpush.msra.mxu0 %v313
      %694 = vmatpush.msra.mxu0 %v312
      %695 = vmatpush.msra.mxu0 %v311
      %696 = vmatpush.msra.mxu0 %v310
      %697 = vmatpush.msra.mxu0 %v309
      %698 = vmatpush.msra.mxu0 %v308
      %699 = vmatpush.msra.mxu0 %v307
      %700 = vmatpush.msra.mxu0 %v306
      %701 = vmatmul.f32.gmra.mxu0 %v264
      %v702 = vpop.f32.mrf.mxu0
      %v703 = vadd.f32 %v683, %v702
      %704 = vdwg.mxu0
      %705 = vmatpush.msra.mxu0 %v337
      %706 = vmatpush.msra.mxu0 %v336
      %707 = vmatpush.msra.mxu0 %v335
      %708 = vmatpush.msra.mxu0 %v334
      %709 = vmatpush.msra.mxu0 %v333
      %710 = vmatpush.msra.mxu0 %v332
      %711 = vmatpush.msra.mxu0 %v331
      %712 = vmatpush.msra.mxu0 %v330
      %713 = vmatpush.msra.mxu0 %v329
      %714 = vmatpush.msra.mxu0 %v328
      %715 = vmatpush.msra.mxu0 %v327
      %716 = vmatpush.msra.mxu0 %v326
      %717 = vmatpush.msra.mxu0 %v325
      %718 = vmatpush.msra.mxu0 %v324
      %719 = vmatpush.msra.mxu0 %v323
      %720 = vmatpush.msra.mxu0 %v322
      %721 = vmatmul.f32.gmra.mxu0 %v493
      %v722 = vpop.f32.mrf.mxu0
      %v723 = vadd.f32 %v703, %v722
      %724 = vdwg.mxu0
      %725 = vmatpush.msra.mxu0 %v353
      %726 = vmatpush.msra.mxu0 %v352
      %727 = vmatpush.msra.mxu0 %v351
      %728 = vmatpush.msra.mxu0 %v350
      %729 = vmatpush.msra.mxu0 %v349
      %730 = vmatpush.msra.mxu0 %v348
      %731 = vmatpush.msra.mxu0 %v347
      %732 = vmatpush.msra.mxu0 %v346
      %733 = vmatpush.msra.mxu0 %v345
      %734 = vmatpush.msra.mxu0 %v344
      %735 = vmatpush.msra.mxu0 %v343
      %736 = vmatpush.msra.mxu0 %v342
      %737 = vmatpush.msra.mxu0 %v341
      %738 = vmatpush.msra.mxu0 %v340
      %739 = vmatpush.msra.mxu0 %v339
      %740 = vmatpush.msra.mxu0 %v338
      %741 = vmatmul.f32.gmra.mxu0 %v639
      %v742 = vpop.f32.mrf.mxu0
      %v743 = vadd.f32 %v723, %v742
      %744 = vdwg.mxu0
      %745 = vmatpush.msra.mxu0 %v369
      %746 = vmatpush.msra.mxu0 %v368
      %747 = vmatpush.msra.mxu0 %v367
      %748 = vmatpush.msra.mxu0 %v366
      %749 = vmatpush.msra.mxu0 %v365
      %750 = vmatpush.msra.mxu0 %v364
      %751 = vmatpush.msra.mxu0 %v363
      %752 = vmatpush.msra.mxu0 %v362
      %753 = vmatpush.msra.mxu0 %v361
      %754 = vmatpush.msra.mxu0 %v360
      %755 = vmatpush.msra.mxu0 %v359
      %756 = vmatpush.msra.mxu0 %v358
      %757 = vmatpush.msra.mxu0 %v357
      %758 = vmatpush.msra.mxu0 %v356
      %759 = vmatpush.msra.mxu0 %v355
      %760 = vmatpush.msra.mxu0 %v354
      %761 = vmatmul.f32.gmra.mxu0 %v643
      %v762 = vpop.f32.mrf.mxu0
      %v763 = vadd.f32 %v743, %v762
      %764 = vdwg.mxu0
      %v765 = vmul.f32 %v763, %v252
      %v766 = vadd.f32 %v765, %v256
      %v768 = vrot.slane %v641, 1
      %770 = vmatpush.msra.mxu0 %v289
      %771 = vmatpush.msra.mxu0 %v288
      %772 = vmatpush.msra.mxu0 %v287
      %773 = vmatpush.msra.mxu0 %v286
      %774 = vmatpush.msra.mxu0 %v285
      %775 = vmatpush.msra.mxu0 %v284
      %776 = vmatpush.msra.mxu0 %v283
      %777 = vmatpush.msra.mxu0 %v282
      %778 = vmatpush.msra.mxu0 %v281
      %779 = vmatpush.msra.mxu0 %v280
      %780 = vmatpush.msra.mxu0 %v279
      %781 = vmatpush.msra.mxu0 %v278
      %782 = vmatpush.msra.mxu0 %v277
      %783 = vmatpush.msra.mxu0 %v276
      %784 = vmatpush.msra.mxu0 %v275
      %785 = vmatpush.msra.mxu0 %v274
      %786 = vmatmul.f32.gmra.mxu0 %v264
      %v787 = vpop.f32.mrf.mxu0
      %v788 = vadd.f32 0.0, %v787
      %789 = vdwg.mxu0
      %790 = vmatpush.msra.mxu0 %v305
      %791 = vmatpush.msra.mxu0 %v304
      %792 = vmatpush.msra.mxu0 %v303
      %793 = vmatpush.msra.mxu0 %v302
      %794 = vmatpush.msra.mxu0 %v301
      %795 = vmatpush.msra.mxu0 %v300
      %796 = vmatpush.msra.mxu0 %v299
      %797 = vmatpush.msra.mxu0 %v298
      %798 = vmatpush.msra.mxu0 %v297
      %799 = vmatpush.msra.mxu0 %v296
      %800 = vmatpush.msra.mxu0 %v295
      %801 = vmatpush.msra.mxu0 %v294
      %802 = vmatpush.msra.mxu0 %v293
      %803 = vmatpush.msra.mxu0 %v292
      %804 = vmatpush.msra.mxu0 %v291
      %805 = vmatpush.msra.mxu0 %v290
      %806 = vmatmul.f32.gmra.mxu0 %v493
      %v807 = vpop.f32.mrf.mxu0
      %v808 = vadd.f32 %v788, %v807
      %809 = vdwg.mxu0
      %810 = vmatpush.msra.mxu0 %v321
      %811 = vmatpush.msra.mxu0 %v320
      %812 = vmatpush.msra.mxu0 %v319
      %813 = vmatpush.msra.mxu0 %v318
      %814 = vmatpush.msra.mxu0 %v317
      %815 = vmatpush.msra.mxu0 %v316
      %816 = vmatpush.msra.mxu0 %v315
      %817 = vmatpush.msra.mxu0 %v314
      %818 = vmatpush.msra.mxu0 %v313
      %819 = vmatpush.msra.mxu0 %v312
      %820 = vmatpush.msra.mxu0 %v311
      %821 = vmatpush.msra.mxu0 %v310
      %822 = vmatpush.msra.mxu0 %v309
      %823 = vmatpush.msra.mxu0 %v308
      %824 = vmatpush.msra.mxu0 %v307
      %825 = vmatpush.msra.mxu0 %v306
      %826 = vmatmul.f32.gmra.mxu0 %v639
      %v827 = vpop.f32.mrf.mxu0
      %v828 = vadd.f32 %v808, %v827
      %829 = vdwg.mxu0
      %830 = vmatpush.msra.mxu0 %v337
      %831 = vmatpush.msra.mxu0 %v336
      %832 = vmatpush.msra.mxu0 %v335
      %833 = vmatpush.msra.mxu0 %v334
      %834 = vmatpush.msra.mxu0 %v333
      %835 = vmatpush.msra.mxu0 %v332
      %836 = vmatpush.msra.mxu0 %v331
      %837 = vmatpush.msra.mxu0 %v330
      %838 = vmatpush.msra.mxu0 %v329
      %839 = vmatpush.msra.mxu0 %v328
      %840 = vmatpush.msra.mxu0 %v327
      %841 = vmatpush.msra.mxu0 %v326
      %842 = vmatpush.msra.mxu0 %v325
      %843 = vmatpush.msra.mxu0 %v324
      %844 = vmatpush.msra.mxu0 %v323
      %845 = vmatpush.msra.mxu0 %v322
      %846 = vmatmul.f32.gmra.mxu0 %v643
      %v847 = vpop.f32.mrf.mxu0
      %v848 = vadd.f32 %v828, %v847
      %849 = vdwg.mxu0
      %850 = vmatpush.msra.mxu0 %v353
      %851 = vmatpush.msra.mxu0 %v352
      %852 = vmatpush.msra.mxu0 %v351
      %853 = vmatpush.msra.mxu0 %v350
      %854 = vmatpush.msra.mxu0 %v349
      %855 = vmatpush.msra.mxu0 %v348
      %856 = vmatpush.msra.mxu0 %v347
      %857 = vmatpush.msra.mxu0 %v346
      %858 = vmatpush.msra.mxu0 %v345
      %859 = vmatpush.msra.mxu0 %v344
      %860 = vmatpush.msra.mxu0 %v343
      %861 = vmatpush.msra.mxu0 %v342
      %862 = vmatpush.msra.mxu0 %v341
      %863 = vmatpush.msra.mxu0 %v340
      %864 = vmatpush.msra.mxu0 %v339
      %865 = vmatpush.msra.mxu0 %v338
      %866 = vmatmul.f32.gmra.mxu0 %v641
      %v867 = vpop.f32.mrf.mxu0
      %v868 = vadd.f32 %v848, %v867
      %869 = vdwg.mxu0
      %870 = vmatpush.msra.mxu0 %v369
      %871 = vmatpush.msra.mxu0 %v368
      %872 = vmatpush.msra.mxu0 %v367
      %873 = vmatpush.msra.mxu0 %v366
      %874 = vmatpush.msra.mxu0 %v365
      %875 = vmatpush.msra.mxu0 %v364
      %876 = vmatpush.msra.mxu0 %v363
      %877 = vmatpush.msra.mxu0 %v362
      %878 = vmatpush.msra.mxu0 %v361
      %879 = vmatpush.msra.mxu0 %v360
      %880 = vmatpush.msra.mxu0 %v359
      %881 = vmatpush.msra.mxu0 %v358
      %882 = vmatpush.msra.mxu0 %v357
      %883 = vmatpush.msra.mxu0 %v356
      %884 = vmatpush.msra.mxu0 %v355
      %885 = vmatpush.msra.mxu0 %v354
      %886 = vmatmul.f32.gmra.mxu0 %v768
      %v887 = vpop.f32.mrf.mxu0
      %v888 = vadd.f32 %v868, %v887
      %889 = vdwg.mxu0
      %v890 = vmul.f32 %v888, %v252
      %v891 = vadd.f32 %v890, %v256
      %v892 = vmax.f32 %v766, %v891
      %v893 = vmax.f32 %v892, 0.0
      %895 = vrot.lane.b32.xlu0 %v893, 64
      %v896 = vpop.permute.xlu0 %895
      %v898 = vmax.f32 %v893, %v896
      %s899 = scalar_lea.vmem %s4, 4
      %v900 = vld [vmem:[%s899] sm:$0xf]
      %v901 = vmul.f32 %v898, %v900
      %v902 = vsel %vm626, %v901, 0.0
      %903 = vadd.xlane.f32.xlu0 %v902
      %v904 = vpop.xlane.xlu0 %903
      %v905 = vrot.slane %v904, 4
      %v906 = vadd.f32 %v904, %v905
      %v907 = vrot.slane %v906, 2
      %v908 = vadd.f32 %v906, %v907
      %v909 = vrot.slane %v908, 1
      %v910 = vadd.f32 %v908, %v909
      %s911 = vtos %v910
      %s912 = sadd.f32 %s637, %s911
      %s913 = scalar_lea.vmem %s246, 48
      %v914 = vld [vmem:[%s913] sm:$0x3f]
      %s915 = scalar_lea.vmem %s246, 56
      %v916 = vld [vmem:[%s915] sm:$0x3f]
      %v918 = vrot.slane %v914, 1
      %920 = vmatpush.msra.mxu0 %v289
      %921 = vmatpush.msra.mxu0 %v288
      %922 = vmatpush.msra.mxu0 %v287
      %923 = vmatpush.msra.mxu0 %v286
      %924 = vmatpush.msra.mxu0 %v285
      %925 = vmatpush.msra.mxu0 %v284
      %926 = vmatpush.msra.mxu0 %v283
      %927 = vmatpush.msra.mxu0 %v282
      %928 = vmatpush.msra.mxu0 %v281
      %929 = vmatpush.msra.mxu0 %v280
      %930 = vmatpush.msra.mxu0 %v279
      %931 = vmatpush.msra.mxu0 %v278
      %932 = vmatpush.msra.mxu0 %v277
      %933 = vmatpush.msra.mxu0 %v276
      %934 = vmatpush.msra.mxu0 %v275
      %935 = vmatpush.msra.mxu0 %v274
      %936 = vmatmul.f32.gmra.mxu0 %v639
      %v937 = vpop.f32.mrf.mxu0
      %v938 = vadd.f32 0.0, %v937
      %939 = vdwg.mxu0
      %940 = vmatpush.msra.mxu0 %v305
      %941 = vmatpush.msra.mxu0 %v304
      %942 = vmatpush.msra.mxu0 %v303
      %943 = vmatpush.msra.mxu0 %v302
      %944 = vmatpush.msra.mxu0 %v301
      %945 = vmatpush.msra.mxu0 %v300
      %946 = vmatpush.msra.mxu0 %v299
      %947 = vmatpush.msra.mxu0 %v298
      %948 = vmatpush.msra.mxu0 %v297
      %949 = vmatpush.msra.mxu0 %v296
      %950 = vmatpush.msra.mxu0 %v295
      %951 = vmatpush.msra.mxu0 %v294
      %952 = vmatpush.msra.mxu0 %v293
      %953 = vmatpush.msra.mxu0 %v292
      %954 = vmatpush.msra.mxu0 %v291
      %955 = vmatpush.msra.mxu0 %v290
      %956 = vmatmul.f32.gmra.mxu0 %v643
      %v957 = vpop.f32.mrf.mxu0
      %v958 = vadd.f32 %v938, %v957
      %959 = vdwg.mxu0
      %960 = vmatpush.msra.mxu0 %v321
      %961 = vmatpush.msra.mxu0 %v320
      %962 = vmatpush.msra.mxu0 %v319
      %963 = vmatpush.msra.mxu0 %v318
      %964 = vmatpush.msra.mxu0 %v317
      %965 = vmatpush.msra.mxu0 %v316
      %966 = vmatpush.msra.mxu0 %v315
      %967 = vmatpush.msra.mxu0 %v314
      %968 = vmatpush.msra.mxu0 %v313
      %969 = vmatpush.msra.mxu0 %v312
      %970 = vmatpush.msra.mxu0 %v311
      %971 = vmatpush.msra.mxu0 %v310
      %972 = vmatpush.msra.mxu0 %v309
      %973 = vmatpush.msra.mxu0 %v308
      %974 = vmatpush.msra.mxu0 %v307
      %975 = vmatpush.msra.mxu0 %v306
      %976 = vmatmul.f32.gmra.mxu0 %v641
      %v977 = vpop.f32.mrf.mxu0
      %v978 = vadd.f32 %v958, %v977
      %979 = vdwg.mxu0
      %980 = vmatpush.msra.mxu0 %v337
      %981 = vmatpush.msra.mxu0 %v336
      %982 = vmatpush.msra.mxu0 %v335
      %983 = vmatpush.msra.mxu0 %v334
      %984 = vmatpush.msra.mxu0 %v333
      %985 = vmatpush.msra.mxu0 %v332
      %986 = vmatpush.msra.mxu0 %v331
      %987 = vmatpush.msra.mxu0 %v330
      %988 = vmatpush.msra.mxu0 %v329
      %989 = vmatpush.msra.mxu0 %v328
      %990 = vmatpush.msra.mxu0 %v327
      %991 = vmatpush.msra.mxu0 %v326
      %992 = vmatpush.msra.mxu0 %v325
      %993 = vmatpush.msra.mxu0 %v324
      %994 = vmatpush.msra.mxu0 %v323
      %995 = vmatpush.msra.mxu0 %v322
      %996 = vmatmul.f32.gmra.mxu0 %v768
      %v997 = vpop.f32.mrf.mxu0
      %v998 = vadd.f32 %v978, %v997
      %999 = vdwg.mxu0
      %1000 = vmatpush.msra.mxu0 %v353
      %1001 = vmatpush.msra.mxu0 %v352
      %1002 = vmatpush.msra.mxu0 %v351
      %1003 = vmatpush.msra.mxu0 %v350
      %1004 = vmatpush.msra.mxu0 %v349
      %1005 = vmatpush.msra.mxu0 %v348
      %1006 = vmatpush.msra.mxu0 %v347
      %1007 = vmatpush.msra.mxu0 %v346
      %1008 = vmatpush.msra.mxu0 %v345
      %1009 = vmatpush.msra.mxu0 %v344
      %1010 = vmatpush.msra.mxu0 %v343
      %1011 = vmatpush.msra.mxu0 %v342
      %1012 = vmatpush.msra.mxu0 %v341
      %1013 = vmatpush.msra.mxu0 %v340
      %1014 = vmatpush.msra.mxu0 %v339
      %1015 = vmatpush.msra.mxu0 %v338
      %1016 = vmatmul.f32.gmra.mxu0 %v914
      %v1017 = vpop.f32.mrf.mxu0
      %v1018 = vadd.f32 %v998, %v1017
      %1019 = vdwg.mxu0
      %1020 = vmatpush.msra.mxu0 %v369
      %1021 = vmatpush.msra.mxu0 %v368
      %1022 = vmatpush.msra.mxu0 %v367
      %1023 = vmatpush.msra.mxu0 %v366
      %1024 = vmatpush.msra.mxu0 %v365
      %1025 = vmatpush.msra.mxu0 %v364
      %1026 = vmatpush.msra.mxu0 %v363
      %1027 = vmatpush.msra.mxu0 %v362
      %1028 = vmatpush.msra.mxu0 %v361
      %1029 = vmatpush.msra.mxu0 %v360
      %1030 = vmatpush.msra.mxu0 %v359
      %1031 = vmatpush.msra.mxu0 %v358
      %1032 = vmatpush.msra.mxu0 %v357
      %1033 = vmatpush.msra.mxu0 %v356
      %1034 = vmatpush.msra.mxu0 %v355
      %1035 = vmatpush.msra.mxu0 %v354
      %1036 = vmatmul.f32.gmra.mxu0 %v918
      %v1037 = vpop.f32.mrf.mxu0
      %v1038 = vadd.f32 %v1018, %v1037
      %1039 = vdwg.mxu0
      %v1040 = vmul.f32 %v1038, %v252
      %v1041 = vadd.f32 %v1040, %v256
      %v1043 = vrot.slane %v916, 1
      %1045 = vmatpush.msra.mxu0 %v289
      %1046 = vmatpush.msra.mxu0 %v288
      %1047 = vmatpush.msra.mxu0 %v287
      %1048 = vmatpush.msra.mxu0 %v286
      %1049 = vmatpush.msra.mxu0 %v285
      %1050 = vmatpush.msra.mxu0 %v284
      %1051 = vmatpush.msra.mxu0 %v283
      %1052 = vmatpush.msra.mxu0 %v282
      %1053 = vmatpush.msra.mxu0 %v281
      %1054 = vmatpush.msra.mxu0 %v280
      %1055 = vmatpush.msra.mxu0 %v279
      %1056 = vmatpush.msra.mxu0 %v278
      %1057 = vmatpush.msra.mxu0 %v277
      %1058 = vmatpush.msra.mxu0 %v276
      %1059 = vmatpush.msra.mxu0 %v275
      %1060 = vmatpush.msra.mxu0 %v274
      %1061 = vmatmul.f32.gmra.mxu0 %v641
      %v1062 = vpop.f32.mrf.mxu0
      %v1063 = vadd.f32 0.0, %v1062
      %1064 = vdwg.mxu0
      %1065 = vmatpush.msra.mxu0 %v305
      %1066 = vmatpush.msra.mxu0 %v304
      %1067 = vmatpush.msra.mxu0 %v303
      %1068 = vmatpush.msra.mxu0 %v302
      %1069 = vmatpush.msra.mxu0 %v301
      %1070 = vmatpush.msra.mxu0 %v300
      %1071 = vmatpush.msra.mxu0 %v299
      %1072 = vmatpush.msra.mxu0 %v298
      %1073 = vmatpush.msra.mxu0 %v297
      %1074 = vmatpush.msra.mxu0 %v296
      %1075 = vmatpush.msra.mxu0 %v295
      %1076 = vmatpush.msra.mxu0 %v294
      %1077 = vmatpush.msra.mxu0 %v293
      %1078 = vmatpush.msra.mxu0 %v292
      %1079 = vmatpush.msra.mxu0 %v291
      %1080 = vmatpush.msra.mxu0 %v290
      %1081 = vmatmul.f32.gmra.mxu0 %v768
      %v1082 = vpop.f32.mrf.mxu0
      %v1083 = vadd.f32 %v1063, %v1082
      %1084 = vdwg.mxu0
      %1085 = vmatpush.msra.mxu0 %v321
      %1086 = vmatpush.msra.mxu0 %v320
      %1087 = vmatpush.msra.mxu0 %v319
      %1088 = vmatpush.msra.mxu0 %v318
      %1089 = vmatpush.msra.mxu0 %v317
      %1090 = vmatpush.msra.mxu0 %v316
      %1091 = vmatpush.msra.mxu0 %v315
      %1092 = vmatpush.msra.mxu0 %v314
      %1093 = vmatpush.msra.mxu0 %v313
      %1094 = vmatpush.msra.mxu0 %v312
      %1095 = vmatpush.msra.mxu0 %v311
      %1096 = vmatpush.msra.mxu0 %v310
      %1097 = vmatpush.msra.mxu0 %v309
      %1098 = vmatpush.msra.mxu0 %v308
      %1099 = vmatpush.msra.mxu0 %v307
      %1100 = vmatpush.msra.mxu0 %v306
      %1101 = vmatmul.f32.gmra.mxu0 %v914
      %v1102 = vpop.f32.mrf.mxu0
      %v1103 = vadd.f32 %v1083, %v1102
      %1104 = vdwg.mxu0
      %1105 = vmatpush.msra.mxu0 %v337
      %1106 = vmatpush.msra.mxu0 %v336
      %1107 = vmatpush.msra.mxu0 %v335
      %1108 = vmatpush.msra.mxu0 %v334
      %1109 = vmatpush.msra.mxu0 %v333
      %1110 = vmatpush.msra.mxu0 %v332
      %1111 = vmatpush.msra.mxu0 %v331
      %1112 = vmatpush.msra.mxu0 %v330
      %1113 = vmatpush.msra.mxu0 %v329
      %1114 = vmatpush.msra.mxu0 %v328
      %1115 = vmatpush.msra.mxu0 %v327
      %1116 = vmatpush.msra.mxu0 %v326
      %1117 = vmatpush.msra.mxu0 %v325
      %1118 = vmatpush.msra.mxu0 %v324
      %1119 = vmatpush.msra.mxu0 %v323
      %1120 = vmatpush.msra.mxu0 %v322
      %1121 = vmatmul.f32.gmra.mxu0 %v918
      %v1122 = vpop.f32.mrf.mxu0
      %v1123 = vadd.f32 %v1103, %v1122
      %1124 = vdwg.mxu0
      %1125 = vmatpush.msra.mxu0 %v353
      %1126 = vmatpush.msra.mxu0 %v352
      %1127 = vmatpush.msra.mxu0 %v351
      %1128 = vmatpush.msra.mxu0 %v350
      %1129 = vmatpush.msra.mxu0 %v349
      %1130 = vmatpush.msra.mxu0 %v348
      %1131 = vmatpush.msra.mxu0 %v347
      %1132 = vmatpush.msra.mxu0 %v346
      %1133 = vmatpush.msra.mxu0 %v345
      %1134 = vmatpush.msra.mxu0 %v344
      %1135 = vmatpush.msra.mxu0 %v343
      %1136 = vmatpush.msra.mxu0 %v342
      %1137 = vmatpush.msra.mxu0 %v341
      %1138 = vmatpush.msra.mxu0 %v340
      %1139 = vmatpush.msra.mxu0 %v339
      %1140 = vmatpush.msra.mxu0 %v338
      %1141 = vmatmul.f32.gmra.mxu0 %v916
      %v1142 = vpop.f32.mrf.mxu0
      %v1143 = vadd.f32 %v1123, %v1142
      %1144 = vdwg.mxu0
      %1145 = vmatpush.msra.mxu0 %v369
      %1146 = vmatpush.msra.mxu0 %v368
      %1147 = vmatpush.msra.mxu0 %v367
      %1148 = vmatpush.msra.mxu0 %v366
      %1149 = vmatpush.msra.mxu0 %v365
      %1150 = vmatpush.msra.mxu0 %v364
      %1151 = vmatpush.msra.mxu0 %v363
      %1152 = vmatpush.msra.mxu0 %v362
      %1153 = vmatpush.msra.mxu0 %v361
      %1154 = vmatpush.msra.mxu0 %v360
      %1155 = vmatpush.msra.mxu0 %v359
      %1156 = vmatpush.msra.mxu0 %v358
      %1157 = vmatpush.msra.mxu0 %v357
      %1158 = vmatpush.msra.mxu0 %v356
      %1159 = vmatpush.msra.mxu0 %v355
      %1160 = vmatpush.msra.mxu0 %v354
      %1161 = vmatmul.f32.gmra.mxu0 %v1043
      %v1162 = vpop.f32.mrf.mxu0
      %v1163 = vadd.f32 %v1143, %v1162
      %1164 = vdwg.mxu0
      %v1165 = vmul.f32 %v1163, %v252
      %v1166 = vadd.f32 %v1165, %v256
      %v1167 = vmax.f32 %v1041, %v1166
      %v1168 = vmax.f32 %v1167, 0.0
      %1170 = vrot.lane.b32.xlu0 %v1168, 64
      %v1171 = vpop.permute.xlu0 %1170
      %v1173 = vmax.f32 %v1168, %v1171
      %s1174 = scalar_lea.vmem %s4, 8
      %v1175 = vld [vmem:[%s1174] sm:$0xf]
      %v1176 = vmul.f32 %v1173, %v1175
      %v1177 = vsel %vm626, %v1176, 0.0
      %1178 = vadd.xlane.f32.xlu0 %v1177
      %v1179 = vpop.xlane.xlu0 %1178
      %v1180 = vrot.slane %v1179, 4
      %v1181 = vadd.f32 %v1179, %v1180
      %v1182 = vrot.slane %v1181, 2
      %v1183 = vadd.f32 %v1181, %v1182
      %v1184 = vrot.slane %v1183, 1
      %v1185 = vadd.f32 %v1183, %v1184
      %s1186 = vtos %v1185
      %s1187 = sadd.f32 %s912, %s1186
      %s1188 = scalar_lea.vmem %s246, 64
      %v1189 = vld [vmem:[%s1188] sm:$0x3f]
      %s1190 = scalar_lea.vmem %s246, 72
      %v1191 = vld [vmem:[%s1190] sm:$0x3f]
      %v1193 = vrot.slane %v1189, 1
      %1195 = vmatpush.msra.mxu0 %v289
      %1196 = vmatpush.msra.mxu0 %v288
      %1197 = vmatpush.msra.mxu0 %v287
      %1198 = vmatpush.msra.mxu0 %v286
      %1199 = vmatpush.msra.mxu0 %v285
      %1200 = vmatpush.msra.mxu0 %v284
      %1201 = vmatpush.msra.mxu0 %v283
      %1202 = vmatpush.msra.mxu0 %v282
      %1203 = vmatpush.msra.mxu0 %v281
      %1204 = vmatpush.msra.mxu0 %v280
      %1205 = vmatpush.msra.mxu0 %v279
      %1206 = vmatpush.msra.mxu0 %v278
      %1207 = vmatpush.msra.mxu0 %v277
      %1208 = vmatpush.msra.mxu0 %v276
      %1209 = vmatpush.msra.mxu0 %v275
      %1210 = vmatpush.msra.mxu0 %v274
      %1211 = vmatmul.f32.gmra.mxu0 %v914
      %v1212 = vpop.f32.mrf.mxu0
      %v1213 = vadd.f32 0.0, %v1212
      %1214 = vdwg.mxu0
      %1215 = vmatpush.msra.mxu0 %v305
      %1216 = vmatpush.msra.mxu0 %v304
      %1217 = vmatpush.msra.mxu0 %v303
      %1218 = vmatpush.msra.mxu0 %v302
      %1219 = vmatpush.msra.mxu0 %v301
      %1220 = vmatpush.msra.mxu0 %v300
      %1221 = vmatpush.msra.mxu0 %v299
      %1222 = vmatpush.msra.mxu0 %v298
      %1223 = vmatpush.msra.mxu0 %v297
      %1224 = vmatpush.msra.mxu0 %v296
      %1225 = vmatpush.msra.mxu0 %v295
      %1226 = vmatpush.msra.mxu0 %v294
      %1227 = vmatpush.msra.mxu0 %v293
      %1228 = vmatpush.msra.mxu0 %v292
      %1229 = vmatpush.msra.mxu0 %v291
      %1230 = vmatpush.msra.mxu0 %v290
      %1231 = vmatmul.f32.gmra.mxu0 %v918
      %v1232 = vpop.f32.mrf.mxu0
      %v1233 = vadd.f32 %v1213, %v1232
      %1234 = vdwg.mxu0
      %1235 = vmatpush.msra.mxu0 %v321
      %1236 = vmatpush.msra.mxu0 %v320
      %1237 = vmatpush.msra.mxu0 %v319
      %1238 = vmatpush.msra.mxu0 %v318
      %1239 = vmatpush.msra.mxu0 %v317
      %1240 = vmatpush.msra.mxu0 %v316
      %1241 = vmatpush.msra.mxu0 %v315
      %1242 = vmatpush.msra.mxu0 %v314
      %1243 = vmatpush.msra.mxu0 %v313
      %1244 = vmatpush.msra.mxu0 %v312
      %1245 = vmatpush.msra.mxu0 %v311
      %1246 = vmatpush.msra.mxu0 %v310
      %1247 = vmatpush.msra.mxu0 %v309
      %1248 = vmatpush.msra.mxu0 %v308
      %1249 = vmatpush.msra.mxu0 %v307
      %1250 = vmatpush.msra.mxu0 %v306
      %1251 = vmatmul.f32.gmra.mxu0 %v916
      %v1252 = vpop.f32.mrf.mxu0
      %v1253 = vadd.f32 %v1233, %v1252
      %1254 = vdwg.mxu0
      %1255 = vmatpush.msra.mxu0 %v337
      %1256 = vmatpush.msra.mxu0 %v336
      %1257 = vmatpush.msra.mxu0 %v335
      %1258 = vmatpush.msra.mxu0 %v334
      %1259 = vmatpush.msra.mxu0 %v333
      %1260 = vmatpush.msra.mxu0 %v332
      %1261 = vmatpush.msra.mxu0 %v331
      %1262 = vmatpush.msra.mxu0 %v330
      %1263 = vmatpush.msra.mxu0 %v329
      %1264 = vmatpush.msra.mxu0 %v328
      %1265 = vmatpush.msra.mxu0 %v327
      %1266 = vmatpush.msra.mxu0 %v326
      %1267 = vmatpush.msra.mxu0 %v325
      %1268 = vmatpush.msra.mxu0 %v324
      %1269 = vmatpush.msra.mxu0 %v323
      %1270 = vmatpush.msra.mxu0 %v322
      %1271 = vmatmul.f32.gmra.mxu0 %v1043
      %v1272 = vpop.f32.mrf.mxu0
      %v1273 = vadd.f32 %v1253, %v1272
      %1274 = vdwg.mxu0
      %1275 = vmatpush.msra.mxu0 %v353
      %1276 = vmatpush.msra.mxu0 %v352
      %1277 = vmatpush.msra.mxu0 %v351
      %1278 = vmatpush.msra.mxu0 %v350
      %1279 = vmatpush.msra.mxu0 %v349
      %1280 = vmatpush.msra.mxu0 %v348
      %1281 = vmatpush.msra.mxu0 %v347
      %1282 = vmatpush.msra.mxu0 %v346
      %1283 = vmatpush.msra.mxu0 %v345
      %1284 = vmatpush.msra.mxu0 %v344
      %1285 = vmatpush.msra.mxu0 %v343
      %1286 = vmatpush.msra.mxu0 %v342
      %1287 = vmatpush.msra.mxu0 %v341
      %1288 = vmatpush.msra.mxu0 %v340
      %1289 = vmatpush.msra.mxu0 %v339
      %1290 = vmatpush.msra.mxu0 %v338
      %1291 = vmatmul.f32.gmra.mxu0 %v1189
      %v1292 = vpop.f32.mrf.mxu0
      %v1293 = vadd.f32 %v1273, %v1292
      %1294 = vdwg.mxu0
      %1295 = vmatpush.msra.mxu0 %v369
      %1296 = vmatpush.msra.mxu0 %v368
      %1297 = vmatpush.msra.mxu0 %v367
      %1298 = vmatpush.msra.mxu0 %v366
      %1299 = vmatpush.msra.mxu0 %v365
      %1300 = vmatpush.msra.mxu0 %v364
      %1301 = vmatpush.msra.mxu0 %v363
      %1302 = vmatpush.msra.mxu0 %v362
      %1303 = vmatpush.msra.mxu0 %v361
      %1304 = vmatpush.msra.mxu0 %v360
      %1305 = vmatpush.msra.mxu0 %v359
      %1306 = vmatpush.msra.mxu0 %v358
      %1307 = vmatpush.msra.mxu0 %v357
      %1308 = vmatpush.msra.mxu0 %v356
      %1309 = vmatpush.msra.mxu0 %v355
      %1310 = vmatpush.msra.mxu0 %v354
      %1311 = vmatmul.f32.gmra.mxu0 %v1193
      %v1312 = vpop.f32.mrf.mxu0
      %v1313 = vadd.f32 %v1293, %v1312
      %1314 = vdwg.mxu0
      %v1315 = vmul.f32 %v1313, %v252
      %v1316 = vadd.f32 %v1315, %v256
      %v1318 = vrot.slane %v1191, 1
      %1320 = vmatpush.msra.mxu0 %v289
      %1321 = vmatpush.msra.mxu0 %v288
      %1322 = vmatpush.msra.mxu0 %v287
      %1323 = vmatpush.msra.mxu0 %v286
      %1324 = vmatpush.msra.mxu0 %v285
      %1325 = vmatpush.msra.mxu0 %v284
      %1326 = vmatpush.msra.mxu0 %v283
      %1327 = vmatpush.msra.mxu0 %v282
      %1328 = vmatpush.msra.mxu0 %v281
      %1329 = vmatpush.msra.mxu0 %v280
      %1330 = vmatpush.msra.mxu0 %v279
      %1331 = vmatpush.msra.mxu0 %v278
      %1332 = vmatpush.msra.mxu0 %v277
      %1333 = vmatpush.msra.mxu0 %v276
      %1334 = vmatpush.msra.mxu0 %v275
      %1335 = vmatpush.msra.mxu0 %v274
      %1336 = vmatmul.f32.gmra.mxu0 %v916
      %v1337 = vpop.f32.mrf.mxu0
      %v1338 = vadd.f32 0.0, %v1337
      %1339 = vdwg.mxu0
      %1340 = vmatpush.msra.mxu0 %v305
      %1341 = vmatpush.msra.mxu0 %v304
      %1342 = vmatpush.msra.mxu0 %v303
      %1343 = vmatpush.msra.mxu0 %v302
      %1344 = vmatpush.msra.mxu0 %v301
      %1345 = vmatpush.msra.mxu0 %v300
      %1346 = vmatpush.msra.mxu0 %v299
      %1347 = vmatpush.msra.mxu0 %v298
      %1348 = vmatpush.msra.mxu0 %v297
      %1349 = vmatpush.msra.mxu0 %v296
      %1350 = vmatpush.msra.mxu0 %v295
      %1351 = vmatpush.msra.mxu0 %v294
      %1352 = vmatpush.msra.mxu0 %v293
      %1353 = vmatpush.msra.mxu0 %v292
      %1354 = vmatpush.msra.mxu0 %v291
      %1355 = vmatpush.msra.mxu0 %v290
      %1356 = vmatmul.f32.gmra.mxu0 %v1043
      %v1357 = vpop.f32.mrf.mxu0
      %v1358 = vadd.f32 %v1338, %v1357
      %1359 = vdwg.mxu0
      %1360 = vmatpush.msra.mxu0 %v321
      %1361 = vmatpush.msra.mxu0 %v320
      %1362 = vmatpush.msra.mxu0 %v319
      %1363 = vmatpush.msra.mxu0 %v318
      %1364 = vmatpush.msra.mxu0 %v317
      %1365 = vmatpush.msra.mxu0 %v316
      %1366 = vmatpush.msra.mxu0 %v315
      %1367 = vmatpush.msra.mxu0 %v314
      %1368 = vmatpush.msra.mxu0 %v313
      %1369 = vmatpush.msra.mxu0 %v312
      %1370 = vmatpush.msra.mxu0 %v311
      %1371 = vmatpush.msra.mxu0 %v310
      %1372 = vmatpush.msra.mxu0 %v309
      %1373 = vmatpush.msra.mxu0 %v308
      %1374 = vmatpush.msra.mxu0 %v307
      %1375 = vmatpush.msra.mxu0 %v306
      %1376 = vmatmul.f32.gmra.mxu0 %v1189
      %v1377 = vpop.f32.mrf.mxu0
      %v1378 = vadd.f32 %v1358, %v1377
      %1379 = vdwg.mxu0
      %1380 = vmatpush.msra.mxu0 %v337
      %1381 = vmatpush.msra.mxu0 %v336
      %1382 = vmatpush.msra.mxu0 %v335
      %1383 = vmatpush.msra.mxu0 %v334
      %1384 = vmatpush.msra.mxu0 %v333
      %1385 = vmatpush.msra.mxu0 %v332
      %1386 = vmatpush.msra.mxu0 %v331
      %1387 = vmatpush.msra.mxu0 %v330
      %1388 = vmatpush.msra.mxu0 %v329
      %1389 = vmatpush.msra.mxu0 %v328
      %1390 = vmatpush.msra.mxu0 %v327
      %1391 = vmatpush.msra.mxu0 %v326
      %1392 = vmatpush.msra.mxu0 %v325
      %1393 = vmatpush.msra.mxu0 %v324
      %1394 = vmatpush.msra.mxu0 %v323
      %1395 = vmatpush.msra.mxu0 %v322
      %1396 = vmatmul.f32.gmra.mxu0 %v1193
      %v1397 = vpop.f32.mrf.mxu0
      %v1398 = vadd.f32 %v1378, %v1397
      %1399 = vdwg.mxu0
      %1400 = vmatpush.msra.mxu0 %v353
      %1401 = vmatpush.msra.mxu0 %v352
      %1402 = vmatpush.msra.mxu0 %v351
      %1403 = vmatpush.msra.mxu0 %v350
      %1404 = vmatpush.msra.mxu0 %v349
      %1405 = vmatpush.msra.mxu0 %v348
      %1406 = vmatpush.msra.mxu0 %v347
      %1407 = vmatpush.msra.mxu0 %v346
      %1408 = vmatpush.msra.mxu0 %v345
      %1409 = vmatpush.msra.mxu0 %v344
      %1410 = vmatpush.msra.mxu0 %v343
      %1411 = vmatpush.msra.mxu0 %v342
      %1412 = vmatpush.msra.mxu0 %v341
      %1413 = vmatpush.msra.mxu0 %v340
      %1414 = vmatpush.msra.mxu0 %v339
      %1415 = vmatpush.msra.mxu0 %v338
      %1416 = vmatmul.f32.gmra.mxu0 %v1191
      %v1417 = vpop.f32.mrf.mxu0
      %v1418 = vadd.f32 %v1398, %v1417
      %1419 = vdwg.mxu0
      %1420 = vmatpush.msra.mxu0 %v369
      %1421 = vmatpush.msra.mxu0 %v368
      %1422 = vmatpush.msra.mxu0 %v367
      %1423 = vmatpush.msra.mxu0 %v366
      %1424 = vmatpush.msra.mxu0 %v365
      %1425 = vmatpush.msra.mxu0 %v364
      %1426 = vmatpush.msra.mxu0 %v363
      %1427 = vmatpush.msra.mxu0 %v362
      %1428 = vmatpush.msra.mxu0 %v361
      %1429 = vmatpush.msra.mxu0 %v360
      %1430 = vmatpush.msra.mxu0 %v359
      %1431 = vmatpush.msra.mxu0 %v358
      %1432 = vmatpush.msra.mxu0 %v357
      %1433 = vmatpush.msra.mxu0 %v356
      %1434 = vmatpush.msra.mxu0 %v355
      %1435 = vmatpush.msra.mxu0 %v354
      %1436 = vmatmul.f32.gmra.mxu0 %v1318
      %v1437 = vpop.f32.mrf.mxu0
      %v1438 = vadd.f32 %v1418, %v1437
      %1439 = vdwg.mxu0
      %v1440 = vmul.f32 %v1438, %v252
      %v1441 = vadd.f32 %v1440, %v256
      %v1442 = vmax.f32 %v1316, %v1441
      %v1443 = vmax.f32 %v1442, 0.0
      %1445 = vrot.lane.b32.xlu0 %v1443, 64
      %v1446 = vpop.permute.xlu0 %1445
      %v1448 = vmax.f32 %v1443, %v1446
      %s1449 = scalar_lea.vmem %s4, 12
      %v1450 = vld [vmem:[%s1449] sm:$0xf]
      %v1451 = vmul.f32 %v1448, %v1450
      %v1452 = vsel %vm626, %v1451, 0.0
      %1453 = vadd.xlane.f32.xlu0 %v1452
      %v1454 = vpop.xlane.xlu0 %1453
      %v1455 = vrot.slane %v1454, 4
      %v1456 = vadd.f32 %v1454, %v1455
      %v1457 = vrot.slane %v1456, 2
      %v1458 = vadd.f32 %v1456, %v1457
      %v1459 = vrot.slane %v1458, 1
      %v1460 = vadd.f32 %v1458, %v1459
      %s1461 = vtos %v1460
      %s1462 = sadd.f32 %s1187, %s1461
      %v1463 = vld [vmem:[#allocation2] sm:$0x1]
      %v1464 = vstv %s1462
      %v1465 = vadd.f32 %v1464, %v1463
      %vm1466 = vcmask 0
      %1467 = vst.msk [vmem:[%s249] sm:$0x1] %vm1466, %v1465
      %p1468 = scmp.lt.s32.totalorder %s19, 1
      %s1469 = scalar_select %p1468, %s19, 1
      %s1470 = scalar_lea.vmem %s6, %s1469
      // Predicated region
      $region45: #{cnn_encoder_forward.7} parent=43 // pred_check
        %p1471 = pneg %p168
      $region46: #{cnn_encoder_forward.7} parent=43 // pred_check_branch
        %1473 = sbr.rel (%p1471) target = $region48
      $region47: #{cnn_encoder_forward.7} parent=43 // pred_region
        _
      $region48: #{cnn_encoder_forward.7} parent=43 // pred_fallthru
        _
    $region44: #{cnn_encoder_forward.7} parent=5 // pred_fallthru
      _
    %p1474 = scmp.le.s32.totalorder 2, %s14
    // Predicated region
    $region49: #{cnn_encoder_forward.7} parent=5 // pred_check
      %p1475 = pneg %p1474
    $region50: #{cnn_encoder_forward.7} parent=5 // pred_check_branch
      %1477 = sbr.rel (%p1475) target = $region52
    $region51: #{cnn_encoder_forward.7} parent=5 // pred_region
      %s1478 = ssub.s32 %s14, 2
      // Predicated region
      $region53: #{cnn_encoder_forward.7} parent=51 // pred_check
        %p1479 = pneg %p174
      $region54: #{cnn_encoder_forward.7} parent=51 // pred_check_branch
        %1481 = sbr.rel (%p1479) target = $region56
      $region55: #{cnn_encoder_forward.7} parent=51 // pred_region
        %p1482 = scmp.lt.s32.totalorder %s20, 1
        %s1483 = scalar_select %p1482, %s20, 1
        %s1484 = scalar_lea.vmem %s6, %s1483
      $region56: #{cnn_encoder_forward.7} parent=51 // pred_fallthru
        _
    $region52: #{cnn_encoder_forward.7} parent=5 // pred_fallthru
      _
  $region6: #{cnn_encoder_forward.7} parent=0 // loop_footer
    %s18 = sadd.s32 1, %s14
  $region7: #{cnn_encoder_forward.7} parent=0 // loop_footer_branch
    %13 = sbr.rel target = $region3
  $region8: #{cnn_encoder_forward.7} parent=0 // loop_exit
    _

</llo_original>
